<compile_context>
chip_gen: v6e
topology: v6e:2x2x1
jax: 0.10.0
libtpu: 0.0.40
codegen_flags: <defaults>
</compile_context>

<pallas_src>
import functools

import jax
import jax.numpy as jnp
from jax.experimental import pallas as pl
from jax.experimental.pallas import tpu as pltpu

BN_EPS = 1e-5


def _round_up(a, b):
    return (a + b - 1) // b * b


def _bn_from_stats(stats_sum, stats_sq, n_rows):
    """mean / inv_std from per-feature sum and sum-of-squares (biased var)."""
    inv_n = jnp.float32(1.0 / n_rows)
    mean = stats_sum * inv_n
    var = jnp.maximum(stats_sq * inv_n - mean * mean, 0.0)
    inv_std = jax.lax.rsqrt(var + BN_EPS)
    return mean, inv_std


def _mlp(x_bn, w1_ref, b1_ref, w2_ref, b2_ref, w3_ref, b3_ref):
    """fc1 -> fc2 -> fc_flat -> tanh. bf16 MXU matmuls, f32 accumulation."""
    h1 = jnp.dot(x_bn.astype(jnp.bfloat16), w1_ref[...],
                 preferred_element_type=jnp.float32) + b1_ref[...]
    h2 = jnp.dot(h1.astype(jnp.bfloat16), w2_ref[...],
                 preferred_element_type=jnp.float32) + b2_ref[...]
    h3 = jnp.dot(h2.astype(jnp.bfloat16), w3_ref[...],
                 preferred_element_type=jnp.float32) + b3_ref[...]
    return jnp.tanh(h3)


# ---- Stage 1 kernel: per-feature [sum; sum of squares] over batch tiles ----
def bn_stats_kernel(x_ref, stats_ref):
    @pl.when(pl.program_id(0) == 0)
    def _():
        stats_ref[...] = jnp.zeros_like(stats_ref)

    x = x_ref[...].astype(jnp.float32)
    s = jnp.sum(x, axis=0, keepdims=True)
    sq = jnp.sum(x * x, axis=0, keepdims=True)
    stats_ref[...] += jnp.concatenate([s, sq], axis=0)


# ---- Stage 2 kernel: BatchNorm (from reduced stats) + MLP, batch-tiled ----
def gen_mlp_kernel(stats_ref, x_ref, w1_ref, b1_ref, w2_ref, b2_ref,
                   w3_ref, b3_ref, packed_ref, *, n_rows):
    mean, inv_std = _bn_from_stats(stats_ref[0:1, :], stats_ref[1:2, :], n_rows)

    x = x_ref[...].astype(jnp.float32)
    x_bn = (x - mean) * inv_std
    raw = jnp.tanh(x_bn)
    out = _mlp(x_bn, w1_ref, b1_ref, w2_ref, b2_ref, w3_ref, b3_ref)

    # Lane-dense packed output: [:, :L] = out, [:, L:] = raw_feats.
    packed_ref[...] = jnp.concatenate([out, raw], axis=-1).astype(packed_ref.dtype)


# ---- Fused single-tile kernel (whole batch fits in one block) ----
def gen_fused_kernel(x_ref, w1_ref, b1_ref, w2_ref, b2_ref, w3_ref, b3_ref,
                     packed_ref, *, n_rows):
    x = x_ref[...].astype(jnp.float32)
    s = jnp.sum(x, axis=0, keepdims=True)
    sq = jnp.sum(x * x, axis=0, keepdims=True)
    mean, inv_std = _bn_from_stats(s, sq, n_rows)

    x_bn = (x - mean) * inv_std
    raw = jnp.tanh(x_bn)
    out = _mlp(x_bn, w1_ref, b1_ref, w2_ref, b2_ref, w3_ref, b3_ref)

    packed_ref[...] = jnp.concatenate([out, raw], axis=-1).astype(packed_ref.dtype)


def gen_forward(x, w1, b1, w2, b2, w3, b3, *, block_n=256):
    n, latent_dim = x.shape
    # Pick a batch tile and zero-pad the batch so it tiles evenly.
    block_n = min(block_n, _round_up(n, 8))
    n_pad = _round_up(n, block_n)
    x_pad = jnp.pad(x, ((0, n_pad - n), (0, 0))) if n_pad != n else x
    num_blocks = n_pad // block_n

    # bf16 weights: halves HBM->VMEM weight traffic (dominant cost at small
    # batch); f32 accumulation preserved inside the kernel.
    w1b = w1.astype(jnp.bfloat16)
    w2b = w2.astype(jnp.bfloat16)
    w3b = w3.astype(jnp.bfloat16)

    vmem_limit = 32 << 20  # well under physical VMEM on v5e/v6e/v7x

    if num_blocks == 1:
        # Single fused kernel: one launch, one pass over x.
        packed = pl.pallas_call(
            functools.partial(gen_fused_kernel, n_rows=n),
            out_shape=jax.ShapeDtypeStruct((n_pad, 2 * latent_dim), jnp.float32),
            compiler_params=pltpu.CompilerParams(vmem_limit_bytes=vmem_limit),
        )(x_pad, w1b, b1, w2b, b2, w3b, b3)
    else:
        # Stage 1: global BatchNorm batch statistics (sum, sum of squares).
        stats = pl.pallas_call(
            bn_stats_kernel,
            out_shape=jax.ShapeDtypeStruct((2, latent_dim), jnp.float32),
            grid=(num_blocks,),
            in_specs=[pl.BlockSpec((block_n, latent_dim), lambda i: (i, 0))],
            out_specs=pl.BlockSpec((2, latent_dim), lambda i: (0, 0)),
            compiler_params=pltpu.CompilerParams(
                dimension_semantics=("arbitrary",),
                vmem_limit_bytes=vmem_limit),
        )(x_pad)

        def full(shape):
            ndim = len(shape)
            return pl.BlockSpec(shape, lambda i, _nd=ndim: (0,) * _nd)

        # Stage 2: normalize + MLP, tiled over the batch ("parallel").
        packed = pl.pallas_call(
            functools.partial(gen_mlp_kernel, n_rows=n),
            out_shape=jax.ShapeDtypeStruct((n_pad, 2 * latent_dim), jnp.float32),
            grid=(num_blocks,),
            in_specs=[
                full((2, latent_dim)),                                  # stats
                pl.BlockSpec((block_n, latent_dim), lambda i: (i, 0)),  # x
                full(w1b.shape), full(b1.shape),                        # fc1
                full(w2b.shape), full(b2.shape),                        # fc2
                full(w3b.shape), full(b3.shape),                        # fc_flat
            ],
            out_specs=pl.BlockSpec((block_n, 2 * latent_dim), lambda i: (i, 0)),
            compiler_params=pltpu.CompilerParams(
                dimension_semantics=("parallel",),
                vmem_limit_bytes=vmem_limit),
        )(stats, x_pad, w1b, b1, w2b, b2, w3b, b3)

    out = packed[:n, :latent_dim]
    raw_feats = packed[:n, latent_dim:]
    return out, raw_feats


def init_params(key, latent_dim):
    """Deterministic synthetic parameters (shapes follow Gen.__init__)."""
    k1, k2, k3 = jax.random.split(key, 3)

    def xavier(k, fan_in, fan_out):
        limit = (6.0 / (fan_in + fan_out)) ** 0.5
        return jax.random.uniform(k, (fan_in, fan_out), jnp.float32,
                                  minval=-limit, maxval=limit)

    w1 = xavier(k1, latent_dim, 512)     # fc1.weight^T
    b1 = jnp.zeros((1, 512), jnp.float32)
    w2 = xavier(k2, 512, 2048)           # fc2.weight^T
    b2 = jnp.zeros((1, 2048), jnp.float32)
    w3 = xavier(k3, 2048, latent_dim)    # fc_flat.weight^T
    b3 = jnp.zeros((1, latent_dim), jnp.float32)
    return w1, b1, w2, b2, w3, b3


def reference_forward(x, w1, b1, w2, b2, w3, b3):
    """Pure-JAX reference mirroring the kernel's bf16-weight / f32-acc precision."""
    mean = jnp.mean(x, axis=0, keepdims=True)
    var = jnp.maximum(jnp.mean(x * x, axis=0, keepdims=True) - mean * mean, 0.0)
    x_bn = (x - mean) * jax.lax.rsqrt(var + BN_EPS)
    raw = jnp.tanh(x_bn)

    w1b = w1.astype(jnp.bfloat16)
    w2b = w2.astype(jnp.bfloat16)
    w3b = w3.astype(jnp.bfloat16)
    h1 = jnp.dot(x_bn.astype(jnp.bfloat16), w1b,
                 preferred_element_type=jnp.float32) + b1
    h2 = jnp.dot(h1.astype(jnp.bfloat16), w2b,
                 preferred_element_type=jnp.float32) + b2
    h3 = jnp.dot(h2.astype(jnp.bfloat16), w3b,
                 preferred_element_type=jnp.float32) + b3
    out = jnp.tanh(h3)
    return out, raw


if __name__ == "__main__":
    key = jax.random.PRNGKey(0)
    kx1, kx2, kp = jax.random.split(key, 3)

    LATENT_DIM = 64  # latent_dim / feature width
    params = init_params(kp, LATENT_DIM)

    # --- Case 1: small batch -> fused single-kernel path ---
    N1 = 8
    x1 = jax.random.normal(kx1, (N1, LATENT_DIM), jnp.float32)
    out1, raw1 = gen_forward(x1, *params)
    jax.block_until_ready((out1, raw1))
    ref_out1, ref_raw1 = reference_forward(x1, *params)
    assert out1.shape == (N1, LATENT_DIM) and raw1.shape == (N1, LATENT_DIM)
    assert jnp.allclose(raw1, ref_raw1, atol=1e-4, rtol=1e-4), "raw_feats mismatch (fused)"
    assert jnp.allclose(out1, ref_out1, atol=2e-3, rtol=2e-3), "out mismatch (fused)"

    # --- Case 2: larger, non-divisible batch -> two-pass tiled path + padding ---
    N2 = 40
    x2 = jax.random.normal(kx2, (N2, LATENT_DIM), jnp.float32)
    out2, raw2 = gen_forward(x2, *params, block_n=16)
    jax.block_until_ready((out2, raw2))
    ref_out2, ref_raw2 = reference_forward(x2, *params)
    assert out2.shape == (N2, LATENT_DIM) and raw2.shape == (N2, LATENT_DIM)
    assert jnp.allclose(raw2, ref_raw2, atol=1e-4, rtol=1e-4), "raw_feats mismatch (tiled)"
    assert jnp.allclose(out2, ref_out2, atol=2e-3, rtol=2e-3), "out mismatch (tiled)"

    print("KERNEL_OK")
</pallas_src>

<mosaic_0001>
module attributes {stable_mosaic.version = 11 : i64} {
  func.func @gen_fused_kernel(%arg0: memref<8x64xf32, #tpu.memory_space<vmem>>, %arg1: memref<64x512xbf16, #tpu.memory_space<vmem>>, %arg2: memref<1x512xf32, #tpu.memory_space<vmem>>, %arg3: memref<512x2048xbf16, #tpu.memory_space<vmem>>, %arg4: memref<1x2048xf32, #tpu.memory_space<vmem>>, %arg5: memref<2048x64xbf16, #tpu.memory_space<vmem>>, %arg6: memref<1x64xf32, #tpu.memory_space<vmem>>, %arg7: memref<8x128xf32, #tpu.memory_space<vmem>>) attributes {dimension_semantics = [], scalar_prefetch = 0 : i64, scratch_operands = 0 : i64, tpu.core_type = #tpu.core_type<tc>} {
    %c0 = arith.constant 0 : index
    %c0_0 = arith.constant 0 : index
    %0 = vector.load %arg0[%c0, %c0_0] : memref<8x64xf32, #tpu.memory_space<vmem>>, vector<8x64xf32>
    %cst = arith.constant dense<0.000000e+00> : vector<64xf32>
    %1 = vector.multi_reduction <add>, %0, %cst [0] : vector<8x64xf32> to vector<64xf32>
    %2 = vector.shape_cast %1 : vector<64xf32> to vector<1x64xf32>
    %3 = arith.mulf %0, %0 : vector<8x64xf32>
    %cst_1 = arith.constant dense<0.000000e+00> : vector<64xf32>
    %4 = vector.multi_reduction <add>, %3, %cst_1 [0] : vector<8x64xf32> to vector<64xf32>
    %5 = vector.shape_cast %4 : vector<64xf32> to vector<1x64xf32>
    %cst_2 = arith.constant 1.250000e-01 : f32
    %6 = vector.broadcast %cst_2 : f32 to vector<1x64xf32>
    %7 = arith.mulf %2, %6 : vector<1x64xf32>
    %cst_3 = arith.constant 1.250000e-01 : f32
    %8 = vector.broadcast %cst_3 : f32 to vector<1x64xf32>
    %9 = arith.mulf %5, %8 : vector<1x64xf32>
    %10 = arith.mulf %7, %7 : vector<1x64xf32>
    %11 = arith.subf %9, %10 : vector<1x64xf32>
    %cst_4 = arith.constant 0.000000e+00 : f32
    %12 = vector.broadcast %cst_4 : f32 to vector<1x64xf32>
    %13 = arith.maximumf %11, %12 : vector<1x64xf32>
    %cst_5 = arith.constant 9.99999974E-6 : f32
    %14 = vector.broadcast %cst_5 : f32 to vector<1x64xf32>
    %15 = arith.addf %13, %14 : vector<1x64xf32>
    %16 = math.rsqrt %15 : vector<1x64xf32>
    %17 = vector.broadcast %7 : vector<1x64xf32> to vector<8x64xf32>
    %18 = arith.subf %0, %17 : vector<8x64xf32>
    %19 = vector.broadcast %16 : vector<1x64xf32> to vector<8x64xf32>
    %20 = arith.mulf %18, %19 : vector<8x64xf32>
    %21 = math.tanh %20 : vector<8x64xf32>
    %22 = arith.truncf %20 : vector<8x64xf32> to vector<8x64xbf16>
    %c0_6 = arith.constant 0 : index
    %c0_7 = arith.constant 0 : index
    %23 = vector.load %arg1[%c0_6, %c0_7] : memref<64x512xbf16, #tpu.memory_space<vmem>>, vector<64x512xbf16>
    %cst_8 = arith.constant dense<0.000000e+00> : vector<8x512xf32>
    %24 = tpu.matmul %22, %23, %cst_8 {dimension_numbers = #tpu.dot_dimension_numbers<[1], [0], [0], [1], [0, 0, 1, 1], [], []>} : vector<8x64xbf16>, vector<64x512xbf16>, vector<8x512xf32> -> vector<8x512xf32>
    %c0_9 = arith.constant 0 : index
    %c0_10 = arith.constant 0 : index
    %25 = vector.load %arg2[%c0_9, %c0_10] : memref<1x512xf32, #tpu.memory_space<vmem>>, vector<1x512xf32>
    %26 = vector.broadcast %25 : vector<1x512xf32> to vector<8x512xf32>
    %27 = arith.addf %24, %26 : vector<8x512xf32>
    %28 = arith.truncf %27 : vector<8x512xf32> to vector<8x512xbf16>
    %c0_11 = arith.constant 0 : index
    %c0_12 = arith.constant 0 : index
    %29 = vector.load %arg3[%c0_11, %c0_12] : memref<512x2048xbf16, #tpu.memory_space<vmem>>, vector<512x2048xbf16>
    %cst_13 = arith.constant dense<0.000000e+00> : vector<8x2048xf32>
    %30 = tpu.matmul %28, %29, %cst_13 {dimension_numbers = #tpu.dot_dimension_numbers<[1], [0], [0], [1], [0, 0, 1, 1], [], []>} : vector<8x512xbf16>, vector<512x2048xbf16>, vector<8x2048xf32> -> vector<8x2048xf32>
    %c0_14 = arith.constant 0 : index
    %c0_15 = arith.constant 0 : index
    %31 = vector.load %arg4[%c0_14, %c0_15] : memref<1x2048xf32, #tpu.memory_space<vmem>>, vector<1x2048xf32>
    %32 = vector.broadcast %31 : vector<1x2048xf32> to vector<8x2048xf32>
    %33 = arith.addf %30, %32 : vector<8x2048xf32>
    %34 = arith.truncf %33 : vector<8x2048xf32> to vector<8x2048xbf16>
    %c0_16 = arith.constant 0 : index
    %c0_17 = arith.constant 0 : index
    %35 = vector.load %arg5[%c0_16, %c0_17] : memref<2048x64xbf16, #tpu.memory_space<vmem>>, vector<2048x64xbf16>
    %cst_18 = arith.constant dense<0.000000e+00> : vector<8x64xf32>
    %36 = tpu.matmul %34, %35, %cst_18 {dimension_numbers = #tpu.dot_dimension_numbers<[1], [0], [0], [1], [0, 0, 1, 1], [], []>} : vector<8x2048xbf16>, vector<2048x64xbf16>, vector<8x64xf32> -> vector<8x64xf32>
    %c0_19 = arith.constant 0 : index
    %c0_20 = arith.constant 0 : index
    %37 = vector.load %arg6[%c0_19, %c0_20] : memref<1x64xf32, #tpu.memory_space<vmem>>, vector<1x64xf32>
    %38 = vector.broadcast %37 : vector<1x64xf32> to vector<8x64xf32>
    %39 = arith.addf %36, %38 : vector<8x64xf32>
    %40 = math.tanh %39 : vector<8x64xf32>
    %41 = tpu.concatenate %40, %21 in 1 : vector<8x64xf32>, vector<8x64xf32> -> vector<8x128xf32>
    %c0_21 = arith.constant 0 : index
    %c0_22 = arith.constant 0 : index
    %42 = vector.load %arg7[%c0_21, %c0_22] : memref<8x128xf32, #tpu.memory_space<vmem>>, vector<8x128xf32>
    tpu.vector_store %arg7[%c0_21, %c0_22], %41 {strides = array<i32>} : memref<8x128xf32, #tpu.memory_space<vmem>>, vector<8x128xf32>,
    return
  }
}

</mosaic_0001>

<llo_original>
// kernel: tpu_custom_call.1
$region0: #{tpu_custom_call.1}
  #allocation0 [shape = 'u32[]', space=smem, size = 0x4, offset = 0x4, fixed_abs, tag = 'smem constant byte address 0x4 - core index']
  #allocation1 [shape = 'u32[144,128]{1,0:T(1,128)}', space=vmem, size = 0x12000, scoped, tag = 'internal scratch']
  %s0 = inlined_call_operand.hbm [shape: f32[8,64], index: 0, kind: input, shape index: {}]
  %s1 = inlined_call_operand.hbm [shape: bf16[64,512], index: 1, kind: input, shape index: {}]
  %s2 = inlined_call_operand.hbm [shape: f32[1,512], index: 2, kind: input, shape index: {}]
  %s3 = inlined_call_operand.hbm [shape: bf16[512,2048], index: 3, kind: input, shape index: {}]
  %s4 = inlined_call_operand.hbm [shape: f32[1,2048], index: 4, kind: input, shape index: {}]
  %s5 = inlined_call_operand.vmem [shape: bf16[2048,64], index: 5, kind: input, shape index: {}]
  %s6 = inlined_call_operand.hbm [shape: f32[1,64], index: 6, kind: input, shape index: {}]
  %s7 = inlined_call_operand.hbm [shape: f32[8,128], index: 7, kind: output, shape index: {}]
  %s8 = sld [smem:[#allocation0]]
  $region62: #{tpu_custom_call.1} parent=0
    _
  %s10 = ssub.s32 1, %s8
  %s11 = scalar_select 0, %s10, %s8
  $region1: #{tpu_custom_call.1} parent=0
    #allocation2 [shape = 'u8[4096]{0}', space=vmem, size = 0x1000, scoped, tag = 'input window, operand 0, single buffered']
    #allocation3 [shape = 's32[1]{0}', space=sflag, size = 0x4, scoped, tag = 'scoped memory for tpu_custom_call.1']
    #allocation4 [shape = 's32[1]{0}', space=sflag, size = 0x4, scoped, tag = 'scoped memory for tpu_custom_call.1']
    #allocation5 [shape = 'u8[65536]{0}', space=vmem, size = 0x10000, scoped, tag = 'input window, operand 1, single buffered']
    #allocation6 [shape = 's32[1]{0}', space=sflag, size = 0x4, scoped, tag = 'scoped memory for tpu_custom_call.1']
    #allocation7 [shape = 'u8[2048]{0}', space=vmem, size = 0x800, scoped, tag = 'input window, operand 2, single buffered']
    #allocation8 [shape = 'u8[2097152]{0}', space=vmem, size = 0x200000, scoped, tag = 'input window, operand 3, single buffered']
    #allocation9 [shape = 's32[1]{0}', space=sflag, size = 0x4, scoped, tag = 'scoped memory for tpu_custom_call.1']
    #allocation10 [shape = 'u8[8192]{0}', space=vmem, size = 0x2000, scoped, tag = 'input window, operand 4, single buffered']
    #allocation11 [shape = 'u8[512]{0}', space=vmem, size = 0x400, scoped, tag = 'input window, operand 6, single buffered']
    #allocation12 [shape = 's32[1]{0}', space=sflag, size = 0x4, scoped, tag = 'scoped memory for tpu_custom_call.1']
    #allocation13 [shape = 'u8[4096]{0}', space=vmem, size = 0x1000, scoped, tag = 'output window, operand 0, single buffered']
    %12 = vsyncpa [#allocation3], 0
    %13 = vsyncpa [#allocation6], 0
    %14 = vsyncpa [#allocation9], 0
    %15 = vsyncpa [#allocation12], 0
    %16 = vsyncpa [#allocation4], 0
    // Predicated region
    $region2: #{tpu_custom_call.1} parent=1 // pred_check
      _
    $region3: #{tpu_custom_call.1} parent=1 // pred_check_branch
      %18 = sbr.rel (0) target = $region5
    $region4: #{tpu_custom_call.1} parent=1 // pred_region
      %s20 = ssub.s32 128, 128
      %21 = vsyncadd [#allocation3], %s20
      %s23 = sshll.u32 [#allocation2], 4
      %s24 = int_to_ptr.vmem [resolvable:$true] %s23
      %26 = dma.hbm_to_vmem [thread:$0]  %s0, 128, %s24, [#allocation3]
    $region5: #{tpu_custom_call.1} parent=1 // pred_fallthru
      _
    // Predicated region
    $region6: #{tpu_custom_call.1} parent=1 // pred_check
      _
    $region7: #{tpu_custom_call.1} parent=1 // pred_check_branch
      %28 = sbr.rel (0) target = $region9
    $region8: #{tpu_custom_call.1} parent=1 // pred_region
      %s30 = ssub.s32 2048, 2048
      %31 = vsyncadd [#allocation6], %s30
      %s32 = sshll.u32 [#allocation5], 4
      %s33 = int_to_ptr.vmem [resolvable:$true] %s32
      %38 = dma.hbm_to_vmem [thread:$0]  %s1, 2048, %s33, [#allocation6], 256, 256, 16
    $region9: #{tpu_custom_call.1} parent=1 // pred_fallthru
      _
    // Predicated region
    $region10: #{tpu_custom_call.1} parent=1 // pred_check
      _
    $region11: #{tpu_custom_call.1} parent=1 // pred_check_branch
      %40 = sbr.rel (0) target = $region13
    $region12: #{tpu_custom_call.1} parent=1 // pred_region
      %s42 = ssub.s32 64, 64
      %43 = vsyncadd [#allocation6], %s42
      %s45 = sshll.u32 [#allocation7], 4
      %s46 = int_to_ptr.vmem [resolvable:$true] %s45
      %48 = dma.hbm_to_vmem [thread:$0]  %s2, 64, %s46, [#allocation6]
    $region13: #{tpu_custom_call.1} parent=1 // pred_fallthru
      _
    // Predicated region
    $region14: #{tpu_custom_call.1} parent=1 // pred_check
      _
    $region15: #{tpu_custom_call.1} parent=1 // pred_check_branch
      %50 = sbr.rel (0) target = $region17
    $region16: #{tpu_custom_call.1} parent=1 // pred_region
      %s52 = ssub.s32 65536, 65536
      %53 = vsyncadd [#allocation9], %s52
      %s54 = sshll.u32 [#allocation8], 4
      %s55 = int_to_ptr.vmem [resolvable:$true] %s54
      %60 = dma.hbm_to_vmem [thread:$0]  %s3, 65536, %s55, [#allocation9], 1024, 1024, 64
    $region17: #{tpu_custom_call.1} parent=1 // pred_fallthru
      _
    // Predicated region
    $region18: #{tpu_custom_call.1} parent=1 // pred_check
      _
    $region19: #{tpu_custom_call.1} parent=1 // pred_check_branch
      %62 = sbr.rel (0) target = $region21
    $region20: #{tpu_custom_call.1} parent=1 // pred_region
      %s64 = ssub.s32 256, 256
      %65 = vsyncadd [#allocation9], %s64
      %s67 = sshll.u32 [#allocation10], 4
      %s68 = int_to_ptr.vmem [resolvable:$true] %s67
      %70 = dma.hbm_to_vmem [thread:$0]  %s4, 256, %s68, [#allocation9]
    $region21: #{tpu_custom_call.1} parent=1 // pred_fallthru
      _
    // Predicated region
    $region22: #{tpu_custom_call.1} parent=1 // pred_check
      _
    $region23: #{tpu_custom_call.1} parent=1 // pred_check_branch
      %72 = sbr.rel (0) target = $region25
    $region24: #{tpu_custom_call.1} parent=1 // pred_region
      _
    $region25: #{tpu_custom_call.1} parent=1 // pred_fallthru
      _
    // Predicated region
    $region26: #{tpu_custom_call.1} parent=1 // pred_check
      _
    $region27: #{tpu_custom_call.1} parent=1 // pred_check_branch
      %74 = sbr.rel (0) target = $region29
    $region28: #{tpu_custom_call.1} parent=1 // pred_region
      %s76 = ssub.s32 16, 16
      %77 = vsyncadd [#allocation12], %s76
      %s79 = sshll.u32 [#allocation11], 4
      %s80 = int_to_ptr.vmem [resolvable:$true] %s79
      %82 = dma.hbm_to_vmem [thread:$0]  %s6, 16, %s80, [#allocation12]
    $region29: #{tpu_custom_call.1} parent=1 // pred_fallthru
      _
    // Predicated region
    $region30: #{tpu_custom_call.1} parent=1 // pred_check
      _
    $region31: #{tpu_custom_call.1} parent=1 // pred_check_branch
      %84 = sbr.rel (0) target = $region33
    $region32: #{tpu_custom_call.1} parent=1 // pred_region
      %85 = dma.done [#allocation3], 128
    $region33: #{tpu_custom_call.1} parent=1 // pred_fallthru
      _
    // Predicated region
    $region34: #{tpu_custom_call.1} parent=1 // pred_check
      _
    $region35: #{tpu_custom_call.1} parent=1 // pred_check_branch
      %87 = sbr.rel (0) target = $region37
    $region36: #{tpu_custom_call.1} parent=1 // pred_region
      %88 = dma.done [#allocation6], 2048
    $region37: #{tpu_custom_call.1} parent=1 // pred_fallthru
      _
    // Predicated region
    $region38: #{tpu_custom_call.1} parent=1 // pred_check
      _
    $region39: #{tpu_custom_call.1} parent=1 // pred_check_branch
      %90 = sbr.rel (0) target = $region41
    $region40: #{tpu_custom_call.1} parent=1 // pred_region
      %91 = dma.done [#allocation6], 64
    $region41: #{tpu_custom_call.1} parent=1 // pred_fallthru
      _
    // Predicated region
    $region42: #{tpu_custom_call.1} parent=1 // pred_check
      _
    $region43: #{tpu_custom_call.1} parent=1 // pred_check_branch
      %93 = sbr.rel (0) target = $region45
    $region44: #{tpu_custom_call.1} parent=1 // pred_region
      %94 = dma.done [#allocation9], 65536
    $region45: #{tpu_custom_call.1} parent=1 // pred_fallthru
      _
    // Predicated region
    $region46: #{tpu_custom_call.1} parent=1 // pred_check
      _
    $region47: #{tpu_custom_call.1} parent=1 // pred_check_branch
      %96 = sbr.rel (0) target = $region49
    $region48: #{tpu_custom_call.1} parent=1 // pred_region
      %97 = dma.done [#allocation9], 256
    $region49: #{tpu_custom_call.1} parent=1 // pred_fallthru
      _
    // Predicated region
    $region50: #{tpu_custom_call.1} parent=1 // pred_check
      _
    $region51: #{tpu_custom_call.1} parent=1 // pred_check_branch
      %99 = sbr.rel (0) target = $region53
    $region52: #{tpu_custom_call.1} parent=1 // pred_region
      %100 = dma.done [#allocation12], 16
    $region53: #{tpu_custom_call.1} parent=1 // pred_fallthru
      _
    %v102 = vld [vmem:[#allocation2] sm:$0xff]
    %vm103 = vcmask 523264
    %v104 = vsel %vm103, %v102, 0.0
    %v105 = vrot.slane %v104, 4
    %v106 = vadd.f32 %v104, %v105
    %v107 = vrot.slane %v106, 2
    %v108 = vadd.f32 %v106, %v107
    %v109 = vrot.slane %v108, 1
    %v110 = vadd.f32 %v108, %v109
    %v111 = vmul.f32 %v102, %v102
    %v112 = vsel %vm103, %v111, 0.0
    %v113 = vrot.slane %v112, 4
    %v114 = vadd.f32 %v112, %v113
    %v115 = vrot.slane %v114, 2
    %v116 = vadd.f32 %v114, %v115
    %v117 = vrot.slane %v116, 1
    %v118 = vadd.f32 %v116, %v117
    %v119 = vmul.f32 %v110, 0.125
    %v120 = vmul.f32 %v118, 0.125
    %v121 = vmul.f32 %v119, %v119
    %v122 = vsub.f32 %v120, %v121
    %v123 = vmax.f32 %v122, 0.0
    %v124 = vadd.f32 %v123, 1e-05
    %v125 = vrsqrt.pop %v124
    %v126 = vsub.f32 %v102, %v119
    %v127 = vmul.f32 %v126, %v125
    %v128 = vtanh.pop %v127
    %v129 = vpack.c.bf16 %v127, %v127
    %v130 = vld [vmem:[#allocation5] sm:$0xff]
    %v131 = vld [vmem:[#allocation5 + $0x8] sm:$0xff]
    %v132 = vld [vmem:[#allocation5 + $0x10] sm:$0xff]
    %v133 = vld [vmem:[#allocation5 + $0x18] sm:$0xff]
    %v134 = vld [vmem:[#allocation5 + $0x20] sm:$0xff]
    %v135 = vld [vmem:[#allocation5 + $0x28] sm:$0xff]
    %v136 = vld [vmem:[#allocation5 + $0x30] sm:$0xff]
    %v137 = vld [vmem:[#allocation5 + $0x38] sm:$0xff]
    %v138 = vld [vmem:[#allocation5 + $0x40] sm:$0xff]
    %v139 = vld [vmem:[#allocation5 + $0x48] sm:$0xff]
    %v140 = vld [vmem:[#allocation5 + $0x50] sm:$0xff]
    %v141 = vld [vmem:[#allocation5 + $0x58] sm:$0xff]
    %v142 = vld [vmem:[#allocation5 + $0x60] sm:$0xff]
    %v143 = vld [vmem:[#allocation5 + $0x68] sm:$0xff]
    %v144 = vld [vmem:[#allocation5 + $0x70] sm:$0xff]
    %v145 = vld [vmem:[#allocation5 + $0x78] sm:$0xff]
    %v146 = vld [vmem:[#allocation7] sm:$0xf]
    %v148 = vlaneseq
    %v149 = vshrl.u32 %v148, 7
    %v150 = vsub.s32 0, %v149
    %v151 = vrot.slane %v146, %v150
    %v152 = vlaneseq
    %v153 = vshrl.u32 %v152, 7
    %v154 = vsub.s32 1, %v153
    %v155 = vrot.slane %v146, %v154
    %v156 = vlaneseq
    %v157 = vshrl.u32 %v156, 7
    %v158 = vsub.s32 2, %v157
    %v159 = vrot.slane %v146, %v158
    %v160 = vlaneseq
    %v161 = vshrl.u32 %v160, 7
    %v162 = vsub.s32 3, %v161
    %v163 = vrot.slane %v146, %v162
    %v184 = vunpack.c.l.b16 %v130
    %v185 = vunpack.c.h.b16 %v130
    %v186 = vunpack.c.l.b16 %v131
    %v187 = vunpack.c.h.b16 %v131
    %v188 = vunpack.c.l.b16 %v132
    %v189 = vunpack.c.h.b16 %v132
    %v190 = vunpack.c.l.b16 %v133
    %v191 = vunpack.c.h.b16 %v133
    %v192 = vunpack.c.l.b16 %v134
    %v193 = vunpack.c.h.b16 %v134
    %v194 = vunpack.c.l.b16 %v135
    %v195 = vunpack.c.h.b16 %v135
    %v196 = vunpack.c.l.b16 %v136
    %v197 = vunpack.c.h.b16 %v136
    %v198 = vunpack.c.l.b16 %v137
    %v199 = vunpack.c.h.b16 %v137
    %v200 = vunpack.c.l.b16 %v138
    %v201 = vunpack.c.h.b16 %v138
    %v202 = vunpack.c.l.b16 %v139
    %v203 = vunpack.c.h.b16 %v139
    %v204 = vunpack.c.l.b16 %v140
    %v205 = vunpack.c.h.b16 %v140
    %v206 = vunpack.c.l.b16 %v141
    %v207 = vunpack.c.h.b16 %v141
    %v208 = vunpack.c.l.b16 %v142
    %v209 = vunpack.c.h.b16 %v142
    %v210 = vunpack.c.l.b16 %v143
    %v211 = vunpack.c.h.b16 %v143
    %v212 = vunpack.c.l.b16 %v144
    %v213 = vunpack.c.h.b16 %v144
    %v214 = vunpack.c.l.b16 %v145
    %v215 = vunpack.c.h.b16 %v145
    %v216 = vpack.c.b16 %v188, %v184
    %v217 = vpack.c.b16 %v189, %v185
    %v218 = vpack.c.b16 %v190, %v186
    %v219 = vpack.c.b16 %v191, %v187
    %v220 = vpack.c.b16 %v196, %v192
    %v221 = vpack.c.b16 %v197, %v193
    %v222 = vpack.c.b16 %v198, %v194
    %v223 = vpack.c.b16 %v199, %v195
    %v224 = vpack.c.b16 %v204, %v200
    %v225 = vpack.c.b16 %v205, %v201
    %v226 = vpack.c.b16 %v206, %v202
    %v227 = vpack.c.b16 %v207, %v203
    %v228 = vpack.c.b16 %v212, %v208
    %v229 = vpack.c.b16 %v213, %v209
    %v230 = vpack.c.b16 %v214, %v210
    %v231 = vpack.c.b16 %v215, %v211
    %v249 = vsel %vm103, %v129, 0
    %251 = vmatprep.subr.bf16.mxu0 0
    %252 = vmatpush1.bf16.msra.mxu0 0
    %253 = vmatprep.subr.bf16.mxu0 0
    %254 = vmatpush1.bf16.msra.mxu0 0
    %255 = vmatprep.subr.bf16.mxu0 0
    %256 = vmatpush1.bf16.msra.mxu0 0
    %257 = vmatprep.subr.bf16.mxu0 0
    %258 = vmatpush1.bf16.msra.mxu0 0
    %259 = vmatprep.subr.bf16.mxu0 %v229
    %260 = vmatpush1.bf16.msra.mxu0 %v228
    %261 = vmatprep.subr.bf16.mxu0 %v225
    %262 = vmatpush1.bf16.msra.mxu0 %v224
    %263 = vmatprep.subr.bf16.mxu0 %v221
    %264 = vmatpush1.bf16.msra.mxu0 %v220
    %265 = vmatprep.subr.bf16.mxu0 %v217
    %266 = vmatpush1.bf16.msra.mxu0 %v216
    %267 = vmatprep.subr.bf16.mxu0 0
    %268 = vmatpush2.bf16.msra.mxu0 0
    %269 = vmatprep.subr.bf16.mxu0 0
    %270 = vmatpush2.bf16.msra.mxu0 0
    %271 = vmatprep.subr.bf16.mxu0 0
    %272 = vmatpush2.bf16.msra.mxu0 0
    %273 = vmatprep.subr.bf16.mxu0 0
    %274 = vmatpush2.bf16.msra.mxu0 0
    %275 = vmatprep.subr.bf16.mxu0 0
    %276 = vmatpush2.bf16.msra.mxu0 0
    %277 = vmatprep.subr.bf16.mxu0 0
    %278 = vmatpush2.bf16.msra.mxu0 0
    %279 = vmatprep.subr.bf16.mxu0 0
    %280 = vmatpush2.bf16.msra.mxu0 0
    %281 = vmatprep.subr.bf16.mxu0 0
    %282 = vmatpush2.bf16.msra.mxu0 0
    %283 = vmatprep.mubr.bf16.mxu0 0
    %284 = vmatmul.mubr.bf16.gmra.mxu0 %v249
    %v285 = vpop.f32.mrf.mxu0
    %v286 = vadd.f32 %v151, %v285
    %v287 = vpop.f32.mrf.mxu0
    %v288 = vadd.f32 %v155, %v287
    %v289 = vpop.f32.mrf.mxu0
    %v290 = vpop.f32.mrf.mxu0
    %291 = vdwg.mxu0
    %292 = vmatprep.subr.bf16.mxu0 0
    %293 = vmatpush1.bf16.msra.mxu0 0
    %294 = vmatprep.subr.bf16.mxu0 0
    %295 = vmatpush1.bf16.msra.mxu0 0
    %296 = vmatprep.subr.bf16.mxu0 0
    %297 = vmatpush1.bf16.msra.mxu0 0
    %298 = vmatprep.subr.bf16.mxu0 0
    %299 = vmatpush1.bf16.msra.mxu0 0
    %300 = vmatprep.subr.bf16.mxu0 %v231
    %301 = vmatpush1.bf16.msra.mxu0 %v230
    %302 = vmatprep.subr.bf16.mxu0 %v227
    %303 = vmatpush1.bf16.msra.mxu0 %v226
    %304 = vmatprep.subr.bf16.mxu0 %v223
    %305 = vmatpush1.bf16.msra.mxu0 %v222
    %306 = vmatprep.subr.bf16.mxu0 %v219
    %307 = vmatpush1.bf16.msra.mxu0 %v218
    %308 = vmatprep.subr.bf16.mxu0 0
    %309 = vmatpush2.bf16.msra.mxu0 0
    %310 = vmatprep.subr.bf16.mxu0 0
    %311 = vmatpush2.bf16.msra.mxu0 0
    %312 = vmatprep.subr.bf16.mxu0 0
    %313 = vmatpush2.bf16.msra.mxu0 0
    %314 = vmatprep.subr.bf16.mxu0 0
    %315 = vmatpush2.bf16.msra.mxu0 0
    %316 = vmatprep.subr.bf16.mxu0 0
    %317 = vmatpush2.bf16.msra.mxu0 0
    %318 = vmatprep.subr.bf16.mxu0 0
    %319 = vmatpush2.bf16.msra.mxu0 0
    %320 = vmatprep.subr.bf16.mxu0 0
    %321 = vmatpush2.bf16.msra.mxu0 0
    %322 = vmatprep.subr.bf16.mxu0 0
    %323 = vmatpush2.bf16.msra.mxu0 0
    %324 = vmatprep.mubr.bf16.mxu0 0
    %325 = vmatmul.mubr.bf16.gmra.mxu0 %v249
    %v326 = vpop.f32.mrf.mxu0
    %v327 = vadd.f32 %v159, %v326
    %v328 = vpop.f32.mrf.mxu0
    %v329 = vadd.f32 %v163, %v328
    %v330 = vpop.f32.mrf.mxu0
    %v331 = vpop.f32.mrf.mxu0
    %332 = vdwg.mxu0
    %v333 = vpack.c.bf16 %v286, %v286
    %v334 = vpack.c.bf16 %v288, %v288
    %v335 = vpack.c.bf16 %v327, %v327
    %v336 = vpack.c.bf16 %v329, %v329
    %v337 = vld [vmem:[#allocation8] sm:$0xff]
    %v338 = vld [vmem:[#allocation8 + $0x8] sm:$0xff]
    %v339 = vld [vmem:[#allocation8 + $0x10] sm:$0xff]
    %v340 = vld [vmem:[#allocation8 + $0x18] sm:$0xff]
    %v341 = vld [vmem:[#allocation8 + $0x20] sm:$0xff]
    %v342 = vld [vmem:[#allocation8 + $0x28] sm:$0xff]
    %v343 = vld [vmem:[#allocation8 + $0x30] sm:$0xff]
    %v344 = vld [vmem:[#allocation8 + $0x38] sm:$0xff]
    %v345 = vld [vmem:[#allocation8 + $0x40] sm:$0xff]
    %v346 = vld [vmem:[#allocation8 + $0x48] sm:$0xff]
    %v347 = vld [vmem:[#allocation8 + $0x50] sm:$0xff]
    %v348 = vld [vmem:[#allocation8 + $0x58] sm:$0xff]
    %v349 = vld [vmem:[#allocation8 + $0x60] sm:$0xff]
    %v350 = vld [vmem:[#allocation8 + $0x68] sm:$0xff]
    %v351 = vld [vmem:[#allocation8 + $0x70] sm:$0xff]
    %v352 = vld [vmem:[#allocation8 + $0x78] sm:$0xff]
    %v353 = vld [vmem:[#allocation8 + $0x80] sm:$0xff]
    %v354 = vld [vmem:[#allocation8 + $0x88] sm:$0xff]
    %v355 = vld [vmem:[#allocation8 + $0x90] sm:$0xff]
    %v356 = vld [vmem:[#allocation8 + $0x98] sm:$0xff]
    %v357 = vld [vmem:[#allocation8 + $0xa0] sm:$0xff]
    %v358 = vld [vmem:[#allocation8 + $0xa8] sm:$0xff]
    %v359 = vld [vmem:[#allocation8 + $0xb0] sm:$0xff]
    %v360 = vld [vmem:[#allocation8 + $0xb8] sm:$0xff]
    %v361 = vld [vmem:[#allocation8 + $0xc0] sm:$0xff]
    %v362 = vld [vmem:[#allocation8 + $0xc8] sm:$0xff]
    %v363 = vld [vmem:[#allocation8 + $0xd0] sm:$0xff]
    %v364 = vld [vmem:[#allocation8 + $0xd8] sm:$0xff]
    %v365 = vld [vmem:[#allocation8 + $0xe0] sm:$0xff]
    %v366 = vld [vmem:[#allocation8 + $0xe8] sm:$0xff]
    %v367 = vld [vmem:[#allocation8 + $0xf0] sm:$0xff]
    %v368 = vld [vmem:[#allocation8 + $0xf8] sm:$0xff]
    %v369 = vld [vmem:[#allocation8 + $0x100] sm:$0xff]
    %v370 = vld [vmem:[#allocation8 + $0x108] sm:$0xff]
    %v371 = vld [vmem:[#allocation8 + $0x110] sm:$0xff]
    %v372 = vld [vmem:[#allocation8 + $0x118] sm:$0xff]
    %v373 = vld [vmem:[#allocation8 + $0x120] sm:$0xff]
    %v374 = vld [vmem:[#allocation8 + $0x128] sm:$0xff]
    %v375 = vld [vmem:[#allocation8 + $0x130] sm:$0xff]
    %v376 = vld [vmem:[#allocation8 + $0x138] sm:$0xff]
    %v377 = vld [vmem:[#allocation8 + $0x140] sm:$0xff]
    %v378 = vld [vmem:[#allocation8 + $0x148] sm:$0xff]
    %v379 = vld [vmem:[#allocation8 + $0x150] sm:$0xff]
    %v380 = vld [vmem:[#allocation8 + $0x158] sm:$0xff]
    %v381 = vld [vmem:[#allocation8 + $0x160] sm:$0xff]
    %v382 = vld [vmem:[#allocation8 + $0x168] sm:$0xff]
    %v383 = vld [vmem:[#allocation8 + $0x170] sm:$0xff]
    %v384 = vld [vmem:[#allocation8 + $0x178] sm:$0xff]
    %v385 = vld [vmem:[#allocation8 + $0x180] sm:$0xff]
    %v386 = vld [vmem:[#allocation8 + $0x188] sm:$0xff]
    %v387 = vld [vmem:[#allocation8 + $0x190] sm:$0xff]
    %v388 = vld [vmem:[#allocation8 + $0x198] sm:$0xff]
    %v389 = vld [vmem:[#allocation8 + $0x1a0] sm:$0xff]
    %v390 = vld [vmem:[#allocation8 + $0x1a8] sm:$0xff]
    %v391 = vld [vmem:[#allocation8 + $0x1b0] sm:$0xff]
    %v392 = vld [vmem:[#allocation8 + $0x1b8] sm:$0xff]
    %v393 = vld [vmem:[#allocation8 + $0x1c0] sm:$0xff]
    %v394 = vld [vmem:[#allocation8 + $0x1c8] sm:$0xff]
    %v395 = vld [vmem:[#allocation8 + $0x1d0] sm:$0xff]
    %v396 = vld [vmem:[#allocation8 + $0x1d8] sm:$0xff]
    %v397 = vld [vmem:[#allocation8 + $0x1e0] sm:$0xff]
    %v398 = vld [vmem:[#allocation8 + $0x1e8] sm:$0xff]
    %v399 = vld [vmem:[#allocation8 + $0x1f0] sm:$0xff]
    %v400 = vld [vmem:[#allocation8 + $0x1f8] sm:$0xff]
    %v401 = vld [vmem:[#allocation8 + $0x200] sm:$0xff]
    %v402 = vld [vmem:[#allocation8 + $0x208] sm:$0xff]
    %v403 = vld [vmem:[#allocation8 + $0x210] sm:$0xff]
    %v404 = vld [vmem:[#allocation8 + $0x218] sm:$0xff]
    %v405 = vld [vmem:[#allocation8 + $0x220] sm:$0xff]
    %v406 = vld [vmem:[#allocation8 + $0x228] sm:$0xff]
    %v407 = vld [vmem:[#allocation8 + $0x230] sm:$0xff]
    %v408 = vld [vmem:[#allocation8 + $0x238] sm:$0xff]
    %v409 = vld [vmem:[#allocation8 + $0x240] sm:$0xff]
    %v410 = vld [vmem:[#allocation8 + $0x248] sm:$0xff]
    %v411 = vld [vmem:[#allocation8 + $0x250] sm:$0xff]
    %v412 = vld [vmem:[#allocation8 + $0x258] sm:$0xff]
    %v413 = vld [vmem:[#allocation8 + $0x260] sm:$0xff]
    %v414 = vld [vmem:[#allocation8 + $0x268] sm:$0xff]
    %v415 = vld [vmem:[#allocation8 + $0x270] sm:$0xff]
    %v416 = vld [vmem:[#allocation8 + $0x278] sm:$0xff]
    %v417 = vld [vmem:[#allocation8 + $0x280] sm:$0xff]
    %v418 = vld [vmem:[#allocation8 + $0x288] sm:$0xff]
    %v419 = vld [vmem:[#allocation8 + $0x290] sm:$0xff]
    %v420 = vld [vmem:[#allocation8 + $0x298] sm:$0xff]
    %v421 = vld [vmem:[#allocation8 + $0x2a0] sm:$0xff]
    %v422 = vld [vmem:[#allocation8 + $0x2a8] sm:$0xff]
    %v423 = vld [vmem:[#allocation8 + $0x2b0] sm:$0xff]
    %v424 = vld [vmem:[#allocation8 + $0x2b8] sm:$0xff]
    %v425 = vld [vmem:[#allocation8 + $0x2c0] sm:$0xff]
    %v426 = vld [vmem:[#allocation8 + $0x2c8] sm:$0xff]
    %v427 = vld [vmem:[#allocation8 + $0x2d0] sm:$0xff]
    %v428 = vld [vmem:[#allocation8 + $0x2d8] sm:$0xff]
    %v429 = vld [vmem:[#allocation8 + $0x2e0] sm:$0xff]
    %v430 = vld [vmem:[#allocation8 + $0x2e8] sm:$0xff]
    %v431 = vld [vmem:[#allocation8 + $0x2f0] sm:$0xff]
    %v432 = vld [vmem:[#allocation8 + $0x2f8] sm:$0xff]
    %v433 = vld [vmem:[#allocation8 + $0x300] sm:$0xff]
    %v434 = vld [vmem:[#allocation8 + $0x308] sm:$0xff]
    %v435 = vld [vmem:[#allocation8 + $0x310] sm:$0xff]
    %v436 = vld [vmem:[#allocation8 + $0x318] sm:$0xff]
    %v437 = vld [vmem:[#allocation8 + $0x320] sm:$0xff]
    %v438 = vld [vmem:[#allocation8 + $0x328] sm:$0xff]
    %v439 = vld [vmem:[#allocation8 + $0x330] sm:$0xff]
    %v440 = vld [vmem:[#allocation8 + $0x338] sm:$0xff]
    %v441 = vld [vmem:[#allocation8 + $0x340] sm:$0xff]
    %v442 = vld [vmem:[#allocation8 + $0x348] sm:$0xff]
    %v443 = vld [vmem:[#allocation8 + $0x350] sm:$0xff]
    %v444 = vld [vmem:[#allocation8 + $0x358] sm:$0xff]
    %v445 = vld [vmem:[#allocation8 + $0x360] sm:$0xff]
    %v446 = vld [vmem:[#allocation8 + $0x368] sm:$0xff]
    %v447 = vld [vmem:[#allocation8 + $0x370] sm:$0xff]
    %v448 = vld [vmem:[#allocation8 + $0x378] sm:$0xff]
    %v449 = vld [vmem:[#allocation8 + $0x380] sm:$0xff]
    %v450 = vld [vmem:[#allocation8 + $0x388] sm:$0xff]
    %v451 = vld [vmem:[#allocation8 + $0x390] sm:$0xff]
    %v452 = vld [vmem:[#allocation8 + $0x398] sm:$0xff]
    %v453 = vld [vmem:[#allocation8 + $0x3a0] sm:$0xff]
    %v454 = vld [vmem:[#allocation8 + $0x3a8] sm:$0xff]
    %v455 = vld [vmem:[#allocation8 + $0x3b0] sm:$0xff]
    %v456 = vld [vmem:[#allocation8 + $0x3b8] sm:$0xff]
    %v457 = vld [vmem:[#allocation8 + $0x3c0] sm:$0xff]
    %v458 = vld [vmem:[#allocation8 + $0x3c8] sm:$0xff]
    %v459 = vld [vmem:[#allocation8 + $0x3d0] sm:$0xff]
    %v460 = vld [vmem:[#allocation8 + $0x3d8] sm:$0xff]
    %v461 = vld [vmem:[#allocation8 + $0x3e0] sm:$0xff]
    %v462 = vld [vmem:[#allocation8 + $0x3e8] sm:$0xff]
    %v463 = vld [vmem:[#allocation8 + $0x3f0] sm:$0xff]
    %v464 = vld [vmem:[#allocation8 + $0x3f8] sm:$0xff]
    %v465 = vld [vmem:[#allocation8 + $0x400] sm:$0xff]
    %v466 = vld [vmem:[#allocation8 + $0x408] sm:$0xff]
    %v467 = vld [vmem:[#allocation8 + $0x410] sm:$0xff]
    %v468 = vld [vmem:[#allocation8 + $0x418] sm:$0xff]
    %v469 = vld [vmem:[#allocation8 + $0x420] sm:$0xff]
    %v470 = vld [vmem:[#allocation8 + $0x428] sm:$0xff]
    %v471 = vld [vmem:[#allocation8 + $0x430] sm:$0xff]
    %v472 = vld [vmem:[#allocation8 + $0x438] sm:$0xff]
    %v473 = vld [vmem:[#allocation8 + $0x440] sm:$0xff]
    %v474 = vld [vmem:[#allocation8 + $0x448] sm:$0xff]
    %v475 = vld [vmem:[#allocation8 + $0x450] sm:$0xff]
    %v476 = vld [vmem:[#allocation8 + $0x458] sm:$0xff]
    %v477 = vld [vmem:[#allocation8 + $0x460] sm:$0xff]
    %v478 = vld [vmem:[#allocation8 + $0x468] sm:$0xff]
    %v479 = vld [vmem:[#allocation8 + $0x470] sm:$0xff]
    %v480 = vld [vmem:[#allocation8 + $0x478] sm:$0xff]
    %v481 = vld [vmem:[#allocation8 + $0x480] sm:$0xff]
    %v482 = vld [vmem:[#allocation8 + $0x488] sm:$0xff]
    %v483 = vld [vmem:[#allocation8 + $0x490] sm:$0xff]
    %v484 = vld [vmem:[#allocation8 + $0x498] sm:$0xff]
    %v485 = vld [vmem:[#allocation8 + $0x4a0] sm:$0xff]
    %v486 = vld [vmem:[#allocation8 + $0x4a8] sm:$0xff]
    %v487 = vld [vmem:[#allocation8 + $0x4b0] sm:$0xff]
    %v488 = vld [vmem:[#allocation8 + $0x4b8] sm:$0xff]
    %v489 = vld [vmem:[#allocation8 + $0x4c0] sm:$0xff]
    %v490 = vld [vmem:[#allocation8 + $0x4c8] sm:$0xff]
    %v491 = vld [vmem:[#allocation8 + $0x4d0] sm:$0xff]
    %v492 = vld [vmem:[#allocation8 + $0x4d8] sm:$0xff]
    %v493 = vld [vmem:[#allocation8 + $0x4e0] sm:$0xff]
    %v494 = vld [vmem:[#allocation8 + $0x4e8] sm:$0xff]
    %v495 = vld [vmem:[#allocation8 + $0x4f0] sm:$0xff]
    %v496 = vld [vmem:[#allocation8 + $0x4f8] sm:$0xff]
    %v497 = vld [vmem:[#allocation8 + $0x500] sm:$0xff]
    %v498 = vld [vmem:[#allocation8 + $0x508] sm:$0xff]
    %v499 = vld [vmem:[#allocation8 + $0x510] sm:$0xff]
    %v500 = vld [vmem:[#allocation8 + $0x518] sm:$0xff]
    %v501 = vld [vmem:[#allocation8 + $0x520] sm:$0xff]
    %v502 = vld [vmem:[#allocation8 + $0x528] sm:$0xff]
    %v503 = vld [vmem:[#allocation8 + $0x530] sm:$0xff]
    %v504 = vld [vmem:[#allocation8 + $0x538] sm:$0xff]
    %v505 = vld [vmem:[#allocation8 + $0x540] sm:$0xff]
    %v506 = vld [vmem:[#allocation8 + $0x548] sm:$0xff]
    %v507 = vld [vmem:[#allocation8 + $0x550] sm:$0xff]
    %v508 = vld [vmem:[#allocation8 + $0x558] sm:$0xff]
    %v509 = vld [vmem:[#allocation8 + $0x560] sm:$0xff]
    %v510 = vld [vmem:[#allocation8 + $0x568] sm:$0xff]
    %v511 = vld [vmem:[#allocation8 + $0x570] sm:$0xff]
    %v512 = vld [vmem:[#allocation8 + $0x578] sm:$0xff]
    %v513 = vld [vmem:[#allocation8 + $0x580] sm:$0xff]
    %v514 = vld [vmem:[#allocation8 + $0x588] sm:$0xff]
    %v515 = vld [vmem:[#allocation8 + $0x590] sm:$0xff]
    %v516 = vld [vmem:[#allocation8 + $0x598] sm:$0xff]
    %v517 = vld [vmem:[#allocation8 + $0x5a0] sm:$0xff]
    %v518 = vld [vmem:[#allocation8 + $0x5a8] sm:$0xff]
    %v519 = vld [vmem:[#allocation8 + $0x5b0] sm:$0xff]
    %v520 = vld [vmem:[#allocation8 + $0x5b8] sm:$0xff]
    %v521 = vld [vmem:[#allocation8 + $0x5c0] sm:$0xff]
    %v522 = vld [vmem:[#allocation8 + $0x5c8] sm:$0xff]
    %v523 = vld [vmem:[#allocation8 + $0x5d0] sm:$0xff]
    %v524 = vld [vmem:[#allocation8 + $0x5d8] sm:$0xff]
    %v525 = vld [vmem:[#allocation8 + $0x5e0] sm:$0xff]
    %v526 = vld [vmem:[#allocation8 + $0x5e8] sm:$0xff]
    %v527 = vld [vmem:[#allocation8 + $0x5f0] sm:$0xff]
    %v528 = vld [vmem:[#allocation8 + $0x5f8] sm:$0xff]
    %v529 = vld [vmem:[#allocation8 + $0x600] sm:$0xff]
    %v530 = vld [vmem:[#allocation8 + $0x608] sm:$0xff]
    %v531 = vld [vmem:[#allocation8 + $0x610] sm:$0xff]
    %v532 = vld [vmem:[#allocation8 + $0x618] sm:$0xff]
    %v533 = vld [vmem:[#allocation8 + $0x620] sm:$0xff]
    %v534 = vld [vmem:[#allocation8 + $0x628] sm:$0xff]
    %v535 = vld [vmem:[#allocation8 + $0x630] sm:$0xff]
    %v536 = vld [vmem:[#allocation8 + $0x638] sm:$0xff]
    %v537 = vld [vmem:[#allocation8 + $0x640] sm:$0xff]
    %v538 = vld [vmem:[#allocation8 + $0x648] sm:$0xff]
    %v539 = vld [vmem:[#allocation8 + $0x650] sm:$0xff]
    %v540 = vld [vmem:[#allocation8 + $0x658] sm:$0xff]
    %v541 = vld [vmem:[#allocation8 + $0x660] sm:$0xff]
    %v542 = vld [vmem:[#allocation8 + $0x668] sm:$0xff]
    %v543 = vld [vmem:[#allocation8 + $0x670] sm:$0xff]
    %v544 = vld [vmem:[#allocation8 + $0x678] sm:$0xff]
    %v545 = vld [vmem:[#allocation8 + $0x680] sm:$0xff]
    %v546 = vld [vmem:[#allocation8 + $0x688] sm:$0xff]
    %v547 = vld [vmem:[#allocation8 + $0x690] sm:$0xff]
    %v548 = vld [vmem:[#allocation8 + $0x698] sm:$0xff]
    %v549 = vld [vmem:[#allocation8 + $0x6a0] sm:$0xff]
    %v550 = vld [vmem:[#allocation8 + $0x6a8] sm:$0xff]
    %v551 = vld [vmem:[#allocation8 + $0x6b0] sm:$0xff]
    %v552 = vld [vmem:[#allocation8 + $0x6b8] sm:$0xff]
    %v553 = vld [vmem:[#allocation8 + $0x6c0] sm:$0xff]
    %v554 = vld [vmem:[#allocation8 + $0x6c8] sm:$0xff]
    %v555 = vld [vmem:[#allocation8 + $0x6d0] sm:$0xff]
    %v556 = vld [vmem:[#allocation8 + $0x6d8] sm:$0xff]
    %v557 = vld [vmem:[#allocation8 + $0x6e0] sm:$0xff]
    %v558 = vld [vmem:[#allocation8 + $0x6e8] sm:$0xff]
    %v559 = vld [vmem:[#allocation8 + $0x6f0] sm:$0xff]
    %v560 = vld [vmem:[#allocation8 + $0x6f8] sm:$0xff]
    %v561 = vld [vmem:[#allocation8 + $0x700] sm:$0xff]
    %v562 = vld [vmem:[#allocation8 + $0x708] sm:$0xff]
    %v563 = vld [vmem:[#allocation8 + $0x710] sm:$0xff]
    %v564 = vld [vmem:[#allocation8 + $0x718] sm:$0xff]
    %v565 = vld [vmem:[#allocation8 + $0x720] sm:$0xff]
    %v566 = vld [vmem:[#allocation8 + $0x728] sm:$0xff]
    %v567 = vld [vmem:[#allocation8 + $0x730] sm:$0xff]
    %v568 = vld [vmem:[#allocation8 + $0x738] sm:$0xff]
    %v569 = vld [vmem:[#allocation8 + $0x740] sm:$0xff]
    %v570 = vld [vmem:[#allocation8 + $0x748] sm:$0xff]
    %v571 = vld [vmem:[#allocation8 + $0x750] sm:$0xff]
    %v572 = vld [vmem:[#allocation8 + $0x758] sm:$0xff]
    %v573 = vld [vmem:[#allocation8 + $0x760] sm:$0xff]
    %v574 = vld [vmem:[#allocation8 + $0x768] sm:$0xff]
    %v575 = vld [vmem:[#allocation8 + $0x770] sm:$0xff]
    %v576 = vld [vmem:[#allocation8 + $0x778] sm:$0xff]
    %v577 = vld [vmem:[#allocation8 + $0x780] sm:$0xff]
    %v578 = vld [vmem:[#allocation8 + $0x788] sm:$0xff]
    %v579 = vld [vmem:[#allocation8 + $0x790] sm:$0xff]
    %v580 = vld [vmem:[#allocation8 + $0x798] sm:$0xff]
    %v581 = vld [vmem:[#allocation8 + $0x7a0] sm:$0xff]
    %v582 = vld [vmem:[#allocation8 + $0x7a8] sm:$0xff]
    %v583 = vld [vmem:[#allocation8 + $0x7b0] sm:$0xff]
    %v584 = vld [vmem:[#allocation8 + $0x7b8] sm:$0xff]
    %v585 = vld [vmem:[#allocation8 + $0x7c0] sm:$0xff]
    %v586 = vld [vmem:[#allocation8 + $0x7c8] sm:$0xff]
    %v587 = vld [vmem:[#allocation8 + $0x7d0] sm:$0xff]
    %v588 = vld [vmem:[#allocation8 + $0x7d8] sm:$0xff]
    %v589 = vld [vmem:[#allocation8 + $0x7e0] sm:$0xff]
    %v590 = vld [vmem:[#allocation8 + $0x7e8] sm:$0xff]
    %v591 = vld [vmem:[#allocation8 + $0x7f0] sm:$0xff]
    %v592 = vld [vmem:[#allocation8 + $0x7f8] sm:$0xff]
    %v593 = vld [vmem:[#allocation8 + $0x800] sm:$0xff]
    %v594 = vld [vmem:[#allocation8 + $0x808] sm:$0xff]
    %v595 = vld [vmem:[#allocation8 + $0x810] sm:$0xff]
    %v596 = vld [vmem:[#allocation8 + $0x818] sm:$0xff]
    %v597 = vld [vmem:[#allocation8 + $0x820] sm:$0xff]
    %v598 = vld [vmem:[#allocation8 + $0x828] sm:$0xff]
    %v599 = vld [vmem:[#allocation8 + $0x830] sm:$0xff]
    %v600 = vld [vmem:[#allocation8 + $0x838] sm:$0xff]
    %v601 = vld [vmem:[#allocation8 + $0x840] sm:$0xff]
    %v602 = vld [vmem:[#allocation8 + $0x848] sm:$0xff]
    %v603 = vld [vmem:[#allocation8 + $0x850] sm:$0xff]
    %v604 = vld [vmem:[#allocation8 + $0x858] sm:$0xff]
    %v605 = vld [vmem:[#allocation8 + $0x860] sm:$0xff]
    %v606 = vld [vmem:[#allocation8 + $0x868] sm:$0xff]
    %v607 = vld [vmem:[#allocation8 + $0x870] sm:$0xff]
    %v608 = vld [vmem:[#allocation8 + $0x878] sm:$0xff]
    %v609 = vld [vmem:[#allocation8 + $0x880] sm:$0xff]
    %v610 = vld [vmem:[#allocation8 + $0x888] sm:$0xff]
    %v611 = vld [vmem:[#allocation8 + $0x890] sm:$0xff]
    %v612 = vld [vmem:[#allocation8 + $0x898] sm:$0xff]
    %v613 = vld [vmem:[#allocation8 + $0x8a0] sm:$0xff]
    %v614 = vld [vmem:[#allocation8 + $0x8a8] sm:$0xff]
    %v615 = vld [vmem:[#allocation8 + $0x8b0] sm:$0xff]
    %v616 = vld [vmem:[#allocation8 + $0x8b8] sm:$0xff]
    %v617 = vld [vmem:[#allocation8 + $0x8c0] sm:$0xff]
    %v618 = vld [vmem:[#allocation8 + $0x8c8] sm:$0xff]
    %v619 = vld [vmem:[#allocation8 + $0x8d0] sm:$0xff]
    %v620 = vld [vmem:[#allocation8 + $0x8d8] sm:$0xff]
    %v621 = vld [vmem:[#allocation8 + $0x8e0] sm:$0xff]
    %v622 = vld [vmem:[#allocation8 + $0x8e8] sm:$0xff]
    %v623 = vld [vmem:[#allocation8 + $0x8f0] sm:$0xff]
    %v624 = vld [vmem:[#allocation8 + $0x8f8] sm:$0xff]
    %v625 = vld [vmem:[#allocation8 + $0x900] sm:$0xff]
    %v626 = vld [vmem:[#allocation8 + $0x908] sm:$0xff]
    %v627 = vld [vmem:[#allocation8 + $0x910] sm:$0xff]
    %v628 = vld [vmem:[#allocation8 + $0x918] sm:$0xff]
    %v629 = vld [vmem:[#allocation8 + $0x920] sm:$0xff]
    %v630 = vld [vmem:[#allocation8 + $0x928] sm:$0xff]
    %v631 = vld [vmem:[#allocation8 + $0x930] sm:$0xff]
    %v632 = vld [vmem:[#allocation8 + $0x938] sm:$0xff]
    %v633 = vld [vmem:[#allocation8 + $0x940] sm:$0xff]
    %v634 = vld [vmem:[#allocation8 + $0x948] sm:$0xff]
    %v635 = vld [vmem:[#allocation8 + $0x950] sm:$0xff]
    %v636 = vld [vmem:[#allocation8 + $0x958] sm:$0xff]
    %v637 = vld [vmem:[#allocation8 + $0x960] sm:$0xff]
    %v638 = vld [vmem:[#allocation8 + $0x968] sm:$0xff]
    %v639 = vld [vmem:[#allocation8 + $0x970] sm:$0xff]
    %v640 = vld [vmem:[#allocation8 + $0x978] sm:$0xff]
    %v641 = vld [vmem:[#allocation8 + $0x980] sm:$0xff]
    %v642 = vld [vmem:[#allocation8 + $0x988] sm:$0xff]
    %v643 = vld [vmem:[#allocation8 + $0x990] sm:$0xff]
    %v644 = vld [vmem:[#allocation8 + $0x998] sm:$0xff]
    %v645 = vld [vmem:[#allocation8 + $0x9a0] sm:$0xff]
    %v646 = vld [vmem:[#allocation8 + $0x9a8] sm:$0xff]
    %v647 = vld [vmem:[#allocation8 + $0x9b0] sm:$0xff]
    %v648 = vld [vmem:[#allocation8 + $0x9b8] sm:$0xff]
    %v649 = vld [vmem:[#allocation8 + $0x9c0] sm:$0xff]
    %v650 = vld [vmem:[#allocation8 + $0x9c8] sm:$0xff]
    %v651 = vld [vmem:[#allocation8 + $0x9d0] sm:$0xff]
    %v652 = vld [vmem:[#allocation8 + $0x9d8] sm:$0xff]
    %v653 = vld [vmem:[#allocation8 + $0x9e0] sm:$0xff]
    %v654 = vld [vmem:[#allocation8 + $0x9e8] sm:$0xff]
    %v655 = vld [vmem:[#allocation8 + $0x9f0] sm:$0xff]
    %v656 = vld [vmem:[#allocation8 + $0x9f8] sm:$0xff]
    %v657 = vld [vmem:[#allocation8 + $0xa00] sm:$0xff]
    %v658 = vld [vmem:[#allocation8 + $0xa08] sm:$0xff]
    %v659 = vld [vmem:[#allocation8 + $0xa10] sm:$0xff]
    %v660 = vld [vmem:[#allocation8 + $0xa18] sm:$0xff]
    %v661 = vld [vmem:[#allocation8 + $0xa20] sm:$0xff]
    %v662 = vld [vmem:[#allocation8 + $0xa28] sm:$0xff]
    %v663 = vld [vmem:[#allocation8 + $0xa30] sm:$0xff]
    %v664 = vld [vmem:[#allocation8 + $0xa38] sm:$0xff]
    %v665 = vld [vmem:[#allocation8 + $0xa40] sm:$0xff]
    %v666 = vld [vmem:[#allocation8 + $0xa48] sm:$0xff]
    %v667 = vld [vmem:[#allocation8 + $0xa50] sm:$0xff]
    %v668 = vld [vmem:[#allocation8 + $0xa58] sm:$0xff]
    %v669 = vld [vmem:[#allocation8 + $0xa60] sm:$0xff]
    %v670 = vld [vmem:[#allocation8 + $0xa68] sm:$0xff]
    %v671 = vld [vmem:[#allocation8 + $0xa70] sm:$0xff]
    %v672 = vld [vmem:[#allocation8 + $0xa78] sm:$0xff]
    %v673 = vld [vmem:[#allocation8 + $0xa80] sm:$0xff]
    %v674 = vld [vmem:[#allocation8 + $0xa88] sm:$0xff]
    %v675 = vld [vmem:[#allocation8 + $0xa90] sm:$0xff]
    %v676 = vld [vmem:[#allocation8 + $0xa98] sm:$0xff]
    %v677 = vld [vmem:[#allocation8 + $0xaa0] sm:$0xff]
    %v678 = vld [vmem:[#allocation8 + $0xaa8] sm:$0xff]
    %v679 = vld [vmem:[#allocation8 + $0xab0] sm:$0xff]
    %v680 = vld [vmem:[#allocation8 + $0xab8] sm:$0xff]
    %v681 = vld [vmem:[#allocation8 + $0xac0] sm:$0xff]
    %v682 = vld [vmem:[#allocation8 + $0xac8] sm:$0xff]
    %v683 = vld [vmem:[#allocation8 + $0xad0] sm:$0xff]
    %v684 = vld [vmem:[#allocation8 + $0xad8] sm:$0xff]
    %v685 = vld [vmem:[#allocation8 + $0xae0] sm:$0xff]
    %v686 = vld [vmem:[#allocation8 + $0xae8] sm:$0xff]
    %v687 = vld [vmem:[#allocation8 + $0xaf0] sm:$0xff]
    %v688 = vld [vmem:[#allocation8 + $0xaf8] sm:$0xff]
    %v689 = vld [vmem:[#allocation8 + $0xb00] sm:$0xff]
    %v690 = vld [vmem:[#allocation8 + $0xb08] sm:$0xff]
    %v691 = vld [vmem:[#allocation8 + $0xb10] sm:$0xff]
    %v692 = vld [vmem:[#allocation8 + $0xb18] sm:$0xff]
    %v693 = vld [vmem:[#allocation8 + $0xb20] sm:$0xff]
    %v694 = vld [vmem:[#allocation8 + $0xb28] sm:$0xff]
    %v695 = vld [vmem:[#allocation8 + $0xb30] sm:$0xff]
    %v696 = vld [vmem:[#allocation8 + $0xb38] sm:$0xff]
    %v697 = vld [vmem:[#allocation8 + $0xb40] sm:$0xff]
    %v698 = vld [vmem:[#allocation8 + $0xb48] sm:$0xff]
    %v699 = vld [vmem:[#allocation8 + $0xb50] sm:$0xff]
    %v700 = vld [vmem:[#allocation8 + $0xb58] sm:$0xff]
    %v701 = vld [vmem:[#allocation8 + $0xb60] sm:$0xff]
    %v702 = vld [vmem:[#allocation8 + $0xb68] sm:$0xff]
    %v703 = vld [vmem:[#allocation8 + $0xb70] sm:$0xff]
    %v704 = vld [vmem:[#allocation8 + $0xb78] sm:$0xff]
    %v705 = vld [vmem:[#allocation8 + $0xb80] sm:$0xff]
    %v706 = vld [vmem:[#allocation8 + $0xb88] sm:$0xff]
    %v707 = vld [vmem:[#allocation8 + $0xb90] sm:$0xff]
    %v708 = vld [vmem:[#allocation8 + $0xb98] sm:$0xff]
    %v709 = vld [vmem:[#allocation8 + $0xba0] sm:$0xff]
    %v710 = vld [vmem:[#allocation8 + $0xba8] sm:$0xff]
    %v711 = vld [vmem:[#allocation8 + $0xbb0] sm:$0xff]
    %v712 = vld [vmem:[#allocation8 + $0xbb8] sm:$0xff]
    %v713 = vld [vmem:[#allocation8 + $0xbc0] sm:$0xff]
    %v714 = vld [vmem:[#allocation8 + $0xbc8] sm:$0xff]
    %v715 = vld [vmem:[#allocation8 + $0xbd0] sm:$0xff]
    %v716 = vld [vmem:[#allocation8 + $0xbd8] sm:$0xff]
    %v717 = vld [vmem:[#allocation8 + $0xbe0] sm:$0xff]
    %v718 = vld [vmem:[#allocation8 + $0xbe8] sm:$0xff]
    %v719 = vld [vmem:[#allocation8 + $0xbf0] sm:$0xff]
    %v720 = vld [vmem:[#allocation8 + $0xbf8] sm:$0xff]
    %v721 = vld [vmem:[#allocation8 + $0xc00] sm:$0xff]
    %v722 = vld [vmem:[#allocation8 + $0xc08] sm:$0xff]
    %v723 = vld [vmem:[#allocation8 + $0xc10] sm:$0xff]
    %v724 = vld [vmem:[#allocation8 + $0xc18] sm:$0xff]
    %v725 = vld [vmem:[#allocation8 + $0xc20] sm:$0xff]
    %v726 = vld [vmem:[#allocation8 + $0xc28] sm:$0xff]
    %v727 = vld [vmem:[#allocation8 + $0xc30] sm:$0xff]
    %v728 = vld [vmem:[#allocation8 + $0xc38] sm:$0xff]
    %v729 = vld [vmem:[#allocation8 + $0xc40] sm:$0xff]
    %v730 = vld [vmem:[#allocation8 + $0xc48] sm:$0xff]
    %v731 = vld [vmem:[#allocation8 + $0xc50] sm:$0xff]
    %v732 = vld [vmem:[#allocation8 + $0xc58] sm:$0xff]
    %v733 = vld [vmem:[#allocation8 + $0xc60] sm:$0xff]
    %v734 = vld [vmem:[#allocation8 + $0xc68] sm:$0xff]
    %v735 = vld [vmem:[#allocation8 + $0xc70] sm:$0xff]
    %v736 = vld [vmem:[#allocation8 + $0xc78] sm:$0xff]
    %v737 = vld [vmem:[#allocation8 + $0xc80] sm:$0xff]
    %v738 = vld [vmem:[#allocation8 + $0xc88] sm:$0xff]
    %v739 = vld [vmem:[#allocation8 + $0xc90] sm:$0xff]
    %v740 = vld [vmem:[#allocation8 + $0xc98] sm:$0xff]
    %v741 = vld [vmem:[#allocation8 + $0xca0] sm:$0xff]
    %v742 = vld [vmem:[#allocation8 + $0xca8] sm:$0xff]
    %v743 = vld [vmem:[#allocation8 + $0xcb0] sm:$0xff]
    %v744 = vld [vmem:[#allocation8 + $0xcb8] sm:$0xff]
    %v745 = vld [vmem:[#allocation8 + $0xcc0] sm:$0xff]
    %v746 = vld [vmem:[#allocation8 + $0xcc8] sm:$0xff]
    %v747 = vld [vmem:[#allocation8 + $0xcd0] sm:$0xff]
    %v748 = vld [vmem:[#allocation8 + $0xcd8] sm:$0xff]
    %v749 = vld [vmem:[#allocation8 + $0xce0] sm:$0xff]
    %v750 = vld [vmem:[#allocation8 + $0xce8] sm:$0xff]
    %v751 = vld [vmem:[#allocation8 + $0xcf0] sm:$0xff]
    %v752 = vld [vmem:[#allocation8 + $0xcf8] sm:$0xff]
    %v753 = vld [vmem:[#allocation8 + $0xd00] sm:$0xff]
    %v754 = vld [vmem:[#allocation8 + $0xd08] sm:$0xff]
    %v755 = vld [vmem:[#allocation8 + $0xd10] sm:$0xff]
    %v756 = vld [vmem:[#allocation8 + $0xd18] sm:$0xff]
    %v757 = vld [vmem:[#allocation8 + $0xd20] sm:$0xff]
    %v758 = vld [vmem:[#allocation8 + $0xd28] sm:$0xff]
    %v759 = vld [vmem:[#allocation8 + $0xd30] sm:$0xff]
    %v760 = vld [vmem:[#allocation8 + $0xd38] sm:$0xff]
    %v761 = vld [vmem:[#allocation8 + $0xd40] sm:$0xff]
    %v762 = vld [vmem:[#allocation8 + $0xd48] sm:$0xff]
    %v763 = vld [vmem:[#allocation8 + $0xd50] sm:$0xff]
    %v764 = vld [vmem:[#allocation8 + $0xd58] sm:$0xff]
    %v765 = vld [vmem:[#allocation8 + $0xd60] sm:$0xff]
    %v766 = vld [vmem:[#allocation8 + $0xd68] sm:$0xff]
    %v767 = vld [vmem:[#allocation8 + $0xd70] sm:$0xff]
    %v768 = vld [vmem:[#allocation8 + $0xd78] sm:$0xff]
    %v769 = vld [vmem:[#allocation8 + $0xd80] sm:$0xff]
    %v770 = vld [vmem:[#allocation8 + $0xd88] sm:$0xff]
    %v771 = vld [vmem:[#allocation8 + $0xd90] sm:$0xff]
    %v772 = vld [vmem:[#allocation8 + $0xd98] sm:$0xff]
    %v773 = vld [vmem:[#allocation8 + $0xda0] sm:$0xff]
    %v774 = vld [vmem:[#allocation8 + $0xda8] sm:$0xff]
    %v775 = vld [vmem:[#allocation8 + $0xdb0] sm:$0xff]
    %v776 = vld [vmem:[#allocation8 + $0xdb8] sm:$0xff]
    %v777 = vld [vmem:[#allocation8 + $0xdc0] sm:$0xff]
    %v778 = vld [vmem:[#allocation8 + $0xdc8] sm:$0xff]
    %v779 = vld [vmem:[#allocation8 + $0xdd0] sm:$0xff]
    %v780 = vld [vmem:[#allocation8 + $0xdd8] sm:$0xff]
    %v781 = vld [vmem:[#allocation8 + $0xde0] sm:$0xff]
    %v782 = vld [vmem:[#allocation8 + $0xde8] sm:$0xff]
    %v783 = vld [vmem:[#allocation8 + $0xdf0] sm:$0xff]
    %v784 = vld [vmem:[#allocation8 + $0xdf8] sm:$0xff]
    %v785 = vld [vmem:[#allocation8 + $0xe00] sm:$0xff]
    %v786 = vld [vmem:[#allocation8 + $0xe08] sm:$0xff]
    %v787 = vld [vmem:[#allocation8 + $0xe10] sm:$0xff]
    %v788 = vld [vmem:[#allocation8 + $0xe18] sm:$0xff]
    %v789 = vld [vmem:[#allocation8 + $0xe20] sm:$0xff]
    %v790 = vld [vmem:[#allocation8 + $0xe28] sm:$0xff]
    %v791 = vld [vmem:[#allocation8 + $0xe30] sm:$0xff]
    %v792 = vld [vmem:[#allocation8 + $0xe38] sm:$0xff]
    %v793 = vld [vmem:[#allocation8 + $0xe40] sm:$0xff]
    %v794 = vld [vmem:[#allocation8 + $0xe48] sm:$0xff]
    %v795 = vld [vmem:[#allocation8 + $0xe50] sm:$0xff]
    %v796 = vld [vmem:[#allocation8 + $0xe58] sm:$0xff]
    %v797 = vld [vmem:[#allocation8 + $0xe60] sm:$0xff]
    %v798 = vld [vmem:[#allocation8 + $0xe68] sm:$0xff]
    %v799 = vld [vmem:[#allocation8 + $0xe70] sm:$0xff]
    %v800 = vld [vmem:[#allocation8 + $0xe78] sm:$0xff]
    %v801 = vld [vmem:[#allocation8 + $0xe80] sm:$0xff]
    %v802 = vld [vmem:[#allocation8 + $0xe88] sm:$0xff]
    %v803 = vld [vmem:[#allocation8 + $0xe90] sm:$0xff]
    %v804 = vld [vmem:[#allocation8 + $0xe98] sm:$0xff]
    %v805 = vld [vmem:[#allocation8 + $0xea0] sm:$0xff]
    %v806 = vld [vmem:[#allocation8 + $0xea8] sm:$0xff]
    %v807 = vld [vmem:[#allocation8 + $0xeb0] sm:$0xff]
    %v808 = vld [vmem:[#allocation8 + $0xeb8] sm:$0xff]
    %v809 = vld [vmem:[#allocation8 + $0xec0] sm:$0xff]
    %v810 = vld [vmem:[#allocation8 + $0xec8] sm:$0xff]
    %v811 = vld [vmem:[#allocation8 + $0xed0] sm:$0xff]
    %v812 = vld [vmem:[#allocation8 + $0xed8] sm:$0xff]
    %v813 = vld [vmem:[#allocation8 + $0xee0] sm:$0xff]
    %v814 = vld [vmem:[#allocation8 + $0xee8] sm:$0xff]
    %v815 = vld [vmem:[#allocation8 + $0xef0] sm:$0xff]
    %v816 = vld [vmem:[#allocation8 + $0xef8] sm:$0xff]
    %v817 = vld [vmem:[#allocation8 + $0xf00] sm:$0xff]
    %v818 = vld [vmem:[#allocation8 + $0xf08] sm:$0xff]
    %v819 = vld [vmem:[#allocation8 + $0xf10] sm:$0xff]
    %v820 = vld [vmem:[#allocation8 + $0xf18] sm:$0xff]
    %v821 = vld [vmem:[#allocation8 + $0xf20] sm:$0xff]
    %v822 = vld [vmem:[#allocation8 + $0xf28] sm:$0xff]
    %v823 = vld [vmem:[#allocation8 + $0xf30] sm:$0xff]
    %v824 = vld [vmem:[#allocation8 + $0xf38] sm:$0xff]
    %v825 = vld [vmem:[#allocation8 + $0xf40] sm:$0xff]
    %v826 = vld [vmem:[#allocation8 + $0xf48] sm:$0xff]
    %v827 = vld [vmem:[#allocation8 + $0xf50] sm:$0xff]
    %v828 = vld [vmem:[#allocation8 + $0xf58] sm:$0xff]
    %v829 = vld [vmem:[#allocation8 + $0xf60] sm:$0xff]
    %v830 = vld [vmem:[#allocation8 + $0xf68] sm:$0xff]
    %v831 = vld [vmem:[#allocation8 + $0xf70] sm:$0xff]
    %v832 = vld [vmem:[#allocation8 + $0xf78] sm:$0xff]
    %v833 = vld [vmem:[#allocation8 + $0xf80] sm:$0xff]
    %v834 = vld [vmem:[#allocation8 + $0xf88] sm:$0xff]
    %v835 = vld [vmem:[#allocation8 + $0xf90] sm:$0xff]
    %v836 = vld [vmem:[#allocation8 + $0xf98] sm:$0xff]
    %v837 = vld [vmem:[#allocation8 + $0xfa0] sm:$0xff]
    %v838 = vld [vmem:[#allocation8 + $0xfa8] sm:$0xff]
    %v839 = vld [vmem:[#allocation8 + $0xfb0] sm:$0xff]
    %v840 = vld [vmem:[#allocation8 + $0xfb8] sm:$0xff]
    %v841 = vld [vmem:[#allocation8 + $0xfc0] sm:$0xff]
    %v842 = vld [vmem:[#allocation8 + $0xfc8] sm:$0xff]
    %v843 = vld [vmem:[#allocation8 + $0xfd0] sm:$0xff]
    %v844 = vld [vmem:[#allocation8 + $0xfd8] sm:$0xff]
    %v845 = vld [vmem:[#allocation8 + $0xfe0] sm:$0xff]
    %v846 = vld [vmem:[#allocation8 + $0xfe8] sm:$0xff]
    %v847 = vld [vmem:[#allocation8 + $0xff0] sm:$0xff]
    %v848 = vld [vmem:[#allocation8 + $0xff8] sm:$0xff]
    %v849 = vld [vmem:[#allocation10] sm:$0xff]
    %v850 = vld [vmem:[#allocation10 + $0x8] sm:$0xff]
    %v853 = vlaneseq
    %v854 = vshrl.u32 %v853, 7
    %v855 = vsub.s32 0, %v854
    %v856 = vrot.slane %v849, %v855
    %v857 = vlaneseq
    %v858 = vshrl.u32 %v857, 7
    %v859 = vsub.s32 1, %v858
    %v860 = vrot.slane %v849, %v859
    %v861 = vlaneseq
    %v862 = vshrl.u32 %v861, 7
    %v863 = vsub.s32 2, %v862
    %v864 = vrot.slane %v849, %v863
    %v865 = vlaneseq
    %v866 = vshrl.u32 %v865, 7
    %v867 = vsub.s32 3, %v866
    %v868 = vrot.slane %v849, %v867
    %v869 = vlaneseq
    %v870 = vshrl.u32 %v869, 7
    %v871 = vsub.s32 4, %v870
    %v872 = vrot.slane %v849, %v871
    %v873 = vlaneseq
    %v874 = vshrl.u32 %v873, 7
    %v875 = vsub.s32 5, %v874
    %v876 = vrot.slane %v849, %v875
    %v877 = vlaneseq
    %v878 = vshrl.u32 %v877, 7
    %v879 = vsub.s32 6, %v878
    %v880 = vrot.slane %v849, %v879
    %v881 = vlaneseq
    %v882 = vshrl.u32 %v881, 7
    %v883 = vsub.s32 7, %v882
    %v884 = vrot.slane %v849, %v883
    %v885 = vlaneseq
    %v886 = vshrl.u32 %v885, 7
    %v887 = vsub.s32 0, %v886
    %v888 = vrot.slane %v850, %v887
    %v889 = vlaneseq
    %v890 = vshrl.u32 %v889, 7
    %v891 = vsub.s32 1, %v890
    %v892 = vrot.slane %v850, %v891
    %v893 = vlaneseq
    %v894 = vshrl.u32 %v893, 7
    %v895 = vsub.s32 2, %v894
    %v896 = vrot.slane %v850, %v895
    %v897 = vlaneseq
    %v898 = vshrl.u32 %v897, 7
    %v899 = vsub.s32 3, %v898
    %v900 = vrot.slane %v850, %v899
    %v901 = vlaneseq
    %v902 = vshrl.u32 %v901, 7
    %v903 = vsub.s32 4, %v902
    %v904 = vrot.slane %v850, %v903
    %v905 = vlaneseq
    %v906 = vshrl.u32 %v905, 7
    %v907 = vsub.s32 5, %v906
    %v908 = vrot.slane %v850, %v907
    %v909 = vlaneseq
    %v910 = vshrl.u32 %v909, 7
    %v911 = vsub.s32 6, %v910
    %v912 = vrot.slane %v850, %v911
    %v913 = vlaneseq
    %v914 = vshrl.u32 %v913, 7
    %v915 = vsub.s32 7, %v914
    %v916 = vrot.slane %v850, %v915
    %v1445 = vunpack.c.l.b16 %v337
    %v1446 = vunpack.c.h.b16 %v337
    %v1447 = vunpack.c.l.b16 %v338
    %v1448 = vunpack.c.h.b16 %v338
    %v1449 = vunpack.c.l.b16 %v339
    %v1450 = vunpack.c.h.b16 %v339
    %v1451 = vunpack.c.l.b16 %v340
    %v1452 = vunpack.c.h.b16 %v340
    %v1453 = vunpack.c.l.b16 %v341
    %v1454 = vunpack.c.h.b16 %v341
    %v1455 = vunpack.c.l.b16 %v342
    %v1456 = vunpack.c.h.b16 %v342
    %v1457 = vunpack.c.l.b16 %v343
    %v1458 = vunpack.c.h.b16 %v343
    %v1459 = vunpack.c.l.b16 %v344
    %v1460 = vunpack.c.h.b16 %v344
    %v1461 = vunpack.c.l.b16 %v345
    %v1462 = vunpack.c.h.b16 %v345
    %v1463 = vunpack.c.l.b16 %v346
    %v1464 = vunpack.c.h.b16 %v346
    %v1465 = vunpack.c.l.b16 %v347
    %v1466 = vunpack.c.h.b16 %v347
    %v1467 = vunpack.c.l.b16 %v348
    %v1468 = vunpack.c.h.b16 %v348
    %v1469 = vunpack.c.l.b16 %v349
    %v1470 = vunpack.c.h.b16 %v349
    %v1471 = vunpack.c.l.b16 %v350
    %v1472 = vunpack.c.h.b16 %v350
    %v1473 = vunpack.c.l.b16 %v351
    %v1474 = vunpack.c.h.b16 %v351
    %v1475 = vunpack.c.l.b16 %v352
    %v1476 = vunpack.c.h.b16 %v352
    %v1477 = vunpack.c.l.b16 %v353
    %v1478 = vunpack.c.h.b16 %v353
    %v1479 = vunpack.c.l.b16 %v354
    %v1480 = vunpack.c.h.b16 %v354
    %v1481 = vunpack.c.l.b16 %v355
    %v1482 = vunpack.c.h.b16 %v355
    %v1483 = vunpack.c.l.b16 %v356
    %v1484 = vunpack.c.h.b16 %v356
    %v1485 = vunpack.c.l.b16 %v357
    %v1486 = vunpack.c.h.b16 %v357
    %v1487 = vunpack.c.l.b16 %v358
    %v1488 = vunpack.c.h.b16 %v358
    %v1489 = vunpack.c.l.b16 %v359
    %v1490 = vunpack.c.h.b16 %v359
    %v1491 = vunpack.c.l.b16 %v360
    %v1492 = vunpack.c.h.b16 %v360
    %v1493 = vunpack.c.l.b16 %v361
    %v1494 = vunpack.c.h.b16 %v361
    %v1495 = vunpack.c.l.b16 %v362
    %v1496 = vunpack.c.h.b16 %v362
    %v1497 = vunpack.c.l.b16 %v363
    %v1498 = vunpack.c.h.b16 %v363
    %v1499 = vunpack.c.l.b16 %v364
    %v1500 = vunpack.c.h.b16 %v364
    %v1501 = vunpack.c.l.b16 %v365
    %v1502 = vunpack.c.h.b16 %v365
    %v1503 = vunpack.c.l.b16 %v366
    %v1504 = vunpack.c.h.b16 %v366
    %v1505 = vunpack.c.l.b16 %v367
    %v1506 = vunpack.c.h.b16 %v367
    %v1507 = vunpack.c.l.b16 %v368
    %v1508 = vunpack.c.h.b16 %v368
    %v1509 = vunpack.c.l.b16 %v369
    %v1510 = vunpack.c.h.b16 %v369
    %v1511 = vunpack.c.l.b16 %v370
    %v1512 = vunpack.c.h.b16 %v370
    %v1513 = vunpack.c.l.b16 %v371
    %v1514 = vunpack.c.h.b16 %v371
    %v1515 = vunpack.c.l.b16 %v372
    %v1516 = vunpack.c.h.b16 %v372
    %v1517 = vunpack.c.l.b16 %v373
    %v1518 = vunpack.c.h.b16 %v373
    %v1519 = vunpack.c.l.b16 %v374
    %v1520 = vunpack.c.h.b16 %v374
    %v1521 = vunpack.c.l.b16 %v375
    %v1522 = vunpack.c.h.b16 %v375
    %v1523 = vunpack.c.l.b16 %v376
    %v1524 = vunpack.c.h.b16 %v376
    %v1525 = vunpack.c.l.b16 %v377
    %v1526 = vunpack.c.h.b16 %v377
    %v1527 = vunpack.c.l.b16 %v378
    %v1528 = vunpack.c.h.b16 %v378
    %v1529 = vunpack.c.l.b16 %v379
    %v1530 = vunpack.c.h.b16 %v379
    %v1531 = vunpack.c.l.b16 %v380
    %v1532 = vunpack.c.h.b16 %v380
    %v1533 = vunpack.c.l.b16 %v381
    %v1534 = vunpack.c.h.b16 %v381
    %v1535 = vunpack.c.l.b16 %v382
    %v1536 = vunpack.c.h.b16 %v382
    %v1537 = vunpack.c.l.b16 %v383
    %v1538 = vunpack.c.h.b16 %v383
    %v1539 = vunpack.c.l.b16 %v384
    %v1540 = vunpack.c.h.b16 %v384
    %v1541 = vunpack.c.l.b16 %v385
    %v1542 = vunpack.c.h.b16 %v385
    %v1543 = vunpack.c.l.b16 %v386
    %v1544 = vunpack.c.h.b16 %v386
    %v1545 = vunpack.c.l.b16 %v387
    %v1546 = vunpack.c.h.b16 %v387
    %v1547 = vunpack.c.l.b16 %v388
    %v1548 = vunpack.c.h.b16 %v388
    %v1549 = vunpack.c.l.b16 %v389
    %v1550 = vunpack.c.h.b16 %v389
    %v1551 = vunpack.c.l.b16 %v390
    %v1552 = vunpack.c.h.b16 %v390
    %v1553 = vunpack.c.l.b16 %v391
    %v1554 = vunpack.c.h.b16 %v391
    %v1555 = vunpack.c.l.b16 %v392
    %v1556 = vunpack.c.h.b16 %v392
    %v1557 = vunpack.c.l.b16 %v393
    %v1558 = vunpack.c.h.b16 %v393
    %v1559 = vunpack.c.l.b16 %v394
    %v1560 = vunpack.c.h.b16 %v394
    %v1561 = vunpack.c.l.b16 %v395
    %v1562 = vunpack.c.h.b16 %v395
    %v1563 = vunpack.c.l.b16 %v396
    %v1564 = vunpack.c.h.b16 %v396
    %v1565 = vunpack.c.l.b16 %v397
    %v1566 = vunpack.c.h.b16 %v397
    %v1567 = vunpack.c.l.b16 %v398
    %v1568 = vunpack.c.h.b16 %v398
    %v1569 = vunpack.c.l.b16 %v399
    %v1570 = vunpack.c.h.b16 %v399
    %v1571 = vunpack.c.l.b16 %v400
    %v1572 = vunpack.c.h.b16 %v400
    %v1573 = vunpack.c.l.b16 %v401
    %v1574 = vunpack.c.h.b16 %v401
    %v1575 = vunpack.c.l.b16 %v402
    %v1576 = vunpack.c.h.b16 %v402
    %v1577 = vunpack.c.l.b16 %v403
    %v1578 = vunpack.c.h.b16 %v403
    %v1579 = vunpack.c.l.b16 %v404
    %v1580 = vunpack.c.h.b16 %v404
    %v1581 = vunpack.c.l.b16 %v405
    %v1582 = vunpack.c.h.b16 %v405
    %v1583 = vunpack.c.l.b16 %v406
    %v1584 = vunpack.c.h.b16 %v406
    %v1585 = vunpack.c.l.b16 %v407
    %v1586 = vunpack.c.h.b16 %v407
    %v1587 = vunpack.c.l.b16 %v408
    %v1588 = vunpack.c.h.b16 %v408
    %v1589 = vunpack.c.l.b16 %v409
    %v1590 = vunpack.c.h.b16 %v409
    %v1591 = vunpack.c.l.b16 %v410
    %v1592 = vunpack.c.h.b16 %v410
    %v1593 = vunpack.c.l.b16 %v411
    %v1594 = vunpack.c.h.b16 %v411
    %v1595 = vunpack.c.l.b16 %v412
    %v1596 = vunpack.c.h.b16 %v412
    %v1597 = vunpack.c.l.b16 %v413
    %v1598 = vunpack.c.h.b16 %v413
    %v1599 = vunpack.c.l.b16 %v414
    %v1600 = vunpack.c.h.b16 %v414
    %v1601 = vunpack.c.l.b16 %v415
    %v1602 = vunpack.c.h.b16 %v415
    %v1603 = vunpack.c.l.b16 %v416
    %v1604 = vunpack.c.h.b16 %v416
    %v1605 = vunpack.c.l.b16 %v417
    %v1606 = vunpack.c.h.b16 %v417
    %v1607 = vunpack.c.l.b16 %v418
    %v1608 = vunpack.c.h.b16 %v418
    %v1609 = vunpack.c.l.b16 %v419
    %v1610 = vunpack.c.h.b16 %v419
    %v1611 = vunpack.c.l.b16 %v420
    %v1612 = vunpack.c.h.b16 %v420
    %v1613 = vunpack.c.l.b16 %v421
    %v1614 = vunpack.c.h.b16 %v421
    %v1615 = vunpack.c.l.b16 %v422
    %v1616 = vunpack.c.h.b16 %v422
    %v1617 = vunpack.c.l.b16 %v423
    %v1618 = vunpack.c.h.b16 %v423
    %v1619 = vunpack.c.l.b16 %v424
    %v1620 = vunpack.c.h.b16 %v424
    %v1621 = vunpack.c.l.b16 %v425
    %v1622 = vunpack.c.h.b16 %v425
    %v1623 = vunpack.c.l.b16 %v426
    %v1624 = vunpack.c.h.b16 %v426
    %v1625 = vunpack.c.l.b16 %v427
    %v1626 = vunpack.c.h.b16 %v427
    %v1627 = vunpack.c.l.b16 %v428
    %v1628 = vunpack.c.h.b16 %v428
    %v1629 = vunpack.c.l.b16 %v429
    %v1630 = vunpack.c.h.b16 %v429
    %v1631 = vunpack.c.l.b16 %v430
    %v1632 = vunpack.c.h.b16 %v430
    %v1633 = vunpack.c.l.b16 %v431
    %v1634 = vunpack.c.h.b16 %v431
    %v1635 = vunpack.c.l.b16 %v432
    %v1636 = vunpack.c.h.b16 %v432
    %v1637 = vunpack.c.l.b16 %v433
    %v1638 = vunpack.c.h.b16 %v433
    %v1639 = vunpack.c.l.b16 %v434
    %v1640 = vunpack.c.h.b16 %v434
    %v1641 = vunpack.c.l.b16 %v435
    %v1642 = vunpack.c.h.b16 %v435
    %v1643 = vunpack.c.l.b16 %v436
    %v1644 = vunpack.c.h.b16 %v436
    %v1645 = vunpack.c.l.b16 %v437
    %v1646 = vunpack.c.h.b16 %v437
    %v1647 = vunpack.c.l.b16 %v438
    %v1648 = vunpack.c.h.b16 %v438
    %v1649 = vunpack.c.l.b16 %v439
    %v1650 = vunpack.c.h.b16 %v439
    %v1651 = vunpack.c.l.b16 %v440
    %v1652 = vunpack.c.h.b16 %v440
    %v1653 = vunpack.c.l.b16 %v441
    %v1654 = vunpack.c.h.b16 %v441
    %v1655 = vunpack.c.l.b16 %v442
    %v1656 = vunpack.c.h.b16 %v442
    %v1657 = vunpack.c.l.b16 %v443
    %v1658 = vunpack.c.h.b16 %v443
    %v1659 = vunpack.c.l.b16 %v444
    %v1660 = vunpack.c.h.b16 %v444
    %v1661 = vunpack.c.l.b16 %v445
    %v1662 = vunpack.c.h.b16 %v445
    %v1663 = vunpack.c.l.b16 %v446
    %v1664 = vunpack.c.h.b16 %v446
    %v1665 = vunpack.c.l.b16 %v447
    %v1666 = vunpack.c.h.b16 %v447
    %v1667 = vunpack.c.l.b16 %v448
    %v1668 = vunpack.c.h.b16 %v448
    %v1669 = vunpack.c.l.b16 %v449
    %v1670 = vunpack.c.h.b16 %v449
    %v1671 = vunpack.c.l.b16 %v450
    %v1672 = vunpack.c.h.b16 %v450
    %v1673 = vunpack.c.l.b16 %v451
    %v1674 = vunpack.c.h.b16 %v451
    %v1675 = vunpack.c.l.b16 %v452
    %v1676 = vunpack.c.h.b16 %v452
    %v1677 = vunpack.c.l.b16 %v453
    %v1678 = vunpack.c.h.b16 %v453
    %v1679 = vunpack.c.l.b16 %v454
    %v1680 = vunpack.c.h.b16 %v454
    %v1681 = vunpack.c.l.b16 %v455
    %v1682 = vunpack.c.h.b16 %v455
    %v1683 = vunpack.c.l.b16 %v456
    %v1684 = vunpack.c.h.b16 %v456
    %v1685 = vunpack.c.l.b16 %v457
    %v1686 = vunpack.c.h.b16 %v457
    %v1687 = vunpack.c.l.b16 %v458
    %v1688 = vunpack.c.h.b16 %v458
    %v1689 = vunpack.c.l.b16 %v459
    %v1690 = vunpack.c.h.b16 %v459
    %v1691 = vunpack.c.l.b16 %v460
    %v1692 = vunpack.c.h.b16 %v460
    %v1693 = vunpack.c.l.b16 %v461
    %v1694 = vunpack.c.h.b16 %v461
    %v1695 = vunpack.c.l.b16 %v462
    %v1696 = vunpack.c.h.b16 %v462
    %v1697 = vunpack.c.l.b16 %v463
    %v1698 = vunpack.c.h.b16 %v463
    %v1699 = vunpack.c.l.b16 %v464
    %v1700 = vunpack.c.h.b16 %v464
    %v1701 = vunpack.c.l.b16 %v465
    %v1702 = vunpack.c.h.b16 %v465
    %v1703 = vunpack.c.l.b16 %v466
    %v1704 = vunpack.c.h.b16 %v466
    %v1705 = vunpack.c.l.b16 %v467
    %v1706 = vunpack.c.h.b16 %v467
    %v1707 = vunpack.c.l.b16 %v468
    %v1708 = vunpack.c.h.b16 %v468
    %v1709 = vunpack.c.l.b16 %v469
    %v1710 = vunpack.c.h.b16 %v469
    %v1711 = vunpack.c.l.b16 %v470
    %v1712 = vunpack.c.h.b16 %v470
    %v1713 = vunpack.c.l.b16 %v471
    %v1714 = vunpack.c.h.b16 %v471
    %v1715 = vunpack.c.l.b16 %v472
    %v1716 = vunpack.c.h.b16 %v472
    %v1717 = vunpack.c.l.b16 %v473
    %v1718 = vunpack.c.h.b16 %v473
    %v1719 = vunpack.c.l.b16 %v474
    %v1720 = vunpack.c.h.b16 %v474
    %v1721 = vunpack.c.l.b16 %v475
    %v1722 = vunpack.c.h.b16 %v475
    %v1723 = vunpack.c.l.b16 %v476
    %v1724 = vunpack.c.h.b16 %v476
    %v1725 = vunpack.c.l.b16 %v477
    %v1726 = vunpack.c.h.b16 %v477
    %v1727 = vunpack.c.l.b16 %v478
    %v1728 = vunpack.c.h.b16 %v478
    %v1729 = vunpack.c.l.b16 %v479
    %v1730 = vunpack.c.h.b16 %v479
    %v1731 = vunpack.c.l.b16 %v480
    %v1732 = vunpack.c.h.b16 %v480
    %v1733 = vunpack.c.l.b16 %v481
    %v1734 = vunpack.c.h.b16 %v481
    %v1735 = vunpack.c.l.b16 %v482
    %v1736 = vunpack.c.h.b16 %v482
    %v1737 = vunpack.c.l.b16 %v483
    %v1738 = vunpack.c.h.b16 %v483
    %v1739 = vunpack.c.l.b16 %v484
    %v1740 = vunpack.c.h.b16 %v484
    %v1741 = vunpack.c.l.b16 %v485
    %v1742 = vunpack.c.h.b16 %v485
    %v1743 = vunpack.c.l.b16 %v486
    %v1744 = vunpack.c.h.b16 %v486
    %v1745 = vunpack.c.l.b16 %v487
    %v1746 = vunpack.c.h.b16 %v487
    %v1747 = vunpack.c.l.b16 %v488
    %v1748 = vunpack.c.h.b16 %v488
    %v1749 = vunpack.c.l.b16 %v489
    %v1750 = vunpack.c.h.b16 %v489
    %v1751 = vunpack.c.l.b16 %v490
    %v1752 = vunpack.c.h.b16 %v490
    %v1753 = vunpack.c.l.b16 %v491
    %v1754 = vunpack.c.h.b16 %v491
    %v1755 = vunpack.c.l.b16 %v492
    %v1756 = vunpack.c.h.b16 %v492
    %v1757 = vunpack.c.l.b16 %v493
    %v1758 = vunpack.c.h.b16 %v493
    %v1759 = vunpack.c.l.b16 %v494
    %v1760 = vunpack.c.h.b16 %v494
    %v1761 = vunpack.c.l.b16 %v495
    %v1762 = vunpack.c.h.b16 %v495
    %v1763 = vunpack.c.l.b16 %v496
    %v1764 = vunpack.c.h.b16 %v496
    %v1765 = vunpack.c.l.b16 %v497
    %v1766 = vunpack.c.h.b16 %v497
    %v1767 = vunpack.c.l.b16 %v498
    %v1768 = vunpack.c.h.b16 %v498
    %v1769 = vunpack.c.l.b16 %v499
    %v1770 = vunpack.c.h.b16 %v499
    %v1771 = vunpack.c.l.b16 %v500
    %v1772 = vunpack.c.h.b16 %v500
    %v1773 = vunpack.c.l.b16 %v501
    %v1774 = vunpack.c.h.b16 %v501
    %v1775 = vunpack.c.l.b16 %v502
    %v1776 = vunpack.c.h.b16 %v502
    %v1777 = vunpack.c.l.b16 %v503
    %v1778 = vunpack.c.h.b16 %v503
    %v1779 = vunpack.c.l.b16 %v504
    %v1780 = vunpack.c.h.b16 %v504
    %v1781 = vunpack.c.l.b16 %v505
    %v1782 = vunpack.c.h.b16 %v505
    %v1783 = vunpack.c.l.b16 %v506
    %v1784 = vunpack.c.h.b16 %v506
    %v1785 = vunpack.c.l.b16 %v507
    %v1786 = vunpack.c.h.b16 %v507
    %v1787 = vunpack.c.l.b16 %v508
    %v1788 = vunpack.c.h.b16 %v508
    %v1789 = vunpack.c.l.b16 %v509
    %v1790 = vunpack.c.h.b16 %v509
    %v1791 = vunpack.c.l.b16 %v510
    %v1792 = vunpack.c.h.b16 %v510
    %v1793 = vunpack.c.l.b16 %v511
    %v1794 = vunpack.c.h.b16 %v511
    %v1795 = vunpack.c.l.b16 %v512
    %v1796 = vunpack.c.h.b16 %v512
    %v1797 = vunpack.c.l.b16 %v513
    %v1798 = vunpack.c.h.b16 %v513
    %v1799 = vunpack.c.l.b16 %v514
    %v1800 = vunpack.c.h.b16 %v514
    %v1801 = vunpack.c.l.b16 %v515
    %v1802 = vunpack.c.h.b16 %v515
    %v1803 = vunpack.c.l.b16 %v516
    %v1804 = vunpack.c.h.b16 %v516
    %v1805 = vunpack.c.l.b16 %v517
    %v1806 = vunpack.c.h.b16 %v517
    %v1807 = vunpack.c.l.b16 %v518
    %v1808 = vunpack.c.h.b16 %v518
    %v1809 = vunpack.c.l.b16 %v519
    %v1810 = vunpack.c.h.b16 %v519
    %v1811 = vunpack.c.l.b16 %v520
    %v1812 = vunpack.c.h.b16 %v520
    %v1813 = vunpack.c.l.b16 %v521
    %v1814 = vunpack.c.h.b16 %v521
    %v1815 = vunpack.c.l.b16 %v522
    %v1816 = vunpack.c.h.b16 %v522
    %v1817 = vunpack.c.l.b16 %v523
    %v1818 = vunpack.c.h.b16 %v523
    %v1819 = vunpack.c.l.b16 %v524
    %v1820 = vunpack.c.h.b16 %v524
    %v1821 = vunpack.c.l.b16 %v525
    %v1822 = vunpack.c.h.b16 %v525
    %v1823 = vunpack.c.l.b16 %v526
    %v1824 = vunpack.c.h.b16 %v526
    %v1825 = vunpack.c.l.b16 %v527
    %v1826 = vunpack.c.h.b16 %v527
    %v1827 = vunpack.c.l.b16 %v528
    %v1828 = vunpack.c.h.b16 %v528
    %v1829 = vunpack.c.l.b16 %v529
    %v1830 = vunpack.c.h.b16 %v529
    %v1831 = vunpack.c.l.b16 %v530
    %v1832 = vunpack.c.h.b16 %v530
    %v1833 = vunpack.c.l.b16 %v531
    %v1834 = vunpack.c.h.b16 %v531
    %v1835 = vunpack.c.l.b16 %v532
    %v1836 = vunpack.c.h.b16 %v532
    %v1837 = vunpack.c.l.b16 %v533
    %v1838 = vunpack.c.h.b16 %v533
    %v1839 = vunpack.c.l.b16 %v534
    %v1840 = vunpack.c.h.b16 %v534
    %v1841 = vunpack.c.l.b16 %v535
    %v1842 = vunpack.c.h.b16 %v535
    %v1843 = vunpack.c.l.b16 %v536
    %v1844 = vunpack.c.h.b16 %v536
    %v1845 = vunpack.c.l.b16 %v537
    %v1846 = vunpack.c.h.b16 %v537
    %v1847 = vunpack.c.l.b16 %v538
    %v1848 = vunpack.c.h.b16 %v538
    %v1849 = vunpack.c.l.b16 %v539
    %v1850 = vunpack.c.h.b16 %v539
    %v1851 = vunpack.c.l.b16 %v540
    %v1852 = vunpack.c.h.b16 %v540
    %v1853 = vunpack.c.l.b16 %v541
    %v1854 = vunpack.c.h.b16 %v541
    %v1855 = vunpack.c.l.b16 %v542
    %v1856 = vunpack.c.h.b16 %v542
    %v1857 = vunpack.c.l.b16 %v543
    %v1858 = vunpack.c.h.b16 %v543
    %v1859 = vunpack.c.l.b16 %v544
    %v1860 = vunpack.c.h.b16 %v544
    %v1861 = vunpack.c.l.b16 %v545
    %v1862 = vunpack.c.h.b16 %v545
    %v1863 = vunpack.c.l.b16 %v546
    %v1864 = vunpack.c.h.b16 %v546
    %v1865 = vunpack.c.l.b16 %v547
    %v1866 = vunpack.c.h.b16 %v547
    %v1867 = vunpack.c.l.b16 %v548
    %v1868 = vunpack.c.h.b16 %v548
    %v1869 = vunpack.c.l.b16 %v549
    %v1870 = vunpack.c.h.b16 %v549
    %v1871 = vunpack.c.l.b16 %v550
    %v1872 = vunpack.c.h.b16 %v550
    %v1873 = vunpack.c.l.b16 %v551
    %v1874 = vunpack.c.h.b16 %v551
    %v1875 = vunpack.c.l.b16 %v552
    %v1876 = vunpack.c.h.b16 %v552
    %v1877 = vunpack.c.l.b16 %v553
    %v1878 = vunpack.c.h.b16 %v553
    %v1879 = vunpack.c.l.b16 %v554
    %v1880 = vunpack.c.h.b16 %v554
    %v1881 = vunpack.c.l.b16 %v555
    %v1882 = vunpack.c.h.b16 %v555
    %v1883 = vunpack.c.l.b16 %v556
    %v1884 = vunpack.c.h.b16 %v556
    %v1885 = vunpack.c.l.b16 %v557
    %v1886 = vunpack.c.h.b16 %v557
    %v1887 = vunpack.c.l.b16 %v558
    %v1888 = vunpack.c.h.b16 %v558
    %v1889 = vunpack.c.l.b16 %v559
    %v1890 = vunpack.c.h.b16 %v559
    %v1891 = vunpack.c.l.b16 %v560
    %v1892 = vunpack.c.h.b16 %v560
    %v1893 = vunpack.c.l.b16 %v561
    %v1894 = vunpack.c.h.b16 %v561
    %v1895 = vunpack.c.l.b16 %v562
    %v1896 = vunpack.c.h.b16 %v562
    %v1897 = vunpack.c.l.b16 %v563
    %v1898 = vunpack.c.h.b16 %v563
    %v1899 = vunpack.c.l.b16 %v564
    %v1900 = vunpack.c.h.b16 %v564
    %v1901 = vunpack.c.l.b16 %v565
    %v1902 = vunpack.c.h.b16 %v565
    %v1903 = vunpack.c.l.b16 %v566
    %v1904 = vunpack.c.h.b16 %v566
    %v1905 = vunpack.c.l.b16 %v567
    %v1906 = vunpack.c.h.b16 %v567
    %v1907 = vunpack.c.l.b16 %v568
    %v1908 = vunpack.c.h.b16 %v568
    %v1909 = vunpack.c.l.b16 %v569
    %v1910 = vunpack.c.h.b16 %v569
    %v1911 = vunpack.c.l.b16 %v570
    %v1912 = vunpack.c.h.b16 %v570
    %v1913 = vunpack.c.l.b16 %v571
    %v1914 = vunpack.c.h.b16 %v571
    %v1915 = vunpack.c.l.b16 %v572
    %v1916 = vunpack.c.h.b16 %v572
    %v1917 = vunpack.c.l.b16 %v573
    %v1918 = vunpack.c.h.b16 %v573
    %v1919 = vunpack.c.l.b16 %v574
    %v1920 = vunpack.c.h.b16 %v574
    %v1921 = vunpack.c.l.b16 %v575
    %v1922 = vunpack.c.h.b16 %v575
    %v1923 = vunpack.c.l.b16 %v576
    %v1924 = vunpack.c.h.b16 %v576
    %v1925 = vunpack.c.l.b16 %v577
    %v1926 = vunpack.c.h.b16 %v577
    %v1927 = vunpack.c.l.b16 %v578
    %v1928 = vunpack.c.h.b16 %v578
    %v1929 = vunpack.c.l.b16 %v579
    %v1930 = vunpack.c.h.b16 %v579
    %v1931 = vunpack.c.l.b16 %v580
    %v1932 = vunpack.c.h.b16 %v580
    %v1933 = vunpack.c.l.b16 %v581
    %v1934 = vunpack.c.h.b16 %v581
    %v1935 = vunpack.c.l.b16 %v582
    %v1936 = vunpack.c.h.b16 %v582
    %v1937 = vunpack.c.l.b16 %v583
    %v1938 = vunpack.c.h.b16 %v583
    %v1939 = vunpack.c.l.b16 %v584
    %v1940 = vunpack.c.h.b16 %v584
    %v1941 = vunpack.c.l.b16 %v585
    %v1942 = vunpack.c.h.b16 %v585
    %v1943 = vunpack.c.l.b16 %v586
    %v1944 = vunpack.c.h.b16 %v586
    %v1945 = vunpack.c.l.b16 %v587
    %v1946 = vunpack.c.h.b16 %v587
    %v1947 = vunpack.c.l.b16 %v588
    %v1948 = vunpack.c.h.b16 %v588
    %v1949 = vunpack.c.l.b16 %v589
    %v1950 = vunpack.c.h.b16 %v589
    %v1951 = vunpack.c.l.b16 %v590
    %v1952 = vunpack.c.h.b16 %v590
    %v1953 = vunpack.c.l.b16 %v591
    %v1954 = vunpack.c.h.b16 %v591
    %v1955 = vunpack.c.l.b16 %v592
    %v1956 = vunpack.c.h.b16 %v592
    %v1957 = vunpack.c.l.b16 %v593
    %v1958 = vunpack.c.h.b16 %v593
    %v1959 = vunpack.c.l.b16 %v594
    %v1960 = vunpack.c.h.b16 %v594
    %v1961 = vunpack.c.l.b16 %v595
    %v1962 = vunpack.c.h.b16 %v595
    %v1963 = vunpack.c.l.b16 %v596
    %v1964 = vunpack.c.h.b16 %v596
    %v1965 = vunpack.c.l.b16 %v597
    %v1966 = vunpack.c.h.b16 %v597
    %v1967 = vunpack.c.l.b16 %v598
    %v1968 = vunpack.c.h.b16 %v598
    %v1969 = vunpack.c.l.b16 %v599
    %v1970 = vunpack.c.h.b16 %v599
    %v1971 = vunpack.c.l.b16 %v600
    %v1972 = vunpack.c.h.b16 %v600
    %v1973 = vunpack.c.l.b16 %v601
    %v1974 = vunpack.c.h.b16 %v601
    %v1975 = vunpack.c.l.b16 %v602
    %v1976 = vunpack.c.h.b16 %v602
    %v1977 = vunpack.c.l.b16 %v603
    %v1978 = vunpack.c.h.b16 %v603
    %v1979 = vunpack.c.l.b16 %v604
    %v1980 = vunpack.c.h.b16 %v604
    %v1981 = vunpack.c.l.b16 %v605
    %v1982 = vunpack.c.h.b16 %v605
    %v1983 = vunpack.c.l.b16 %v606
    %v1984 = vunpack.c.h.b16 %v606
    %v1985 = vunpack.c.l.b16 %v607
    %v1986 = vunpack.c.h.b16 %v607
    %v1987 = vunpack.c.l.b16 %v608
    %v1988 = vunpack.c.h.b16 %v608
    %v1989 = vunpack.c.l.b16 %v609
    %v1990 = vunpack.c.h.b16 %v609
    %v1991 = vunpack.c.l.b16 %v610
    %v1992 = vunpack.c.h.b16 %v610
    %v1993 = vunpack.c.l.b16 %v611
    %v1994 = vunpack.c.h.b16 %v611
    %v1995 = vunpack.c.l.b16 %v612
    %v1996 = vunpack.c.h.b16 %v612
    %v1997 = vunpack.c.l.b16 %v613
    %v1998 = vunpack.c.h.b16 %v613
    %v1999 = vunpack.c.l.b16 %v614
    %v2000 = vunpack.c.h.b16 %v614
    %v2001 = vunpack.c.l.b16 %v615
    %v2002 = vunpack.c.h.b16 %v615
    %v2003 = vunpack.c.l.b16 %v616
    %v2004 = vunpack.c.h.b16 %v616
    %v2005 = vunpack.c.l.b16 %v617
    %v2006 = vunpack.c.h.b16 %v617
    %v2007 = vunpack.c.l.b16 %v618
    %v2008 = vunpack.c.h.b16 %v618
    %v2009 = vunpack.c.l.b16 %v619
    %v2010 = vunpack.c.h.b16 %v619
    %v2011 = vunpack.c.l.b16 %v620
    %v2012 = vunpack.c.h.b16 %v620
    %v2013 = vunpack.c.l.b16 %v621
    %v2014 = vunpack.c.h.b16 %v621
    %v2015 = vunpack.c.l.b16 %v622
    %v2016 = vunpack.c.h.b16 %v622
    %v2017 = vunpack.c.l.b16 %v623
    %v2018 = vunpack.c.h.b16 %v623
    %v2019 = vunpack.c.l.b16 %v624
    %v2020 = vunpack.c.h.b16 %v624
    %v2021 = vunpack.c.l.b16 %v625
    %v2022 = vunpack.c.h.b16 %v625
    %v2023 = vunpack.c.l.b16 %v626
    %v2024 = vunpack.c.h.b16 %v626
    %v2025 = vunpack.c.l.b16 %v627
    %v2026 = vunpack.c.h.b16 %v627
    %v2027 = vunpack.c.l.b16 %v628
    %v2028 = vunpack.c.h.b16 %v628
    %v2029 = vunpack.c.l.b16 %v629
    %v2030 = vunpack.c.h.b16 %v629
    %v2031 = vunpack.c.l.b16 %v630
    %v2032 = vunpack.c.h.b16 %v630
    %v2033 = vunpack.c.l.b16 %v631
    %v2034 = vunpack.c.h.b16 %v631
    %v2035 = vunpack.c.l.b16 %v632
    %v2036 = vunpack.c.h.b16 %v632
    %v2037 = vunpack.c.l.b16 %v633
    %v2038 = vunpack.c.h.b16 %v633
    %v2039 = vunpack.c.l.b16 %v634
    %v2040 = vunpack.c.h.b16 %v634
    %v2041 = vunpack.c.l.b16 %v635
    %v2042 = vunpack.c.h.b16 %v635
    %v2043 = vunpack.c.l.b16 %v636
    %v2044 = vunpack.c.h.b16 %v636
    %v2045 = vunpack.c.l.b16 %v637
    %v2046 = vunpack.c.h.b16 %v637
    %v2047 = vunpack.c.l.b16 %v638
    %v2048 = vunpack.c.h.b16 %v638
    %v2049 = vunpack.c.l.b16 %v639
    %v2050 = vunpack.c.h.b16 %v639
    %v2051 = vunpack.c.l.b16 %v640
    %v2052 = vunpack.c.h.b16 %v640
    %v2053 = vunpack.c.l.b16 %v641
    %v2054 = vunpack.c.h.b16 %v641
    %v2055 = vunpack.c.l.b16 %v642
    %v2056 = vunpack.c.h.b16 %v642
    %v2057 = vunpack.c.l.b16 %v643
    %v2058 = vunpack.c.h.b16 %v643
    %v2059 = vunpack.c.l.b16 %v644
    %v2060 = vunpack.c.h.b16 %v644
    %v2061 = vunpack.c.l.b16 %v645
    %v2062 = vunpack.c.h.b16 %v645
    %v2063 = vunpack.c.l.b16 %v646
    %v2064 = vunpack.c.h.b16 %v646
    %v2065 = vunpack.c.l.b16 %v647
    %v2066 = vunpack.c.h.b16 %v647
    %v2067 = vunpack.c.l.b16 %v648
    %v2068 = vunpack.c.h.b16 %v648
    %v2069 = vunpack.c.l.b16 %v649
    %v2070 = vunpack.c.h.b16 %v649
    %v2071 = vunpack.c.l.b16 %v650
    %v2072 = vunpack.c.h.b16 %v650
    %v2073 = vunpack.c.l.b16 %v651
    %v2074 = vunpack.c.h.b16 %v651
    %v2075 = vunpack.c.l.b16 %v652
    %v2076 = vunpack.c.h.b16 %v652
    %v2077 = vunpack.c.l.b16 %v653
    %v2078 = vunpack.c.h.b16 %v653
    %v2079 = vunpack.c.l.b16 %v654
    %v2080 = vunpack.c.h.b16 %v654
    %v2081 = vunpack.c.l.b16 %v655
    %v2082 = vunpack.c.h.b16 %v655
    %v2083 = vunpack.c.l.b16 %v656
    %v2084 = vunpack.c.h.b16 %v656
    %v2085 = vunpack.c.l.b16 %v657
    %v2086 = vunpack.c.h.b16 %v657
    %v2087 = vunpack.c.l.b16 %v658
    %v2088 = vunpack.c.h.b16 %v658
    %v2089 = vunpack.c.l.b16 %v659
    %v2090 = vunpack.c.h.b16 %v659
    %v2091 = vunpack.c.l.b16 %v660
    %v2092 = vunpack.c.h.b16 %v660
    %v2093 = vunpack.c.l.b16 %v661
    %v2094 = vunpack.c.h.b16 %v661
    %v2095 = vunpack.c.l.b16 %v662
    %v2096 = vunpack.c.h.b16 %v662
    %v2097 = vunpack.c.l.b16 %v663
    %v2098 = vunpack.c.h.b16 %v663
    %v2099 = vunpack.c.l.b16 %v664
    %v2100 = vunpack.c.h.b16 %v664
    %v2101 = vunpack.c.l.b16 %v665
    %v2102 = vunpack.c.h.b16 %v665
    %v2103 = vunpack.c.l.b16 %v666
    %v2104 = vunpack.c.h.b16 %v666
    %v2105 = vunpack.c.l.b16 %v667
    %v2106 = vunpack.c.h.b16 %v667
    %v2107 = vunpack.c.l.b16 %v668
    %v2108 = vunpack.c.h.b16 %v668
    %v2109 = vunpack.c.l.b16 %v669
    %v2110 = vunpack.c.h.b16 %v669
    %v2111 = vunpack.c.l.b16 %v670
    %v2112 = vunpack.c.h.b16 %v670
    %v2113 = vunpack.c.l.b16 %v671
    %v2114 = vunpack.c.h.b16 %v671
    %v2115 = vunpack.c.l.b16 %v672
    %v2116 = vunpack.c.h.b16 %v672
    %v2117 = vunpack.c.l.b16 %v673
    %v2118 = vunpack.c.h.b16 %v673
    %v2119 = vunpack.c.l.b16 %v674
    %v2120 = vunpack.c.h.b16 %v674
    %v2121 = vunpack.c.l.b16 %v675
    %v2122 = vunpack.c.h.b16 %v675
    %v2123 = vunpack.c.l.b16 %v676
    %v2124 = vunpack.c.h.b16 %v676
    %v2125 = vunpack.c.l.b16 %v677
    %v2126 = vunpack.c.h.b16 %v677
    %v2127 = vunpack.c.l.b16 %v678
    %v2128 = vunpack.c.h.b16 %v678
    %v2129 = vunpack.c.l.b16 %v679
    %v2130 = vunpack.c.h.b16 %v679
    %v2131 = vunpack.c.l.b16 %v680
    %v2132 = vunpack.c.h.b16 %v680
    %v2133 = vunpack.c.l.b16 %v681
    %v2134 = vunpack.c.h.b16 %v681
    %v2135 = vunpack.c.l.b16 %v682
    %v2136 = vunpack.c.h.b16 %v682
    %v2137 = vunpack.c.l.b16 %v683
    %v2138 = vunpack.c.h.b16 %v683
    %v2139 = vunpack.c.l.b16 %v684
    %v2140 = vunpack.c.h.b16 %v684
    %v2141 = vunpack.c.l.b16 %v685
    %v2142 = vunpack.c.h.b16 %v685
    %v2143 = vunpack.c.l.b16 %v686
    %v2144 = vunpack.c.h.b16 %v686
    %v2145 = vunpack.c.l.b16 %v687
    %v2146 = vunpack.c.h.b16 %v687
    %v2147 = vunpack.c.l.b16 %v688
    %v2148 = vunpack.c.h.b16 %v688
    %v2149 = vunpack.c.l.b16 %v689
    %v2150 = vunpack.c.h.b16 %v689
    %v2151 = vunpack.c.l.b16 %v690
    %v2152 = vunpack.c.h.b16 %v690
    %v2153 = vunpack.c.l.b16 %v691
    %v2154 = vunpack.c.h.b16 %v691
    %v2155 = vunpack.c.l.b16 %v692
    %v2156 = vunpack.c.h.b16 %v692
    %v2157 = vunpack.c.l.b16 %v693
    %v2158 = vunpack.c.h.b16 %v693
    %v2159 = vunpack.c.l.b16 %v694
    %v2160 = vunpack.c.h.b16 %v694
    %v2161 = vunpack.c.l.b16 %v695
    %v2162 = vunpack.c.h.b16 %v695
    %v2163 = vunpack.c.l.b16 %v696
    %v2164 = vunpack.c.h.b16 %v696
    %v2165 = vunpack.c.l.b16 %v697
    %v2166 = vunpack.c.h.b16 %v697
    %v2167 = vunpack.c.l.b16 %v698
    %v2168 = vunpack.c.h.b16 %v698
    %v2169 = vunpack.c.l.b16 %v699
    %v2170 = vunpack.c.h.b16 %v699
    %v2171 = vunpack.c.l.b16 %v700
    %v2172 = vunpack.c.h.b16 %v700
    %v2173 = vunpack.c.l.b16 %v701
    %v2174 = vunpack.c.h.b16 %v701
    %v2175 = vunpack.c.l.b16 %v702
    %v2176 = vunpack.c.h.b16 %v702
    %v2177 = vunpack.c.l.b16 %v703
    %v2178 = vunpack.c.h.b16 %v703
    %v2179 = vunpack.c.l.b16 %v704
    %v2180 = vunpack.c.h.b16 %v704
    %v2181 = vunpack.c.l.b16 %v705
    %v2182 = vunpack.c.h.b16 %v705
    %v2183 = vunpack.c.l.b16 %v706
    %v2184 = vunpack.c.h.b16 %v706
    %v2185 = vunpack.c.l.b16 %v707
    %v2186 = vunpack.c.h.b16 %v707
    %v2187 = vunpack.c.l.b16 %v708
    %v2188 = vunpack.c.h.b16 %v708
    %v2189 = vunpack.c.l.b16 %v709
    %v2190 = vunpack.c.h.b16 %v709
    %v2191 = vunpack.c.l.b16 %v710
    %v2192 = vunpack.c.h.b16 %v710
    %v2193 = vunpack.c.l.b16 %v711
    %v2194 = vunpack.c.h.b16 %v711
    %v2195 = vunpack.c.l.b16 %v712
    %v2196 = vunpack.c.h.b16 %v712
    %v2197 = vunpack.c.l.b16 %v713
    %v2198 = vunpack.c.h.b16 %v713
    %v2199 = vunpack.c.l.b16 %v714
    %v2200 = vunpack.c.h.b16 %v714
    %v2201 = vunpack.c.l.b16 %v715
    %v2202 = vunpack.c.h.b16 %v715
    %v2203 = vunpack.c.l.b16 %v716
    %v2204 = vunpack.c.h.b16 %v716
    %v2205 = vunpack.c.l.b16 %v717
    %v2206 = vunpack.c.h.b16 %v717
    %v2207 = vunpack.c.l.b16 %v718
    %v2208 = vunpack.c.h.b16 %v718
    %v2209 = vunpack.c.l.b16 %v719
    %v2210 = vunpack.c.h.b16 %v719
    %v2211 = vunpack.c.l.b16 %v720
    %v2212 = vunpack.c.h.b16 %v720
    %v2213 = vunpack.c.l.b16 %v721
    %v2214 = vunpack.c.h.b16 %v721
    %v2215 = vunpack.c.l.b16 %v722
    %v2216 = vunpack.c.h.b16 %v722
    %v2217 = vunpack.c.l.b16 %v723
    %v2218 = vunpack.c.h.b16 %v723
    %v2219 = vunpack.c.l.b16 %v724
    %v2220 = vunpack.c.h.b16 %v724
    %v2221 = vunpack.c.l.b16 %v725
    %v2222 = vunpack.c.h.b16 %v725
    %v2223 = vunpack.c.l.b16 %v726
    %v2224 = vunpack.c.h.b16 %v726
    %v2225 = vunpack.c.l.b16 %v727
    %v2226 = vunpack.c.h.b16 %v727
    %v2227 = vunpack.c.l.b16 %v728
    %v2228 = vunpack.c.h.b16 %v728
    %v2229 = vunpack.c.l.b16 %v729
    %v2230 = vunpack.c.h.b16 %v729
    %v2231 = vunpack.c.l.b16 %v730
    %v2232 = vunpack.c.h.b16 %v730
    %v2233 = vunpack.c.l.b16 %v731
    %v2234 = vunpack.c.h.b16 %v731
    %v2235 = vunpack.c.l.b16 %v732
    %v2236 = vunpack.c.h.b16 %v732
    %v2237 = vunpack.c.l.b16 %v733
    %v2238 = vunpack.c.h.b16 %v733
    %v2239 = vunpack.c.l.b16 %v734
    %v2240 = vunpack.c.h.b16 %v734
    %v2241 = vunpack.c.l.b16 %v735
    %v2242 = vunpack.c.h.b16 %v735
    %v2243 = vunpack.c.l.b16 %v736
    %v2244 = vunpack.c.h.b16 %v736
    %v2245 = vunpack.c.l.b16 %v737
    %v2246 = vunpack.c.h.b16 %v737
    %v2247 = vunpack.c.l.b16 %v738
    %v2248 = vunpack.c.h.b16 %v738
    %v2249 = vunpack.c.l.b16 %v739
    %v2250 = vunpack.c.h.b16 %v739
    %v2251 = vunpack.c.l.b16 %v740
    %v2252 = vunpack.c.h.b16 %v740
    %v2253 = vunpack.c.l.b16 %v741
    %v2254 = vunpack.c.h.b16 %v741
    %v2255 = vunpack.c.l.b16 %v742
    %v2256 = vunpack.c.h.b16 %v742
    %v2257 = vunpack.c.l.b16 %v743
    %v2258 = vunpack.c.h.b16 %v743
    %v2259 = vunpack.c.l.b16 %v744
    %v2260 = vunpack.c.h.b16 %v744
    %v2261 = vunpack.c.l.b16 %v745
    %v2262 = vunpack.c.h.b16 %v745
    %v2263 = vunpack.c.l.b16 %v746
    %v2264 = vunpack.c.h.b16 %v746
    %v2265 = vunpack.c.l.b16 %v747
    %v2266 = vunpack.c.h.b16 %v747
    %v2267 = vunpack.c.l.b16 %v748
    %v2268 = vunpack.c.h.b16 %v748
    %v2269 = vunpack.c.l.b16 %v749
    %v2270 = vunpack.c.h.b16 %v749
    %v2271 = vunpack.c.l.b16 %v750
    %v2272 = vunpack.c.h.b16 %v750
    %v2273 = vunpack.c.l.b16 %v751
    %v2274 = vunpack.c.h.b16 %v751
    %v2275 = vunpack.c.l.b16 %v752
    %v2276 = vunpack.c.h.b16 %v752
    %v2277 = vunpack.c.l.b16 %v753
    %v2278 = vunpack.c.h.b16 %v753
    %v2279 = vunpack.c.l.b16 %v754
    %v2280 = vunpack.c.h.b16 %v754
    %v2281 = vunpack.c.l.b16 %v755
    %v2282 = vunpack.c.h.b16 %v755
    %v2283 = vunpack.c.l.b16 %v756
    %v2284 = vunpack.c.h.b16 %v756
    %v2285 = vunpack.c.l.b16 %v757
    %v2286 = vunpack.c.h.b16 %v757
    %v2287 = vunpack.c.l.b16 %v758
    %v2288 = vunpack.c.h.b16 %v758
    %v2289 = vunpack.c.l.b16 %v759
    %v2290 = vunpack.c.h.b16 %v759
    %v2291 = vunpack.c.l.b16 %v760
    %v2292 = vunpack.c.h.b16 %v760
    %v2293 = vunpack.c.l.b16 %v761
    %v2294 = vunpack.c.h.b16 %v761
    %v2295 = vunpack.c.l.b16 %v762
    %v2296 = vunpack.c.h.b16 %v762
    %v2297 = vunpack.c.l.b16 %v763
    %v2298 = vunpack.c.h.b16 %v763
    %v2299 = vunpack.c.l.b16 %v764
    %v2300 = vunpack.c.h.b16 %v764
    %v2301 = vunpack.c.l.b16 %v765
    %v2302 = vunpack.c.h.b16 %v765
    %v2303 = vunpack.c.l.b16 %v766
    %v2304 = vunpack.c.h.b16 %v766
    %v2305 = vunpack.c.l.b16 %v767
    %v2306 = vunpack.c.h.b16 %v767
    %v2307 = vunpack.c.l.b16 %v768
    %v2308 = vunpack.c.h.b16 %v768
    %v2309 = vunpack.c.l.b16 %v769
    %v2310 = vunpack.c.h.b16 %v769
    %v2311 = vunpack.c.l.b16 %v770
    %v2312 = vunpack.c.h.b16 %v770
    %v2313 = vunpack.c.l.b16 %v771
    %v2314 = vunpack.c.h.b16 %v771
    %v2315 = vunpack.c.l.b16 %v772
    %v2316 = vunpack.c.h.b16 %v772
    %v2317 = vunpack.c.l.b16 %v773
    %v2318 = vunpack.c.h.b16 %v773
    %v2319 = vunpack.c.l.b16 %v774
    %v2320 = vunpack.c.h.b16 %v774
    %v2321 = vunpack.c.l.b16 %v775
    %v2322 = vunpack.c.h.b16 %v775
    %v2323 = vunpack.c.l.b16 %v776
    %v2324 = vunpack.c.h.b16 %v776
    %v2325 = vunpack.c.l.b16 %v777
    %v2326 = vunpack.c.h.b16 %v777
    %v2327 = vunpack.c.l.b16 %v778
    %v2328 = vunpack.c.h.b16 %v778
    %v2329 = vunpack.c.l.b16 %v779
    %v2330 = vunpack.c.h.b16 %v779
    %v2331 = vunpack.c.l.b16 %v780
    %v2332 = vunpack.c.h.b16 %v780
    %v2333 = vunpack.c.l.b16 %v781
    %v2334 = vunpack.c.h.b16 %v781
    %v2335 = vunpack.c.l.b16 %v782
    %v2336 = vunpack.c.h.b16 %v782
    %v2337 = vunpack.c.l.b16 %v783
    %v2338 = vunpack.c.h.b16 %v783
    %v2339 = vunpack.c.l.b16 %v784
    %v2340 = vunpack.c.h.b16 %v784
    %v2341 = vunpack.c.l.b16 %v785
    %v2342 = vunpack.c.h.b16 %v785
    %v2343 = vunpack.c.l.b16 %v786
    %v2344 = vunpack.c.h.b16 %v786
    %v2345 = vunpack.c.l.b16 %v787
    %v2346 = vunpack.c.h.b16 %v787
    %v2347 = vunpack.c.l.b16 %v788
    %v2348 = vunpack.c.h.b16 %v788
    %v2349 = vunpack.c.l.b16 %v789
    %v2350 = vunpack.c.h.b16 %v789
    %v2351 = vunpack.c.l.b16 %v790
    %v2352 = vunpack.c.h.b16 %v790
    %v2353 = vunpack.c.l.b16 %v791
    %v2354 = vunpack.c.h.b16 %v791
    %v2355 = vunpack.c.l.b16 %v792
    %v2356 = vunpack.c.h.b16 %v792
    %v2357 = vunpack.c.l.b16 %v793
    %v2358 = vunpack.c.h.b16 %v793
    %v2359 = vunpack.c.l.b16 %v794
    %v2360 = vunpack.c.h.b16 %v794
    %v2361 = vunpack.c.l.b16 %v795
    %v2362 = vunpack.c.h.b16 %v795
    %v2363 = vunpack.c.l.b16 %v796
    %v2364 = vunpack.c.h.b16 %v796
    %v2365 = vunpack.c.l.b16 %v797
    %v2366 = vunpack.c.h.b16 %v797
    %v2367 = vunpack.c.l.b16 %v798
    %v2368 = vunpack.c.h.b16 %v798
    %v2369 = vunpack.c.l.b16 %v799
    %v2370 = vunpack.c.h.b16 %v799
    %v2371 = vunpack.c.l.b16 %v800
    %v2372 = vunpack.c.h.b16 %v800
    %v2373 = vunpack.c.l.b16 %v801
    %v2374 = vunpack.c.h.b16 %v801
    %v2375 = vunpack.c.l.b16 %v802
    %v2376 = vunpack.c.h.b16 %v802
    %v2377 = vunpack.c.l.b16 %v803
    %v2378 = vunpack.c.h.b16 %v803
    %v2379 = vunpack.c.l.b16 %v804
    %v2380 = vunpack.c.h.b16 %v804
    %v2381 = vunpack.c.l.b16 %v805
    %v2382 = vunpack.c.h.b16 %v805
    %v2383 = vunpack.c.l.b16 %v806
    %v2384 = vunpack.c.h.b16 %v806
    %v2385 = vunpack.c.l.b16 %v807
    %v2386 = vunpack.c.h.b16 %v807
    %v2387 = vunpack.c.l.b16 %v808
    %v2388 = vunpack.c.h.b16 %v808
    %v2389 = vunpack.c.l.b16 %v809
    %v2390 = vunpack.c.h.b16 %v809
    %v2391 = vunpack.c.l.b16 %v810
    %v2392 = vunpack.c.h.b16 %v810
    %v2393 = vunpack.c.l.b16 %v811
    %v2394 = vunpack.c.h.b16 %v811
    %v2395 = vunpack.c.l.b16 %v812
    %v2396 = vunpack.c.h.b16 %v812
    %v2397 = vunpack.c.l.b16 %v813
    %v2398 = vunpack.c.h.b16 %v813
    %v2399 = vunpack.c.l.b16 %v814
    %v2400 = vunpack.c.h.b16 %v814
    %v2401 = vunpack.c.l.b16 %v815
    %v2402 = vunpack.c.h.b16 %v815
    %v2403 = vunpack.c.l.b16 %v816
    %v2404 = vunpack.c.h.b16 %v816
    %v2405 = vunpack.c.l.b16 %v817
    %v2406 = vunpack.c.h.b16 %v817
    %v2407 = vunpack.c.l.b16 %v818
    %v2408 = vunpack.c.h.b16 %v818
    %v2409 = vunpack.c.l.b16 %v819
    %v2410 = vunpack.c.h.b16 %v819
    %v2411 = vunpack.c.l.b16 %v820
    %v2412 = vunpack.c.h.b16 %v820
    %v2413 = vunpack.c.l.b16 %v821
    %v2414 = vunpack.c.h.b16 %v821
    %v2415 = vunpack.c.l.b16 %v822
    %v2416 = vunpack.c.h.b16 %v822
    %v2417 = vunpack.c.l.b16 %v823
    %v2418 = vunpack.c.h.b16 %v823
    %v2419 = vunpack.c.l.b16 %v824
    %v2420 = vunpack.c.h.b16 %v824
    %v2421 = vunpack.c.l.b16 %v825
    %v2422 = vunpack.c.h.b16 %v825
    %v2423 = vunpack.c.l.b16 %v826
    %v2424 = vunpack.c.h.b16 %v826
    %v2425 = vunpack.c.l.b16 %v827
    %v2426 = vunpack.c.h.b16 %v827
    %v2427 = vunpack.c.l.b16 %v828
    %v2428 = vunpack.c.h.b16 %v828
    %v2429 = vunpack.c.l.b16 %v829
    %v2430 = vunpack.c.h.b16 %v829
    %v2431 = vunpack.c.l.b16 %v830
    %v2432 = vunpack.c.h.b16 %v830
    %v2433 = vunpack.c.l.b16 %v831
    %v2434 = vunpack.c.h.b16 %v831
    %v2435 = vunpack.c.l.b16 %v832
    %v2436 = vunpack.c.h.b16 %v832
    %v2437 = vunpack.c.l.b16 %v833
    %v2438 = vunpack.c.h.b16 %v833
    %v2439 = vunpack.c.l.b16 %v834
    %v2440 = vunpack.c.h.b16 %v834
    %v2441 = vunpack.c.l.b16 %v835
    %v2442 = vunpack.c.h.b16 %v835
    %v2443 = vunpack.c.l.b16 %v836
    %v2444 = vunpack.c.h.b16 %v836
    %v2445 = vunpack.c.l.b16 %v837
    %v2446 = vunpack.c.h.b16 %v837
    %v2447 = vunpack.c.l.b16 %v838
    %v2448 = vunpack.c.h.b16 %v838
    %v2449 = vunpack.c.l.b16 %v839
    %v2450 = vunpack.c.h.b16 %v839
    %v2451 = vunpack.c.l.b16 %v840
    %v2452 = vunpack.c.h.b16 %v840
    %v2453 = vunpack.c.l.b16 %v841
    %v2454 = vunpack.c.h.b16 %v841
    %v2455 = vunpack.c.l.b16 %v842
    %v2456 = vunpack.c.h.b16 %v842
    %v2457 = vunpack.c.l.b16 %v843
    %v2458 = vunpack.c.h.b16 %v843
    %v2459 = vunpack.c.l.b16 %v844
    %v2460 = vunpack.c.h.b16 %v844
    %v2461 = vunpack.c.l.b16 %v845
    %v2462 = vunpack.c.h.b16 %v845
    %v2463 = vunpack.c.l.b16 %v846
    %v2464 = vunpack.c.h.b16 %v846
    %v2465 = vunpack.c.l.b16 %v847
    %v2466 = vunpack.c.h.b16 %v847
    %v2467 = vunpack.c.l.b16 %v848
    %v2468 = vunpack.c.h.b16 %v848
    %v2469 = vpack.c.b16 %v1461, %v1445
    %v2470 = vpack.c.b16 %v1462, %v1446
    %v2471 = vpack.c.b16 %v1463, %v1447
    %v2472 = vpack.c.b16 %v1464, %v1448
    %v2473 = vpack.c.b16 %v1465, %v1449
    %v2474 = vpack.c.b16 %v1466, %v1450
    %v2475 = vpack.c.b16 %v1467, %v1451
    %v2476 = vpack.c.b16 %v1468, %v1452
    %v2477 = vpack.c.b16 %v1469, %v1453
    %v2478 = vpack.c.b16 %v1470, %v1454
    %v2479 = vpack.c.b16 %v1471, %v1455
    %v2480 = vpack.c.b16 %v1472, %v1456
    %v2481 = vpack.c.b16 %v1473, %v1457
    %v2482 = vpack.c.b16 %v1474, %v1458
    %v2483 = vpack.c.b16 %v1475, %v1459
    %v2484 = vpack.c.b16 %v1476, %v1460
    %v2485 = vpack.c.b16 %v1493, %v1477
    %v2486 = vpack.c.b16 %v1494, %v1478
    %v2487 = vpack.c.b16 %v1495, %v1479
    %v2488 = vpack.c.b16 %v1496, %v1480
    %v2489 = vpack.c.b16 %v1497, %v1481
    %v2490 = vpack.c.b16 %v1498, %v1482
    %v2491 = vpack.c.b16 %v1499, %v1483
    %v2492 = vpack.c.b16 %v1500, %v1484
    %v2493 = vpack.c.b16 %v1501, %v1485
    %v2494 = vpack.c.b16 %v1502, %v1486
    %v2495 = vpack.c.b16 %v1503, %v1487
    %v2496 = vpack.c.b16 %v1504, %v1488
    %v2497 = vpack.c.b16 %v1505, %v1489
    %v2498 = vpack.c.b16 %v1506, %v1490
    %v2499 = vpack.c.b16 %v1507, %v1491
    %v2500 = vpack.c.b16 %v1508, %v1492
    %v2501 = vpack.c.b16 %v1525, %v1509
    %v2502 = vpack.c.b16 %v1526, %v1510
    %v2503 = vpack.c.b16 %v1527, %v1511
    %v2504 = vpack.c.b16 %v1528, %v1512
    %v2505 = vpack.c.b16 %v1529, %v1513
    %v2506 = vpack.c.b16 %v1530, %v1514
    %v2507 = vpack.c.b16 %v1531, %v1515
    %v2508 = vpack.c.b16 %v1532, %v1516
    %v2509 = vpack.c.b16 %v1533, %v1517
    %v2510 = vpack.c.b16 %v1534, %v1518
    %v2511 = vpack.c.b16 %v1535, %v1519
    %v2512 = vpack.c.b16 %v1536, %v1520
    %v2513 = vpack.c.b16 %v1537, %v1521
    %v2514 = vpack.c.b16 %v1538, %v1522
    %v2515 = vpack.c.b16 %v1539, %v1523
    %v2516 = vpack.c.b16 %v1540, %v1524
    %v2517 = vpack.c.b16 %v1557, %v1541
    %v2518 = vpack.c.b16 %v1558, %v1542
    %v2519 = vpack.c.b16 %v1559, %v1543
    %v2520 = vpack.c.b16 %v1560, %v1544
    %v2521 = vpack.c.b16 %v1561, %v1545
    %v2522 = vpack.c.b16 %v1562, %v1546
    %v2523 = vpack.c.b16 %v1563, %v1547
    %v2524 = vpack.c.b16 %v1564, %v1548
    %v2525 = vpack.c.b16 %v1565, %v1549
    %v2526 = vpack.c.b16 %v1566, %v1550
    %v2527 = vpack.c.b16 %v1567, %v1551
    %v2528 = vpack.c.b16 %v1568, %v1552
    %v2529 = vpack.c.b16 %v1569, %v1553
    %v2530 = vpack.c.b16 %v1570, %v1554
    %v2531 = vpack.c.b16 %v1571, %v1555
    %v2532 = vpack.c.b16 %v1572, %v1556
    %v2533 = vpack.c.b16 %v1589, %v1573
    %v2534 = vpack.c.b16 %v1590, %v1574
    %v2535 = vpack.c.b16 %v1591, %v1575
    %v2536 = vpack.c.b16 %v1592, %v1576
    %v2537 = vpack.c.b16 %v1593, %v1577
    %v2538 = vpack.c.b16 %v1594, %v1578
    %v2539 = vpack.c.b16 %v1595, %v1579
    %v2540 = vpack.c.b16 %v1596, %v1580
    %v2541 = vpack.c.b16 %v1597, %v1581
    %v2542 = vpack.c.b16 %v1598, %v1582
    %v2543 = vpack.c.b16 %v1599, %v1583
    %v2544 = vpack.c.b16 %v1600, %v1584
    %v2545 = vpack.c.b16 %v1601, %v1585
    %v2546 = vpack.c.b16 %v1602, %v1586
    %v2547 = vpack.c.b16 %v1603, %v1587
    %v2548 = vpack.c.b16 %v1604, %v1588
    %v2549 = vpack.c.b16 %v1621, %v1605
    %v2550 = vpack.c.b16 %v1622, %v1606
    %v2551 = vpack.c.b16 %v1623, %v1607
    %v2552 = vpack.c.b16 %v1624, %v1608
    %v2553 = vpack.c.b16 %v1625, %v1609
    %v2554 = vpack.c.b16 %v1626, %v1610
    %v2555 = vpack.c.b16 %v1627, %v1611
    %v2556 = vpack.c.b16 %v1628, %v1612
    %v2557 = vpack.c.b16 %v1629, %v1613
    %v2558 = vpack.c.b16 %v1630, %v1614
    %v2559 = vpack.c.b16 %v1631, %v1615
    %v2560 = vpack.c.b16 %v1632, %v1616
    %v2561 = vpack.c.b16 %v1633, %v1617
    %v2562 = vpack.c.b16 %v1634, %v1618
    %v2563 = vpack.c.b16 %v1635, %v1619
    %v2564 = vpack.c.b16 %v1636, %v1620
    %v2565 = vpack.c.b16 %v1653, %v1637
    %v2566 = vpack.c.b16 %v1654, %v1638
    %v2567 = vpack.c.b16 %v1655, %v1639
    %v2568 = vpack.c.b16 %v1656, %v1640
    %v2569 = vpack.c.b16 %v1657, %v1641
    %v2570 = vpack.c.b16 %v1658, %v1642
    %v2571 = vpack.c.b16 %v1659, %v1643
    %v2572 = vpack.c.b16 %v1660, %v1644
    %v2573 = vpack.c.b16 %v1661, %v1645
    %v2574 = vpack.c.b16 %v1662, %v1646
    %v2575 = vpack.c.b16 %v1663, %v1647
    %v2576 = vpack.c.b16 %v1664, %v1648
    %v2577 = vpack.c.b16 %v1665, %v1649
    %v2578 = vpack.c.b16 %v1666, %v1650
    %v2579 = vpack.c.b16 %v1667, %v1651
    %v2580 = vpack.c.b16 %v1668, %v1652
    %v2581 = vpack.c.b16 %v1685, %v1669
    %v2582 = vpack.c.b16 %v1686, %v1670
    %v2583 = vpack.c.b16 %v1687, %v1671
    %v2584 = vpack.c.b16 %v1688, %v1672
    %v2585 = vpack.c.b16 %v1689, %v1673
    %v2586 = vpack.c.b16 %v1690, %v1674
    %v2587 = vpack.c.b16 %v1691, %v1675
    %v2588 = vpack.c.b16 %v1692, %v1676
    %v2589 = vpack.c.b16 %v1693, %v1677
    %v2590 = vpack.c.b16 %v1694, %v1678
    %v2591 = vpack.c.b16 %v1695, %v1679
    %v2592 = vpack.c.b16 %v1696, %v1680
    %v2593 = vpack.c.b16 %v1697, %v1681
    %v2594 = vpack.c.b16 %v1698, %v1682
    %v2595 = vpack.c.b16 %v1699, %v1683
    %v2596 = vpack.c.b16 %v1700, %v1684
    %v2597 = vpack.c.b16 %v1717, %v1701
    %v2598 = vpack.c.b16 %v1718, %v1702
    %v2599 = vpack.c.b16 %v1719, %v1703
    %v2600 = vpack.c.b16 %v1720, %v1704
    %v2601 = vpack.c.b16 %v1721, %v1705
    %v2602 = vpack.c.b16 %v1722, %v1706
    %v2603 = vpack.c.b16 %v1723, %v1707
    %v2604 = vpack.c.b16 %v1724, %v1708
    %v2605 = vpack.c.b16 %v1725, %v1709
    %v2606 = vpack.c.b16 %v1726, %v1710
    %v2607 = vpack.c.b16 %v1727, %v1711
    %v2608 = vpack.c.b16 %v1728, %v1712
    %v2609 = vpack.c.b16 %v1729, %v1713
    %v2610 = vpack.c.b16 %v1730, %v1714
    %v2611 = vpack.c.b16 %v1731, %v1715
    %v2612 = vpack.c.b16 %v1732, %v1716
    %v2613 = vpack.c.b16 %v1749, %v1733
    %v2614 = vpack.c.b16 %v1750, %v1734
    %v2615 = vpack.c.b16 %v1751, %v1735
    %v2616 = vpack.c.b16 %v1752, %v1736
    %v2617 = vpack.c.b16 %v1753, %v1737
    %v2618 = vpack.c.b16 %v1754, %v1738
    %v2619 = vpack.c.b16 %v1755, %v1739
    %v2620 = vpack.c.b16 %v1756, %v1740
    %v2621 = vpack.c.b16 %v1757, %v1741
    %v2622 = vpack.c.b16 %v1758, %v1742
    %v2623 = vpack.c.b16 %v1759, %v1743
    %v2624 = vpack.c.b16 %v1760, %v1744
    %v2625 = vpack.c.b16 %v1761, %v1745
    %v2626 = vpack.c.b16 %v1762, %v1746
    %v2627 = vpack.c.b16 %v1763, %v1747
    %v2628 = vpack.c.b16 %v1764, %v1748
    %v2629 = vpack.c.b16 %v1781, %v1765
    %v2630 = vpack.c.b16 %v1782, %v1766
    %v2631 = vpack.c.b16 %v1783, %v1767
    %v2632 = vpack.c.b16 %v1784, %v1768
    %v2633 = vpack.c.b16 %v1785, %v1769
    %v2634 = vpack.c.b16 %v1786, %v1770
    %v2635 = vpack.c.b16 %v1787, %v1771
    %v2636 = vpack.c.b16 %v1788, %v1772
    %v2637 = vpack.c.b16 %v1789, %v1773
    %v2638 = vpack.c.b16 %v1790, %v1774
    %v2639 = vpack.c.b16 %v1791, %v1775
    %v2640 = vpack.c.b16 %v1792, %v1776
    %v2641 = vpack.c.b16 %v1793, %v1777
    %v2642 = vpack.c.b16 %v1794, %v1778
    %v2643 = vpack.c.b16 %v1795, %v1779
    %v2644 = vpack.c.b16 %v1796, %v1780
    %v2645 = vpack.c.b16 %v1813, %v1797
    %v2646 = vpack.c.b16 %v1814, %v1798
    %v2647 = vpack.c.b16 %v1815, %v1799
    %v2648 = vpack.c.b16 %v1816, %v1800
    %v2649 = vpack.c.b16 %v1817, %v1801
    %v2650 = vpack.c.b16 %v1818, %v1802
    %v2651 = vpack.c.b16 %v1819, %v1803
    %v2652 = vpack.c.b16 %v1820, %v1804
    %v2653 = vpack.c.b16 %v1821, %v1805
    %v2654 = vpack.c.b16 %v1822, %v1806
    %v2655 = vpack.c.b16 %v1823, %v1807
    %v2656 = vpack.c.b16 %v1824, %v1808
    %v2657 = vpack.c.b16 %v1825, %v1809
    %v2658 = vpack.c.b16 %v1826, %v1810
    %v2659 = vpack.c.b16 %v1827, %v1811
    %v2660 = vpack.c.b16 %v1828, %v1812
    %v2661 = vpack.c.b16 %v1845, %v1829
    %v2662 = vpack.c.b16 %v1846, %v1830
    %v2663 = vpack.c.b16 %v1847, %v1831
    %v2664 = vpack.c.b16 %v1848, %v1832
    %v2665 = vpack.c.b16 %v1849, %v1833
    %v2666 = vpack.c.b16 %v1850, %v1834
    %v2667 = vpack.c.b16 %v1851, %v1835
    %v2668 = vpack.c.b16 %v1852, %v1836
    %v2669 = vpack.c.b16 %v1853, %v1837
    %v2670 = vpack.c.b16 %v1854, %v1838
    %v2671 = vpack.c.b16 %v1855, %v1839
    %v2672 = vpack.c.b16 %v1856, %v1840
    %v2673 = vpack.c.b16 %v1857, %v1841
    %v2674 = vpack.c.b16 %v1858, %v1842
    %v2675 = vpack.c.b16 %v1859, %v1843
    %v2676 = vpack.c.b16 %v1860, %v1844
    %v2677 = vpack.c.b16 %v1877, %v1861
    %v2678 = vpack.c.b16 %v1878, %v1862
    %v2679 = vpack.c.b16 %v1879, %v1863
    %v2680 = vpack.c.b16 %v1880, %v1864
    %v2681 = vpack.c.b16 %v1881, %v1865
    %v2682 = vpack.c.b16 %v1882, %v1866
    %v2683 = vpack.c.b16 %v1883, %v1867
    %v2684 = vpack.c.b16 %v1884, %v1868
    %v2685 = vpack.c.b16 %v1885, %v1869
    %v2686 = vpack.c.b16 %v1886, %v1870
    %v2687 = vpack.c.b16 %v1887, %v1871
    %v2688 = vpack.c.b16 %v1888, %v1872
    %v2689 = vpack.c.b16 %v1889, %v1873
    %v2690 = vpack.c.b16 %v1890, %v1874
    %v2691 = vpack.c.b16 %v1891, %v1875
    %v2692 = vpack.c.b16 %v1892, %v1876
    %v2693 = vpack.c.b16 %v1909, %v1893
    %v2694 = vpack.c.b16 %v1910, %v1894
    %v2695 = vpack.c.b16 %v1911, %v1895
    %v2696 = vpack.c.b16 %v1912, %v1896
    %v2697 = vpack.c.b16 %v1913, %v1897
    %v2698 = vpack.c.b16 %v1914, %v1898
    %v2699 = vpack.c.b16 %v1915, %v1899
    %v2700 = vpack.c.b16 %v1916, %v1900
    %v2701 = vpack.c.b16 %v1917, %v1901
    %v2702 = vpack.c.b16 %v1918, %v1902
    %v2703 = vpack.c.b16 %v1919, %v1903
    %v2704 = vpack.c.b16 %v1920, %v1904
    %v2705 = vpack.c.b16 %v1921, %v1905
    %v2706 = vpack.c.b16 %v1922, %v1906
    %v2707 = vpack.c.b16 %v1923, %v1907
    %v2708 = vpack.c.b16 %v1924, %v1908
    %v2709 = vpack.c.b16 %v1941, %v1925
    %v2710 = vpack.c.b16 %v1942, %v1926
    %v2711 = vpack.c.b16 %v1943, %v1927
    %v2712 = vpack.c.b16 %v1944, %v1928
    %v2713 = vpack.c.b16 %v1945, %v1929
    %v2714 = vpack.c.b16 %v1946, %v1930
    %v2715 = vpack.c.b16 %v1947, %v1931
    %v2716 = vpack.c.b16 %v1948, %v1932
    %v2717 = vpack.c.b16 %v1949, %v1933
    %v2718 = vpack.c.b16 %v1950, %v1934
    %v2719 = vpack.c.b16 %v1951, %v1935
    %v2720 = vpack.c.b16 %v1952, %v1936
    %v2721 = vpack.c.b16 %v1953, %v1937
    %v2722 = vpack.c.b16 %v1954, %v1938
    %v2723 = vpack.c.b16 %v1955, %v1939
    %v2724 = vpack.c.b16 %v1956, %v1940
    %v2725 = vpack.c.b16 %v1973, %v1957
    %v2726 = vpack.c.b16 %v1974, %v1958
    %v2727 = vpack.c.b16 %v1975, %v1959
    %v2728 = vpack.c.b16 %v1976, %v1960
    %v2729 = vpack.c.b16 %v1977, %v1961
    %v2730 = vpack.c.b16 %v1978, %v1962
    %v2731 = vpack.c.b16 %v1979, %v1963
    %v2732 = vpack.c.b16 %v1980, %v1964
    %v2733 = vpack.c.b16 %v1981, %v1965
    %v2734 = vpack.c.b16 %v1982, %v1966
    %v2735 = vpack.c.b16 %v1983, %v1967
    %v2736 = vpack.c.b16 %v1984, %v1968
    %v2737 = vpack.c.b16 %v1985, %v1969
    %v2738 = vpack.c.b16 %v1986, %v1970
    %v2739 = vpack.c.b16 %v1987, %v1971
    %v2740 = vpack.c.b16 %v1988, %v1972
    %v2741 = vpack.c.b16 %v2005, %v1989
    %v2742 = vpack.c.b16 %v2006, %v1990
    %v2743 = vpack.c.b16 %v2007, %v1991
    %v2744 = vpack.c.b16 %v2008, %v1992
    %v2745 = vpack.c.b16 %v2009, %v1993
    %v2746 = vpack.c.b16 %v2010, %v1994
    %v2747 = vpack.c.b16 %v2011, %v1995
    %v2748 = vpack.c.b16 %v2012, %v1996
    %v2749 = vpack.c.b16 %v2013, %v1997
    %v2750 = vpack.c.b16 %v2014, %v1998
    %v2751 = vpack.c.b16 %v2015, %v1999
    %v2752 = vpack.c.b16 %v2016, %v2000
    %v2753 = vpack.c.b16 %v2017, %v2001
    %v2754 = vpack.c.b16 %v2018, %v2002
    %v2755 = vpack.c.b16 %v2019, %v2003
    %v2756 = vpack.c.b16 %v2020, %v2004
    %v2757 = vpack.c.b16 %v2037, %v2021
    %v2758 = vpack.c.b16 %v2038, %v2022
    %v2759 = vpack.c.b16 %v2039, %v2023
    %v2760 = vpack.c.b16 %v2040, %v2024
    %v2761 = vpack.c.b16 %v2041, %v2025
    %v2762 = vpack.c.b16 %v2042, %v2026
    %v2763 = vpack.c.b16 %v2043, %v2027
    %v2764 = vpack.c.b16 %v2044, %v2028
    %v2765 = vpack.c.b16 %v2045, %v2029
    %v2766 = vpack.c.b16 %v2046, %v2030
    %v2767 = vpack.c.b16 %v2047, %v2031
    %v2768 = vpack.c.b16 %v2048, %v2032
    %v2769 = vpack.c.b16 %v2049, %v2033
    %v2770 = vpack.c.b16 %v2050, %v2034
    %v2771 = vpack.c.b16 %v2051, %v2035
    %v2772 = vpack.c.b16 %v2052, %v2036
    %v2773 = vpack.c.b16 %v2069, %v2053
    %v2774 = vpack.c.b16 %v2070, %v2054
    %v2775 = vpack.c.b16 %v2071, %v2055
    %v2776 = vpack.c.b16 %v2072, %v2056
    %v2777 = vpack.c.b16 %v2073, %v2057
    %v2778 = vpack.c.b16 %v2074, %v2058
    %v2779 = vpack.c.b16 %v2075, %v2059
    %v2780 = vpack.c.b16 %v2076, %v2060
    %v2781 = vpack.c.b16 %v2077, %v2061
    %v2782 = vpack.c.b16 %v2078, %v2062
    %v2783 = vpack.c.b16 %v2079, %v2063
    %v2784 = vpack.c.b16 %v2080, %v2064
    %v2785 = vpack.c.b16 %v2081, %v2065
    %v2786 = vpack.c.b16 %v2082, %v2066
    %v2787 = vpack.c.b16 %v2083, %v2067
    %v2788 = vpack.c.b16 %v2084, %v2068
    %v2789 = vpack.c.b16 %v2101, %v2085
    %v2790 = vpack.c.b16 %v2102, %v2086
    %v2791 = vpack.c.b16 %v2103, %v2087
    %v2792 = vpack.c.b16 %v2104, %v2088
    %v2793 = vpack.c.b16 %v2105, %v2089
    %v2794 = vpack.c.b16 %v2106, %v2090
    %v2795 = vpack.c.b16 %v2107, %v2091
    %v2796 = vpack.c.b16 %v2108, %v2092
    %v2797 = vpack.c.b16 %v2109, %v2093
    %v2798 = vpack.c.b16 %v2110, %v2094
    %v2799 = vpack.c.b16 %v2111, %v2095
    %v2800 = vpack.c.b16 %v2112, %v2096
    %v2801 = vpack.c.b16 %v2113, %v2097
    %v2802 = vpack.c.b16 %v2114, %v2098
    %v2803 = vpack.c.b16 %v2115, %v2099
    %v2804 = vpack.c.b16 %v2116, %v2100
    %v2805 = vpack.c.b16 %v2133, %v2117
    %v2806 = vpack.c.b16 %v2134, %v2118
    %v2807 = vpack.c.b16 %v2135, %v2119
    %v2808 = vpack.c.b16 %v2136, %v2120
    %v2809 = vpack.c.b16 %v2137, %v2121
    %v2810 = vpack.c.b16 %v2138, %v2122
    %v2811 = vpack.c.b16 %v2139, %v2123
    %v2812 = vpack.c.b16 %v2140, %v2124
    %v2813 = vpack.c.b16 %v2141, %v2125
    %v2814 = vpack.c.b16 %v2142, %v2126
    %v2815 = vpack.c.b16 %v2143, %v2127
    %v2816 = vpack.c.b16 %v2144, %v2128
    %v2817 = vpack.c.b16 %v2145, %v2129
    %v2818 = vpack.c.b16 %v2146, %v2130
    %v2819 = vpack.c.b16 %v2147, %v2131
    %v2820 = vpack.c.b16 %v2148, %v2132
    %v2821 = vpack.c.b16 %v2165, %v2149
    %v2822 = vpack.c.b16 %v2166, %v2150
    %v2823 = vpack.c.b16 %v2167, %v2151
    %v2824 = vpack.c.b16 %v2168, %v2152
    %v2825 = vpack.c.b16 %v2169, %v2153
    %v2826 = vpack.c.b16 %v2170, %v2154
    %v2827 = vpack.c.b16 %v2171, %v2155
    %v2828 = vpack.c.b16 %v2172, %v2156
    %v2829 = vpack.c.b16 %v2173, %v2157
    %v2830 = vpack.c.b16 %v2174, %v2158
    %v2831 = vpack.c.b16 %v2175, %v2159
    %v2832 = vpack.c.b16 %v2176, %v2160
    %v2833 = vpack.c.b16 %v2177, %v2161
    %v2834 = vpack.c.b16 %v2178, %v2162
    %v2835 = vpack.c.b16 %v2179, %v2163
    %v2836 = vpack.c.b16 %v2180, %v2164
    %v2837 = vpack.c.b16 %v2197, %v2181
    %v2838 = vpack.c.b16 %v2198, %v2182
    %v2839 = vpack.c.b16 %v2199, %v2183
    %v2840 = vpack.c.b16 %v2200, %v2184
    %v2841 = vpack.c.b16 %v2201, %v2185
    %v2842 = vpack.c.b16 %v2202, %v2186
    %v2843 = vpack.c.b16 %v2203, %v2187
    %v2844 = vpack.c.b16 %v2204, %v2188
    %v2845 = vpack.c.b16 %v2205, %v2189
    %v2846 = vpack.c.b16 %v2206, %v2190
    %v2847 = vpack.c.b16 %v2207, %v2191
    %v2848 = vpack.c.b16 %v2208, %v2192
    %v2849 = vpack.c.b16 %v2209, %v2193
    %v2850 = vpack.c.b16 %v2210, %v2194
    %v2851 = vpack.c.b16 %v2211, %v2195
    %v2852 = vpack.c.b16 %v2212, %v2196
    %v2853 = vpack.c.b16 %v2229, %v2213
    %v2854 = vpack.c.b16 %v2230, %v2214
    %v2855 = vpack.c.b16 %v2231, %v2215
    %v2856 = vpack.c.b16 %v2232, %v2216
    %v2857 = vpack.c.b16 %v2233, %v2217
    %v2858 = vpack.c.b16 %v2234, %v2218
    %v2859 = vpack.c.b16 %v2235, %v2219
    %v2860 = vpack.c.b16 %v2236, %v2220
    %v2861 = vpack.c.b16 %v2237, %v2221
    %v2862 = vpack.c.b16 %v2238, %v2222
    %v2863 = vpack.c.b16 %v2239, %v2223
    %v2864 = vpack.c.b16 %v2240, %v2224
    %v2865 = vpack.c.b16 %v2241, %v2225
    %v2866 = vpack.c.b16 %v2242, %v2226
    %v2867 = vpack.c.b16 %v2243, %v2227
    %v2868 = vpack.c.b16 %v2244, %v2228
    %v2869 = vpack.c.b16 %v2261, %v2245
    %v2870 = vpack.c.b16 %v2262, %v2246
    %v2871 = vpack.c.b16 %v2263, %v2247
    %v2872 = vpack.c.b16 %v2264, %v2248
    %v2873 = vpack.c.b16 %v2265, %v2249
    %v2874 = vpack.c.b16 %v2266, %v2250
    %v2875 = vpack.c.b16 %v2267, %v2251
    %v2876 = vpack.c.b16 %v2268, %v2252
    %v2877 = vpack.c.b16 %v2269, %v2253
    %v2878 = vpack.c.b16 %v2270, %v2254
    %v2879 = vpack.c.b16 %v2271, %v2255
    %v2880 = vpack.c.b16 %v2272, %v2256
    %v2881 = vpack.c.b16 %v2273, %v2257
    %v2882 = vpack.c.b16 %v2274, %v2258
    %v2883 = vpack.c.b16 %v2275, %v2259
    %v2884 = vpack.c.b16 %v2276, %v2260
    %v2885 = vpack.c.b16 %v2293, %v2277
    %v2886 = vpack.c.b16 %v2294, %v2278
    %v2887 = vpack.c.b16 %v2295, %v2279
    %v2888 = vpack.c.b16 %v2296, %v2280
    %v2889 = vpack.c.b16 %v2297, %v2281
    %v2890 = vpack.c.b16 %v2298, %v2282
    %v2891 = vpack.c.b16 %v2299, %v2283
    %v2892 = vpack.c.b16 %v2300, %v2284
    %v2893 = vpack.c.b16 %v2301, %v2285
    %v2894 = vpack.c.b16 %v2302, %v2286
    %v2895 = vpack.c.b16 %v2303, %v2287
    %v2896 = vpack.c.b16 %v2304, %v2288
    %v2897 = vpack.c.b16 %v2305, %v2289
    %v2898 = vpack.c.b16 %v2306, %v2290
    %v2899 = vpack.c.b16 %v2307, %v2291
    %v2900 = vpack.c.b16 %v2308, %v2292
    %v2901 = vpack.c.b16 %v2325, %v2309
    %v2902 = vpack.c.b16 %v2326, %v2310
    %v2903 = vpack.c.b16 %v2327, %v2311
    %v2904 = vpack.c.b16 %v2328, %v2312
    %v2905 = vpack.c.b16 %v2329, %v2313
    %v2906 = vpack.c.b16 %v2330, %v2314
    %v2907 = vpack.c.b16 %v2331, %v2315
    %v2908 = vpack.c.b16 %v2332, %v2316
    %v2909 = vpack.c.b16 %v2333, %v2317
    %v2910 = vpack.c.b16 %v2334, %v2318
    %v2911 = vpack.c.b16 %v2335, %v2319
    %v2912 = vpack.c.b16 %v2336, %v2320
    %v2913 = vpack.c.b16 %v2337, %v2321
    %v2914 = vpack.c.b16 %v2338, %v2322
    %v2915 = vpack.c.b16 %v2339, %v2323
    %v2916 = vpack.c.b16 %v2340, %v2324
    %v2917 = vpack.c.b16 %v2357, %v2341
    %v2918 = vpack.c.b16 %v2358, %v2342
    %v2919 = vpack.c.b16 %v2359, %v2343
    %v2920 = vpack.c.b16 %v2360, %v2344
    %v2921 = vpack.c.b16 %v2361, %v2345
    %v2922 = vpack.c.b16 %v2362, %v2346
    %v2923 = vpack.c.b16 %v2363, %v2347
    %v2924 = vpack.c.b16 %v2364, %v2348
    %v2925 = vpack.c.b16 %v2365, %v2349
    %v2926 = vpack.c.b16 %v2366, %v2350
    %v2927 = vpack.c.b16 %v2367, %v2351
    %v2928 = vpack.c.b16 %v2368, %v2352
    %v2929 = vpack.c.b16 %v2369, %v2353
    %v2930 = vpack.c.b16 %v2370, %v2354
    %v2931 = vpack.c.b16 %v2371, %v2355
    %v2932 = vpack.c.b16 %v2372, %v2356
    %v2933 = vpack.c.b16 %v2389, %v2373
    %v2934 = vpack.c.b16 %v2390, %v2374
    %v2935 = vpack.c.b16 %v2391, %v2375
    %v2936 = vpack.c.b16 %v2392, %v2376
    %v2937 = vpack.c.b16 %v2393, %v2377
    %v2938 = vpack.c.b16 %v2394, %v2378
    %v2939 = vpack.c.b16 %v2395, %v2379
    %v2940 = vpack.c.b16 %v2396, %v2380
    %v2941 = vpack.c.b16 %v2397, %v2381
    %v2942 = vpack.c.b16 %v2398, %v2382
    %v2943 = vpack.c.b16 %v2399, %v2383
    %v2944 = vpack.c.b16 %v2400, %v2384
    %v2945 = vpack.c.b16 %v2401, %v2385
    %v2946 = vpack.c.b16 %v2402, %v2386
    %v2947 = vpack.c.b16 %v2403, %v2387
    %v2948 = vpack.c.b16 %v2404, %v2388
    %v2949 = vpack.c.b16 %v2421, %v2405
    %v2950 = vpack.c.b16 %v2422, %v2406
    %v2951 = vpack.c.b16 %v2423, %v2407
    %v2952 = vpack.c.b16 %v2424, %v2408
    %v2953 = vpack.c.b16 %v2425, %v2409
    %v2954 = vpack.c.b16 %v2426, %v2410
    %v2955 = vpack.c.b16 %v2427, %v2411
    %v2956 = vpack.c.b16 %v2428, %v2412
    %v2957 = vpack.c.b16 %v2429, %v2413
    %v2958 = vpack.c.b16 %v2430, %v2414
    %v2959 = vpack.c.b16 %v2431, %v2415
    %v2960 = vpack.c.b16 %v2432, %v2416
    %v2961 = vpack.c.b16 %v2433, %v2417
    %v2962 = vpack.c.b16 %v2434, %v2418
    %v2963 = vpack.c.b16 %v2435, %v2419
    %v2964 = vpack.c.b16 %v2436, %v2420
    %v2965 = vpack.c.b16 %v2453, %v2437
    %v2966 = vpack.c.b16 %v2454, %v2438
    %v2967 = vpack.c.b16 %v2455, %v2439
    %v2968 = vpack.c.b16 %v2456, %v2440
    %v2969 = vpack.c.b16 %v2457, %v2441
    %v2970 = vpack.c.b16 %v2458, %v2442
    %v2971 = vpack.c.b16 %v2459, %v2443
    %v2972 = vpack.c.b16 %v2460, %v2444
    %v2973 = vpack.c.b16 %v2461, %v2445
    %v2974 = vpack.c.b16 %v2462, %v2446
    %v2975 = vpack.c.b16 %v2463, %v2447
    %v2976 = vpack.c.b16 %v2464, %v2448
    %v2977 = vpack.c.b16 %v2465, %v2449
    %v2978 = vpack.c.b16 %v2466, %v2450
    %v2979 = vpack.c.b16 %v2467, %v2451
    %v2980 = vpack.c.b16 %v2468, %v2452
    %3493 = vmatprep.subr.bf16.mxu0 %v2582
    %3494 = vmatpush1.bf16.msra.mxu0 %v2581
    %3495 = vmatprep.subr.bf16.mxu0 %v2566
    %3496 = vmatpush1.bf16.msra.mxu0 %v2565
    %3497 = vmatprep.subr.bf16.mxu0 %v2550
    %3498 = vmatpush1.bf16.msra.mxu0 %v2549
    %3499 = vmatprep.subr.bf16.mxu0 %v2534
    %3500 = vmatpush1.bf16.msra.mxu0 %v2533
    %3501 = vmatprep.subr.bf16.mxu0 %v2518
    %3502 = vmatpush1.bf16.msra.mxu0 %v2517
    %3503 = vmatprep.subr.bf16.mxu0 %v2502
    %3504 = vmatpush1.bf16.msra.mxu0 %v2501
    %3505 = vmatprep.subr.bf16.mxu0 %v2486
    %3506 = vmatpush1.bf16.msra.mxu0 %v2485
    %3507 = vmatprep.subr.bf16.mxu0 %v2470
    %3508 = vmatpush1.bf16.msra.mxu0 %v2469
    %3509 = vmatprep.subr.bf16.mxu0 %v2710
    %3510 = vmatpush2.bf16.msra.mxu0 %v2709
    %3511 = vmatprep.subr.bf16.mxu0 %v2694
    %3512 = vmatpush2.bf16.msra.mxu0 %v2693
    %3513 = vmatprep.subr.bf16.mxu0 %v2678
    %3514 = vmatpush2.bf16.msra.mxu0 %v2677
    %3515 = vmatprep.subr.bf16.mxu0 %v2662
    %3516 = vmatpush2.bf16.msra.mxu0 %v2661
    %3517 = vmatprep.subr.bf16.mxu0 %v2646
    %3518 = vmatpush2.bf16.msra.mxu0 %v2645
    %3519 = vmatprep.subr.bf16.mxu0 %v2630
    %3520 = vmatpush2.bf16.msra.mxu0 %v2629
    %3521 = vmatprep.subr.bf16.mxu0 %v2614
    %3522 = vmatpush2.bf16.msra.mxu0 %v2613
    %3523 = vmatprep.subr.bf16.mxu0 %v2598
    %3524 = vmatpush2.bf16.msra.mxu0 %v2597
    %3525 = vmatprep.mubr.bf16.mxu0 %v334
    %3526 = vmatmul.mubr.bf16.gmra.mxu0 %v333
    %v3527 = vpop.f32.mrf.mxu0
    %v3528 = vadd.f32 %v856, %v3527
    %v3529 = vpop.f32.mrf.mxu0
    %v3530 = vadd.f32 %v860, %v3529
    %v3531 = vpop.f32.mrf.mxu0
    %v3532 = vpop.f32.mrf.mxu0
    %3533 = vdwg.mxu0
    %3534 = vmatprep.subr.bf16.mxu0 %v2838
    %3535 = vmatpush1.bf16.msra.mxu0 %v2837
    %3536 = vmatprep.subr.bf16.mxu0 %v2822
    %3537 = vmatpush1.bf16.msra.mxu0 %v2821
    %3538 = vmatprep.subr.bf16.mxu0 %v2806
    %3539 = vmatpush1.bf16.msra.mxu0 %v2805
    %3540 = vmatprep.subr.bf16.mxu0 %v2790
    %3541 = vmatpush1.bf16.msra.mxu0 %v2789
    %3542 = vmatprep.subr.bf16.mxu0 %v2774
    %3543 = vmatpush1.bf16.msra.mxu0 %v2773
    %3544 = vmatprep.subr.bf16.mxu0 %v2758
    %3545 = vmatpush1.bf16.msra.mxu0 %v2757
    %3546 = vmatprep.subr.bf16.mxu0 %v2742
    %3547 = vmatpush1.bf16.msra.mxu0 %v2741
    %3548 = vmatprep.subr.bf16.mxu0 %v2726
    %3549 = vmatpush1.bf16.msra.mxu0 %v2725
    %3550 = vmatprep.subr.bf16.mxu0 %v2966
    %3551 = vmatpush2.bf16.msra.mxu0 %v2965
    %3552 = vmatprep.subr.bf16.mxu0 %v2950
    %3553 = vmatpush2.bf16.msra.mxu0 %v2949
    %3554 = vmatprep.subr.bf16.mxu0 %v2934
    %3555 = vmatpush2.bf16.msra.mxu0 %v2933
    %3556 = vmatprep.subr.bf16.mxu0 %v2918
    %3557 = vmatpush2.bf16.msra.mxu0 %v2917
    %3558 = vmatprep.subr.bf16.mxu0 %v2902
    %3559 = vmatpush2.bf16.msra.mxu0 %v2901
    %3560 = vmatprep.subr.bf16.mxu0 %v2886
    %3561 = vmatpush2.bf16.msra.mxu0 %v2885
    %3562 = vmatprep.subr.bf16.mxu0 %v2870
    %3563 = vmatpush2.bf16.msra.mxu0 %v2869
    %3564 = vmatprep.subr.bf16.mxu0 %v2854
    %3565 = vmatpush2.bf16.msra.mxu0 %v2853
    %3566 = vmatprep.mubr.bf16.mxu0 %v336
    %3567 = vmatmul.mubr.bf16.gmra.mxu0 %v335
    %v3568 = vpop.f32.mrf.mxu0
    %v3569 = vadd.f32 %v3528, %v3568
    %v3570 = vpop.f32.mrf.mxu0
    %v3571 = vadd.f32 %v3530, %v3570
    %v3572 = vpop.f32.mrf.mxu0
    %v3573 = vpop.f32.mrf.mxu0
    %3574 = vdwg.mxu0
    %3575 = vmatprep.subr.bf16.mxu0 %v2584
    %3576 = vmatpush1.bf16.msra.mxu0 %v2583
    %3577 = vmatprep.subr.bf16.mxu0 %v2568
    %3578 = vmatpush1.bf16.msra.mxu0 %v2567
    %3579 = vmatprep.subr.bf16.mxu0 %v2552
    %3580 = vmatpush1.bf16.msra.mxu0 %v2551
    %3581 = vmatprep.subr.bf16.mxu0 %v2536
    %3582 = vmatpush1.bf16.msra.mxu0 %v2535
    %3583 = vmatprep.subr.bf16.mxu0 %v2520
    %3584 = vmatpush1.bf16.msra.mxu0 %v2519
    %3585 = vmatprep.subr.bf16.mxu0 %v2504
    %3586 = vmatpush1.bf16.msra.mxu0 %v2503
    %3587 = vmatprep.subr.bf16.mxu0 %v2488
    %3588 = vmatpush1.bf16.msra.mxu0 %v2487
    %3589 = vmatprep.subr.bf16.mxu0 %v2472
    %3590 = vmatpush1.bf16.msra.mxu0 %v2471
    %3591 = vmatprep.subr.bf16.mxu0 %v2712
    %3592 = vmatpush2.bf16.msra.mxu0 %v2711
    %3593 = vmatprep.subr.bf16.mxu0 %v2696
    %3594 = vmatpush2.bf16.msra.mxu0 %v2695
    %3595 = vmatprep.subr.bf16.mxu0 %v2680
    %3596 = vmatpush2.bf16.msra.mxu0 %v2679
    %3597 = vmatprep.subr.bf16.mxu0 %v2664
    %3598 = vmatpush2.bf16.msra.mxu0 %v2663
    %3599 = vmatprep.subr.bf16.mxu0 %v2648
    %3600 = vmatpush2.bf16.msra.mxu0 %v2647
    %3601 = vmatprep.subr.bf16.mxu0 %v2632
    %3602 = vmatpush2.bf16.msra.mxu0 %v2631
    %3603 = vmatprep.subr.bf16.mxu0 %v2616
    %3604 = vmatpush2.bf16.msra.mxu0 %v2615
    %3605 = vmatprep.subr.bf16.mxu0 %v2600
    %3606 = vmatpush2.bf16.msra.mxu0 %v2599
    %3607 = vmatprep.mubr.bf16.mxu0 %v334
    %3608 = vmatmul.mubr.bf16.gmra.mxu0 %v333
    %v3609 = vpop.f32.mrf.mxu0
    %v3610 = vadd.f32 %v864, %v3609
    %v3611 = vpop.f32.mrf.mxu0
    %v3612 = vadd.f32 %v868, %v3611
    %v3613 = vpop.f32.mrf.mxu0
    %v3614 = vpop.f32.mrf.mxu0
    %3615 = vdwg.mxu0
    %3616 = vmatprep.subr.bf16.mxu0 %v2840
    %3617 = vmatpush1.bf16.msra.mxu0 %v2839
    %3618 = vmatprep.subr.bf16.mxu0 %v2824
    %3619 = vmatpush1.bf16.msra.mxu0 %v2823
    %3620 = vmatprep.subr.bf16.mxu0 %v2808
    %3621 = vmatpush1.bf16.msra.mxu0 %v2807
    %3622 = vmatprep.subr.bf16.mxu0 %v2792
    %3623 = vmatpush1.bf16.msra.mxu0 %v2791
    %3624 = vmatprep.subr.bf16.mxu0 %v2776
    %3625 = vmatpush1.bf16.msra.mxu0 %v2775
    %3626 = vmatprep.subr.bf16.mxu0 %v2760
    %3627 = vmatpush1.bf16.msra.mxu0 %v2759
    %3628 = vmatprep.subr.bf16.mxu0 %v2744
    %3629 = vmatpush1.bf16.msra.mxu0 %v2743
    %3630 = vmatprep.subr.bf16.mxu0 %v2728
    %3631 = vmatpush1.bf16.msra.mxu0 %v2727
    %3632 = vmatprep.subr.bf16.mxu0 %v2968
    %3633 = vmatpush2.bf16.msra.mxu0 %v2967
    %3634 = vmatprep.subr.bf16.mxu0 %v2952
    %3635 = vmatpush2.bf16.msra.mxu0 %v2951
    %3636 = vmatprep.subr.bf16.mxu0 %v2936
    %3637 = vmatpush2.bf16.msra.mxu0 %v2935
    %3638 = vmatprep.subr.bf16.mxu0 %v2920
    %3639 = vmatpush2.bf16.msra.mxu0 %v2919
    %3640 = vmatprep.subr.bf16.mxu0 %v2904
    %3641 = vmatpush2.bf16.msra.mxu0 %v2903
    %3642 = vmatprep.subr.bf16.mxu0 %v2888
    %3643 = vmatpush2.bf16.msra.mxu0 %v2887
    %3644 = vmatprep.subr.bf16.mxu0 %v2872
    %3645 = vmatpush2.bf16.msra.mxu0 %v2871
    %3646 = vmatprep.subr.bf16.mxu0 %v2856
    %3647 = vmatpush2.bf16.msra.mxu0 %v2855
    %3648 = vmatprep.mubr.bf16.mxu0 %v336
    %3649 = vmatmul.mubr.bf16.gmra.mxu0 %v335
    %v3650 = vpop.f32.mrf.mxu0
    %v3651 = vadd.f32 %v3610, %v3650
    %v3652 = vpop.f32.mrf.mxu0
    %v3653 = vadd.f32 %v3612, %v3652
    %v3654 = vpop.f32.mrf.mxu0
    %v3655 = vpop.f32.mrf.mxu0
    %3656 = vdwg.mxu0
    %3657 = vmatprep.subr.bf16.mxu0 %v2586
    %3658 = vmatpush1.bf16.msra.mxu0 %v2585
    %3659 = vmatprep.subr.bf16.mxu0 %v2570
    %3660 = vmatpush1.bf16.msra.mxu0 %v2569
    %3661 = vmatprep.subr.bf16.mxu0 %v2554
    %3662 = vmatpush1.bf16.msra.mxu0 %v2553
    %3663 = vmatprep.subr.bf16.mxu0 %v2538
    %3664 = vmatpush1.bf16.msra.mxu0 %v2537
    %3665 = vmatprep.subr.bf16.mxu0 %v2522
    %3666 = vmatpush1.bf16.msra.mxu0 %v2521
    %3667 = vmatprep.subr.bf16.mxu0 %v2506
    %3668 = vmatpush1.bf16.msra.mxu0 %v2505
    %3669 = vmatprep.subr.bf16.mxu0 %v2490
    %3670 = vmatpush1.bf16.msra.mxu0 %v2489
    %3671 = vmatprep.subr.bf16.mxu0 %v2474
    %3672 = vmatpush1.bf16.msra.mxu0 %v2473
    %3673 = vmatprep.subr.bf16.mxu0 %v2714
    %3674 = vmatpush2.bf16.msra.mxu0 %v2713
    %3675 = vmatprep.subr.bf16.mxu0 %v2698
    %3676 = vmatpush2.bf16.msra.mxu0 %v2697
    %3677 = vmatprep.subr.bf16.mxu0 %v2682
    %3678 = vmatpush2.bf16.msra.mxu0 %v2681
    %3679 = vmatprep.subr.bf16.mxu0 %v2666
    %3680 = vmatpush2.bf16.msra.mxu0 %v2665
    %3681 = vmatprep.subr.bf16.mxu0 %v2650
    %3682 = vmatpush2.bf16.msra.mxu0 %v2649
    %3683 = vmatprep.subr.bf16.mxu0 %v2634
    %3684 = vmatpush2.bf16.msra.mxu0 %v2633
    %3685 = vmatprep.subr.bf16.mxu0 %v2618
    %3686 = vmatpush2.bf16.msra.mxu0 %v2617
    %3687 = vmatprep.subr.bf16.mxu0 %v2602
    %3688 = vmatpush2.bf16.msra.mxu0 %v2601
    %3689 = vmatprep.mubr.bf16.mxu0 %v334
    %3690 = vmatmul.mubr.bf16.gmra.mxu0 %v333
    %v3691 = vpop.f32.mrf.mxu0
    %v3692 = vadd.f32 %v872, %v3691
    %v3693 = vpop.f32.mrf.mxu0
    %v3694 = vadd.f32 %v876, %v3693
    %v3695 = vpop.f32.mrf.mxu0
    %v3696 = vpop.f32.mrf.mxu0
    %3697 = vdwg.mxu0
    %3698 = vmatprep.subr.bf16.mxu0 %v2842
    %3699 = vmatpush1.bf16.msra.mxu0 %v2841
    %3700 = vmatprep.subr.bf16.mxu0 %v2826
    %3701 = vmatpush1.bf16.msra.mxu0 %v2825
    %3702 = vmatprep.subr.bf16.mxu0 %v2810
    %3703 = vmatpush1.bf16.msra.mxu0 %v2809
    %3704 = vmatprep.subr.bf16.mxu0 %v2794
    %3705 = vmatpush1.bf16.msra.mxu0 %v2793
    %3706 = vmatprep.subr.bf16.mxu0 %v2778
    %3707 = vmatpush1.bf16.msra.mxu0 %v2777
    %3708 = vmatprep.subr.bf16.mxu0 %v2762
    %3709 = vmatpush1.bf16.msra.mxu0 %v2761
    %3710 = vmatprep.subr.bf16.mxu0 %v2746
    %3711 = vmatpush1.bf16.msra.mxu0 %v2745
    %3712 = vmatprep.subr.bf16.mxu0 %v2730
    %3713 = vmatpush1.bf16.msra.mxu0 %v2729
    %3714 = vmatprep.subr.bf16.mxu0 %v2970
    %3715 = vmatpush2.bf16.msra.mxu0 %v2969
    %3716 = vmatprep.subr.bf16.mxu0 %v2954
    %3717 = vmatpush2.bf16.msra.mxu0 %v2953
    %3718 = vmatprep.subr.bf16.mxu0 %v2938
    %3719 = vmatpush2.bf16.msra.mxu0 %v2937
    %3720 = vmatprep.subr.bf16.mxu0 %v2922
    %3721 = vmatpush2.bf16.msra.mxu0 %v2921
    %3722 = vmatprep.subr.bf16.mxu0 %v2906
    %3723 = vmatpush2.bf16.msra.mxu0 %v2905
    %3724 = vmatprep.subr.bf16.mxu0 %v2890
    %3725 = vmatpush2.bf16.msra.mxu0 %v2889
    %3726 = vmatprep.subr.bf16.mxu0 %v2874
    %3727 = vmatpush2.bf16.msra.mxu0 %v2873
    %3728 = vmatprep.subr.bf16.mxu0 %v2858
    %3729 = vmatpush2.bf16.msra.mxu0 %v2857
    %3730 = vmatprep.mubr.bf16.mxu0 %v336
    %3731 = vmatmul.mubr.bf16.gmra.mxu0 %v335
    %v3732 = vpop.f32.mrf.mxu0
    %v3733 = vadd.f32 %v3692, %v3732
    %v3734 = vpop.f32.mrf.mxu0
    %v3735 = vadd.f32 %v3694, %v3734
    %v3736 = vpop.f32.mrf.mxu0
    %v3737 = vpop.f32.mrf.mxu0
    %3738 = vdwg.mxu0
    %3739 = vmatprep.subr.bf16.mxu0 %v2588
    %3740 = vmatpush1.bf16.msra.mxu0 %v2587
    %3741 = vmatprep.subr.bf16.mxu0 %v2572
    %3742 = vmatpush1.bf16.msra.mxu0 %v2571
    %3743 = vmatprep.subr.bf16.mxu0 %v2556
    %3744 = vmatpush1.bf16.msra.mxu0 %v2555
    %3745 = vmatprep.subr.bf16.mxu0 %v2540
    %3746 = vmatpush1.bf16.msra.mxu0 %v2539
    %3747 = vmatprep.subr.bf16.mxu0 %v2524
    %3748 = vmatpush1.bf16.msra.mxu0 %v2523
    %3749 = vmatprep.subr.bf16.mxu0 %v2508
    %3750 = vmatpush1.bf16.msra.mxu0 %v2507
    %3751 = vmatprep.subr.bf16.mxu0 %v2492
    %3752 = vmatpush1.bf16.msra.mxu0 %v2491
    %3753 = vmatprep.subr.bf16.mxu0 %v2476
    %3754 = vmatpush1.bf16.msra.mxu0 %v2475
    %3755 = vmatprep.subr.bf16.mxu0 %v2716
    %3756 = vmatpush2.bf16.msra.mxu0 %v2715
    %3757 = vmatprep.subr.bf16.mxu0 %v2700
    %3758 = vmatpush2.bf16.msra.mxu0 %v2699
    %3759 = vmatprep.subr.bf16.mxu0 %v2684
    %3760 = vmatpush2.bf16.msra.mxu0 %v2683
    %3761 = vmatprep.subr.bf16.mxu0 %v2668
    %3762 = vmatpush2.bf16.msra.mxu0 %v2667
    %3763 = vmatprep.subr.bf16.mxu0 %v2652
    %3764 = vmatpush2.bf16.msra.mxu0 %v2651
    %3765 = vmatprep.subr.bf16.mxu0 %v2636
    %3766 = vmatpush2.bf16.msra.mxu0 %v2635
    %3767 = vmatprep.subr.bf16.mxu0 %v2620
    %3768 = vmatpush2.bf16.msra.mxu0 %v2619
    %3769 = vmatprep.subr.bf16.mxu0 %v2604
    %3770 = vmatpush2.bf16.msra.mxu0 %v2603
    %3771 = vmatprep.mubr.bf16.mxu0 %v334
    %3772 = vmatmul.mubr.bf16.gmra.mxu0 %v333
    %v3773 = vpop.f32.mrf.mxu0
    %v3774 = vadd.f32 %v880, %v3773
    %v3775 = vpop.f32.mrf.mxu0
    %v3776 = vadd.f32 %v884, %v3775
    %v3777 = vpop.f32.mrf.mxu0
    %v3778 = vpop.f32.mrf.mxu0
    %3779 = vdwg.mxu0
    %3780 = vmatprep.subr.bf16.mxu0 %v2844
    %3781 = vmatpush1.bf16.msra.mxu0 %v2843
    %3782 = vmatprep.subr.bf16.mxu0 %v2828
    %3783 = vmatpush1.bf16.msra.mxu0 %v2827
    %3784 = vmatprep.subr.bf16.mxu0 %v2812
    %3785 = vmatpush1.bf16.msra.mxu0 %v2811
    %3786 = vmatprep.subr.bf16.mxu0 %v2796
    %3787 = vmatpush1.bf16.msra.mxu0 %v2795
    %3788 = vmatprep.subr.bf16.mxu0 %v2780
    %3789 = vmatpush1.bf16.msra.mxu0 %v2779
    %3790 = vmatprep.subr.bf16.mxu0 %v2764
    %3791 = vmatpush1.bf16.msra.mxu0 %v2763
    %3792 = vmatprep.subr.bf16.mxu0 %v2748
    %3793 = vmatpush1.bf16.msra.mxu0 %v2747
    %3794 = vmatprep.subr.bf16.mxu0 %v2732
    %3795 = vmatpush1.bf16.msra.mxu0 %v2731
    %3796 = vmatprep.subr.bf16.mxu0 %v2972
    %3797 = vmatpush2.bf16.msra.mxu0 %v2971
    %3798 = vmatprep.subr.bf16.mxu0 %v2956
    %3799 = vmatpush2.bf16.msra.mxu0 %v2955
    %3800 = vmatprep.subr.bf16.mxu0 %v2940
    %3801 = vmatpush2.bf16.msra.mxu0 %v2939
    %3802 = vmatprep.subr.bf16.mxu0 %v2924
    %3803 = vmatpush2.bf16.msra.mxu0 %v2923
    %3804 = vmatprep.subr.bf16.mxu0 %v2908
    %3805 = vmatpush2.bf16.msra.mxu0 %v2907
    %3806 = vmatprep.subr.bf16.mxu0 %v2892
    %3807 = vmatpush2.bf16.msra.mxu0 %v2891
    %3808 = vmatprep.subr.bf16.mxu0 %v2876
    %3809 = vmatpush2.bf16.msra.mxu0 %v2875
    %3810 = vmatprep.subr.bf16.mxu0 %v2860
    %3811 = vmatpush2.bf16.msra.mxu0 %v2859
    %3812 = vmatprep.mubr.bf16.mxu0 %v336
    %3813 = vmatmul.mubr.bf16.gmra.mxu0 %v335
    %v3814 = vpop.f32.mrf.mxu0
    %v3815 = vadd.f32 %v3774, %v3814
    %v3816 = vpop.f32.mrf.mxu0
    %v3817 = vadd.f32 %v3776, %v3816
    %v3818 = vpop.f32.mrf.mxu0
    %v3819 = vpop.f32.mrf.mxu0
    %3820 = vdwg.mxu0
    %3821 = vmatprep.subr.bf16.mxu0 %v2590
    %3822 = vmatpush1.bf16.msra.mxu0 %v2589
    %3823 = vmatprep.subr.bf16.mxu0 %v2574
    %3824 = vmatpush1.bf16.msra.mxu0 %v2573
    %3825 = vmatprep.subr.bf16.mxu0 %v2558
    %3826 = vmatpush1.bf16.msra.mxu0 %v2557
    %3827 = vmatprep.subr.bf16.mxu0 %v2542
    %3828 = vmatpush1.bf16.msra.mxu0 %v2541
    %3829 = vmatprep.subr.bf16.mxu0 %v2526
    %3830 = vmatpush1.bf16.msra.mxu0 %v2525
    %3831 = vmatprep.subr.bf16.mxu0 %v2510
    %3832 = vmatpush1.bf16.msra.mxu0 %v2509
    %3833 = vmatprep.subr.bf16.mxu0 %v2494
    %3834 = vmatpush1.bf16.msra.mxu0 %v2493
    %3835 = vmatprep.subr.bf16.mxu0 %v2478
    %3836 = vmatpush1.bf16.msra.mxu0 %v2477
    %3837 = vmatprep.subr.bf16.mxu0 %v2718
    %3838 = vmatpush2.bf16.msra.mxu0 %v2717
    %3839 = vmatprep.subr.bf16.mxu0 %v2702
    %3840 = vmatpush2.bf16.msra.mxu0 %v2701
    %3841 = vmatprep.subr.bf16.mxu0 %v2686
    %3842 = vmatpush2.bf16.msra.mxu0 %v2685
    %3843 = vmatprep.subr.bf16.mxu0 %v2670
    %3844 = vmatpush2.bf16.msra.mxu0 %v2669
    %3845 = vmatprep.subr.bf16.mxu0 %v2654
    %3846 = vmatpush2.bf16.msra.mxu0 %v2653
    %3847 = vmatprep.subr.bf16.mxu0 %v2638
    %3848 = vmatpush2.bf16.msra.mxu0 %v2637
    %3849 = vmatprep.subr.bf16.mxu0 %v2622
    %3850 = vmatpush2.bf16.msra.mxu0 %v2621
    %3851 = vmatprep.subr.bf16.mxu0 %v2606
    %3852 = vmatpush2.bf16.msra.mxu0 %v2605
    %3853 = vmatprep.mubr.bf16.mxu0 %v334
    %3854 = vmatmul.mubr.bf16.gmra.mxu0 %v333
    %v3855 = vpop.f32.mrf.mxu0
    %v3856 = vadd.f32 %v888, %v3855
    %v3857 = vpop.f32.mrf.mxu0
    %v3858 = vadd.f32 %v892, %v3857
    %v3859 = vpop.f32.mrf.mxu0
    %v3860 = vpop.f32.mrf.mxu0
    %3861 = vdwg.mxu0
    %3862 = vmatprep.subr.bf16.mxu0 %v2846
    %3863 = vmatpush1.bf16.msra.mxu0 %v2845
    %3864 = vmatprep.subr.bf16.mxu0 %v2830
    %3865 = vmatpush1.bf16.msra.mxu0 %v2829
    %3866 = vmatprep.subr.bf16.mxu0 %v2814
    %3867 = vmatpush1.bf16.msra.mxu0 %v2813
    %3868 = vmatprep.subr.bf16.mxu0 %v2798
    %3869 = vmatpush1.bf16.msra.mxu0 %v2797
    %3870 = vmatprep.subr.bf16.mxu0 %v2782
    %3871 = vmatpush1.bf16.msra.mxu0 %v2781
    %3872 = vmatprep.subr.bf16.mxu0 %v2766
    %3873 = vmatpush1.bf16.msra.mxu0 %v2765
    %3874 = vmatprep.subr.bf16.mxu0 %v2750
    %3875 = vmatpush1.bf16.msra.mxu0 %v2749
    %3876 = vmatprep.subr.bf16.mxu0 %v2734
    %3877 = vmatpush1.bf16.msra.mxu0 %v2733
    %3878 = vmatprep.subr.bf16.mxu0 %v2974
    %3879 = vmatpush2.bf16.msra.mxu0 %v2973
    %3880 = vmatprep.subr.bf16.mxu0 %v2958
    %3881 = vmatpush2.bf16.msra.mxu0 %v2957
    %3882 = vmatprep.subr.bf16.mxu0 %v2942
    %3883 = vmatpush2.bf16.msra.mxu0 %v2941
    %3884 = vmatprep.subr.bf16.mxu0 %v2926
    %3885 = vmatpush2.bf16.msra.mxu0 %v2925
    %3886 = vmatprep.subr.bf16.mxu0 %v2910
    %3887 = vmatpush2.bf16.msra.mxu0 %v2909
    %3888 = vmatprep.subr.bf16.mxu0 %v2894
    %3889 = vmatpush2.bf16.msra.mxu0 %v2893
    %3890 = vmatprep.subr.bf16.mxu0 %v2878
    %3891 = vmatpush2.bf16.msra.mxu0 %v2877
    %3892 = vmatprep.subr.bf16.mxu0 %v2862
    %3893 = vmatpush2.bf16.msra.mxu0 %v2861
    %3894 = vmatprep.mubr.bf16.mxu0 %v336
    %3895 = vmatmul.mubr.bf16.gmra.mxu0 %v335
    %v3896 = vpop.f32.mrf.mxu0
    %v3897 = vadd.f32 %v3856, %v3896
    %v3898 = vpop.f32.mrf.mxu0
    %v3899 = vadd.f32 %v3858, %v3898
    %v3900 = vpop.f32.mrf.mxu0
    %v3901 = vpop.f32.mrf.mxu0
    %3902 = vdwg.mxu0
    %3903 = vmatprep.subr.bf16.mxu0 %v2592
    %3904 = vmatpush1.bf16.msra.mxu0 %v2591
    %3905 = vmatprep.subr.bf16.mxu0 %v2576
    %3906 = vmatpush1.bf16.msra.mxu0 %v2575
    %3907 = vmatprep.subr.bf16.mxu0 %v2560
    %3908 = vmatpush1.bf16.msra.mxu0 %v2559
    %3909 = vmatprep.subr.bf16.mxu0 %v2544
    %3910 = vmatpush1.bf16.msra.mxu0 %v2543
    %3911 = vmatprep.subr.bf16.mxu0 %v2528
    %3912 = vmatpush1.bf16.msra.mxu0 %v2527
    %3913 = vmatprep.subr.bf16.mxu0 %v2512
    %3914 = vmatpush1.bf16.msra.mxu0 %v2511
    %3915 = vmatprep.subr.bf16.mxu0 %v2496
    %3916 = vmatpush1.bf16.msra.mxu0 %v2495
    %3917 = vmatprep.subr.bf16.mxu0 %v2480
    %3918 = vmatpush1.bf16.msra.mxu0 %v2479
    %3919 = vmatprep.subr.bf16.mxu0 %v2720
    %3920 = vmatpush2.bf16.msra.mxu0 %v2719
    %3921 = vmatprep.subr.bf16.mxu0 %v2704
    %3922 = vmatpush2.bf16.msra.mxu0 %v2703
    %3923 = vmatprep.subr.bf16.mxu0 %v2688
    %3924 = vmatpush2.bf16.msra.mxu0 %v2687
    %3925 = vmatprep.subr.bf16.mxu0 %v2672
    %3926 = vmatpush2.bf16.msra.mxu0 %v2671
    %3927 = vmatprep.subr.bf16.mxu0 %v2656
    %3928 = vmatpush2.bf16.msra.mxu0 %v2655
    %3929 = vmatprep.subr.bf16.mxu0 %v2640
    %3930 = vmatpush2.bf16.msra.mxu0 %v2639
    %3931 = vmatprep.subr.bf16.mxu0 %v2624
    %3932 = vmatpush2.bf16.msra.mxu0 %v2623
    %3933 = vmatprep.subr.bf16.mxu0 %v2608
    %3934 = vmatpush2.bf16.msra.mxu0 %v2607
    %3935 = vmatprep.mubr.bf16.mxu0 %v334
    %3936 = vmatmul.mubr.bf16.gmra.mxu0 %v333
    %v3937 = vpop.f32.mrf.mxu0
    %v3938 = vadd.f32 %v896, %v3937
    %v3939 = vpop.f32.mrf.mxu0
    %v3940 = vadd.f32 %v900, %v3939
    %v3941 = vpop.f32.mrf.mxu0
    %v3942 = vpop.f32.mrf.mxu0
    %3943 = vdwg.mxu0
    %3944 = vmatprep.subr.bf16.mxu0 %v2848
    %3945 = vmatpush1.bf16.msra.mxu0 %v2847
    %3946 = vmatprep.subr.bf16.mxu0 %v2832
    %3947 = vmatpush1.bf16.msra.mxu0 %v2831
    %3948 = vmatprep.subr.bf16.mxu0 %v2816
    %3949 = vmatpush1.bf16.msra.mxu0 %v2815
    %3950 = vmatprep.subr.bf16.mxu0 %v2800
    %3951 = vmatpush1.bf16.msra.mxu0 %v2799
    %3952 = vmatprep.subr.bf16.mxu0 %v2784
    %3953 = vmatpush1.bf16.msra.mxu0 %v2783
    %3954 = vmatprep.subr.bf16.mxu0 %v2768
    %3955 = vmatpush1.bf16.msra.mxu0 %v2767
    %3956 = vmatprep.subr.bf16.mxu0 %v2752
    %3957 = vmatpush1.bf16.msra.mxu0 %v2751
    %3958 = vmatprep.subr.bf16.mxu0 %v2736
    %3959 = vmatpush1.bf16.msra.mxu0 %v2735
    %3960 = vmatprep.subr.bf16.mxu0 %v2976
    %3961 = vmatpush2.bf16.msra.mxu0 %v2975
    %3962 = vmatprep.subr.bf16.mxu0 %v2960
    %3963 = vmatpush2.bf16.msra.mxu0 %v2959
    %3964 = vmatprep.subr.bf16.mxu0 %v2944
    %3965 = vmatpush2.bf16.msra.mxu0 %v2943
    %3966 = vmatprep.subr.bf16.mxu0 %v2928
    %3967 = vmatpush2.bf16.msra.mxu0 %v2927
    %3968 = vmatprep.subr.bf16.mxu0 %v2912
    %3969 = vmatpush2.bf16.msra.mxu0 %v2911
    %3970 = vmatprep.subr.bf16.mxu0 %v2896
    %3971 = vmatpush2.bf16.msra.mxu0 %v2895
    %3972 = vmatprep.subr.bf16.mxu0 %v2880
    %3973 = vmatpush2.bf16.msra.mxu0 %v2879
    %3974 = vmatprep.subr.bf16.mxu0 %v2864
    %3975 = vmatpush2.bf16.msra.mxu0 %v2863
    %3976 = vmatprep.mubr.bf16.mxu0 %v336
    %3977 = vmatmul.mubr.bf16.gmra.mxu0 %v335
    %v3978 = vpop.f32.mrf.mxu0
    %v3979 = vadd.f32 %v3938, %v3978
    %v3980 = vpop.f32.mrf.mxu0
    %v3981 = vadd.f32 %v3940, %v3980
    %v3982 = vpop.f32.mrf.mxu0
    %v3983 = vpop.f32.mrf.mxu0
    %3984 = vdwg.mxu0
    %3985 = vmatprep.subr.bf16.mxu0 %v2594
    %3986 = vmatpush1.bf16.msra.mxu0 %v2593
    %3987 = vmatprep.subr.bf16.mxu0 %v2578
    %3988 = vmatpush1.bf16.msra.mxu0 %v2577
    %3989 = vmatprep.subr.bf16.mxu0 %v2562
    %3990 = vmatpush1.bf16.msra.mxu0 %v2561
    %3991 = vmatprep.subr.bf16.mxu0 %v2546
    %3992 = vmatpush1.bf16.msra.mxu0 %v2545
    %3993 = vmatprep.subr.bf16.mxu0 %v2530
    %3994 = vmatpush1.bf16.msra.mxu0 %v2529
    %3995 = vmatprep.subr.bf16.mxu0 %v2514
    %3996 = vmatpush1.bf16.msra.mxu0 %v2513
    %3997 = vmatprep.subr.bf16.mxu0 %v2498
    %3998 = vmatpush1.bf16.msra.mxu0 %v2497
    %3999 = vmatprep.subr.bf16.mxu0 %v2482
    %4000 = vmatpush1.bf16.msra.mxu0 %v2481
    %4001 = vmatprep.subr.bf16.mxu0 %v2722
    %4002 = vmatpush2.bf16.msra.mxu0 %v2721
    %4003 = vmatprep.subr.bf16.mxu0 %v2706
    %4004 = vmatpush2.bf16.msra.mxu0 %v2705
    %4005 = vmatprep.subr.bf16.mxu0 %v2690
    %4006 = vmatpush2.bf16.msra.mxu0 %v2689
    %4007 = vmatprep.subr.bf16.mxu0 %v2674
    %4008 = vmatpush2.bf16.msra.mxu0 %v2673
    %4009 = vmatprep.subr.bf16.mxu0 %v2658
    %4010 = vmatpush2.bf16.msra.mxu0 %v2657
    %4011 = vmatprep.subr.bf16.mxu0 %v2642
    %4012 = vmatpush2.bf16.msra.mxu0 %v2641
    %4013 = vmatprep.subr.bf16.mxu0 %v2626
    %4014 = vmatpush2.bf16.msra.mxu0 %v2625
    %4015 = vmatprep.subr.bf16.mxu0 %v2610
    %4016 = vmatpush2.bf16.msra.mxu0 %v2609
    %4017 = vmatprep.mubr.bf16.mxu0 %v334
    %4018 = vmatmul.mubr.bf16.gmra.mxu0 %v333
    %v4019 = vpop.f32.mrf.mxu0
    %v4020 = vadd.f32 %v904, %v4019
    %v4021 = vpop.f32.mrf.mxu0
    %v4022 = vadd.f32 %v908, %v4021
    %v4023 = vpop.f32.mrf.mxu0
    %v4024 = vpop.f32.mrf.mxu0
    %4025 = vdwg.mxu0
    %4026 = vmatprep.subr.bf16.mxu0 %v2850
    %4027 = vmatpush1.bf16.msra.mxu0 %v2849
    %4028 = vmatprep.subr.bf16.mxu0 %v2834
    %4029 = vmatpush1.bf16.msra.mxu0 %v2833
    %4030 = vmatprep.subr.bf16.mxu0 %v2818
    %4031 = vmatpush1.bf16.msra.mxu0 %v2817
    %4032 = vmatprep.subr.bf16.mxu0 %v2802
    %4033 = vmatpush1.bf16.msra.mxu0 %v2801
    %4034 = vmatprep.subr.bf16.mxu0 %v2786
    %4035 = vmatpush1.bf16.msra.mxu0 %v2785
    %4036 = vmatprep.subr.bf16.mxu0 %v2770
    %4037 = vmatpush1.bf16.msra.mxu0 %v2769
    %4038 = vmatprep.subr.bf16.mxu0 %v2754
    %4039 = vmatpush1.bf16.msra.mxu0 %v2753
    %4040 = vmatprep.subr.bf16.mxu0 %v2738
    %4041 = vmatpush1.bf16.msra.mxu0 %v2737
    %4042 = vmatprep.subr.bf16.mxu0 %v2978
    %4043 = vmatpush2.bf16.msra.mxu0 %v2977
    %4044 = vmatprep.subr.bf16.mxu0 %v2962
    %4045 = vmatpush2.bf16.msra.mxu0 %v2961
    %4046 = vmatprep.subr.bf16.mxu0 %v2946
    %4047 = vmatpush2.bf16.msra.mxu0 %v2945
    %4048 = vmatprep.subr.bf16.mxu0 %v2930
    %4049 = vmatpush2.bf16.msra.mxu0 %v2929
    %4050 = vmatprep.subr.bf16.mxu0 %v2914
    %4051 = vmatpush2.bf16.msra.mxu0 %v2913
    %4052 = vmatprep.subr.bf16.mxu0 %v2898
    %4053 = vmatpush2.bf16.msra.mxu0 %v2897
    %4054 = vmatprep.subr.bf16.mxu0 %v2882
    %4055 = vmatpush2.bf16.msra.mxu0 %v2881
    %4056 = vmatprep.subr.bf16.mxu0 %v2866
    %4057 = vmatpush2.bf16.msra.mxu0 %v2865
    %4058 = vmatprep.mubr.bf16.mxu0 %v336
    %4059 = vmatmul.mubr.bf16.gmra.mxu0 %v335
    %v4060 = vpop.f32.mrf.mxu0
    %v4061 = vadd.f32 %v4020, %v4060
    %v4062 = vpop.f32.mrf.mxu0
    %v4063 = vadd.f32 %v4022, %v4062
    %v4064 = vpop.f32.mrf.mxu0
    %v4065 = vpop.f32.mrf.mxu0
    %4066 = vdwg.mxu0
    %4067 = vmatprep.subr.bf16.mxu0 %v2596
    %4068 = vmatpush1.bf16.msra.mxu0 %v2595
    %4069 = vmatprep.subr.bf16.mxu0 %v2580
    %4070 = vmatpush1.bf16.msra.mxu0 %v2579
    %4071 = vmatprep.subr.bf16.mxu0 %v2564
    %4072 = vmatpush1.bf16.msra.mxu0 %v2563
    %4073 = vmatprep.subr.bf16.mxu0 %v2548
    %4074 = vmatpush1.bf16.msra.mxu0 %v2547
    %4075 = vmatprep.subr.bf16.mxu0 %v2532
    %4076 = vmatpush1.bf16.msra.mxu0 %v2531
    %4077 = vmatprep.subr.bf16.mxu0 %v2516
    %4078 = vmatpush1.bf16.msra.mxu0 %v2515
    %4079 = vmatprep.subr.bf16.mxu0 %v2500
    %4080 = vmatpush1.bf16.msra.mxu0 %v2499
    %4081 = vmatprep.subr.bf16.mxu0 %v2484
    %4082 = vmatpush1.bf16.msra.mxu0 %v2483
    %4083 = vmatprep.subr.bf16.mxu0 %v2724
    %4084 = vmatpush2.bf16.msra.mxu0 %v2723
    %4085 = vmatprep.subr.bf16.mxu0 %v2708
    %4086 = vmatpush2.bf16.msra.mxu0 %v2707
    %4087 = vmatprep.subr.bf16.mxu0 %v2692
    %4088 = vmatpush2.bf16.msra.mxu0 %v2691
    %4089 = vmatprep.subr.bf16.mxu0 %v2676
    %4090 = vmatpush2.bf16.msra.mxu0 %v2675
    %4091 = vmatprep.subr.bf16.mxu0 %v2660
    %4092 = vmatpush2.bf16.msra.mxu0 %v2659
    %4093 = vmatprep.subr.bf16.mxu0 %v2644
    %4094 = vmatpush2.bf16.msra.mxu0 %v2643
    %4095 = vmatprep.subr.bf16.mxu0 %v2628
    %4096 = vmatpush2.bf16.msra.mxu0 %v2627
    %4097 = vmatprep.subr.bf16.mxu0 %v2612
    %4098 = vmatpush2.bf16.msra.mxu0 %v2611
    %4099 = vmatprep.mubr.bf16.mxu0 %v334
    %4100 = vmatmul.mubr.bf16.gmra.mxu0 %v333
    %v4101 = vpop.f32.mrf.mxu0
    %v4102 = vadd.f32 %v912, %v4101
    %v4103 = vpop.f32.mrf.mxu0
    %v4104 = vadd.f32 %v916, %v4103
    %v4105 = vpop.f32.mrf.mxu0
    %v4106 = vpop.f32.mrf.mxu0
    %4107 = vdwg.mxu0
    %4108 = vmatprep.subr.bf16.mxu0 %v2852
    %4109 = vmatpush1.bf16.msra.mxu0 %v2851
    %4110 = vmatprep.subr.bf16.mxu0 %v2836
    %4111 = vmatpush1.bf16.msra.mxu0 %v2835
    %4112 = vmatprep.subr.bf16.mxu0 %v2820
    %4113 = vmatpush1.bf16.msra.mxu0 %v2819
    %4114 = vmatprep.subr.bf16.mxu0 %v2804
    %4115 = vmatpush1.bf16.msra.mxu0 %v2803
    %4116 = vmatprep.subr.bf16.mxu0 %v2788
    %4117 = vmatpush1.bf16.msra.mxu0 %v2787
    %4118 = vmatprep.subr.bf16.mxu0 %v2772
    %4119 = vmatpush1.bf16.msra.mxu0 %v2771
    %4120 = vmatprep.subr.bf16.mxu0 %v2756
    %4121 = vmatpush1.bf16.msra.mxu0 %v2755
    %4122 = vmatprep.subr.bf16.mxu0 %v2740
    %4123 = vmatpush1.bf16.msra.mxu0 %v2739
    %4124 = vmatprep.subr.bf16.mxu0 %v2980
    %4125 = vmatpush2.bf16.msra.mxu0 %v2979
    %4126 = vmatprep.subr.bf16.mxu0 %v2964
    %4127 = vmatpush2.bf16.msra.mxu0 %v2963
    %4128 = vmatprep.subr.bf16.mxu0 %v2948
    %4129 = vmatpush2.bf16.msra.mxu0 %v2947
    %4130 = vmatprep.subr.bf16.mxu0 %v2932
    %4131 = vmatpush2.bf16.msra.mxu0 %v2931
    %4132 = vmatprep.subr.bf16.mxu0 %v2916
    %4133 = vmatpush2.bf16.msra.mxu0 %v2915
    %4134 = vmatprep.subr.bf16.mxu0 %v2900
    %4135 = vmatpush2.bf16.msra.mxu0 %v2899
    %4136 = vmatprep.subr.bf16.mxu0 %v2884
    %4137 = vmatpush2.bf16.msra.mxu0 %v2883
    %4138 = vmatprep.subr.bf16.mxu0 %v2868
    %4139 = vmatpush2.bf16.msra.mxu0 %v2867
    %4140 = vmatprep.mubr.bf16.mxu0 %v336
    %4141 = vmatmul.mubr.bf16.gmra.mxu0 %v335
    %v4142 = vpop.f32.mrf.mxu0
    %v4143 = vadd.f32 %v4102, %v4142
    %v4144 = vpop.f32.mrf.mxu0
    %v4145 = vadd.f32 %v4104, %v4144
    %v4146 = vpop.f32.mrf.mxu0
    %v4147 = vpop.f32.mrf.mxu0
    %4148 = vdwg.mxu0
    %v4149 = vpack.c.bf16 %v3569, %v3569
    %v4150 = vpack.c.bf16 %v3571, %v3571
    %v4151 = vpack.c.bf16 %v3651, %v3651
    %v4152 = vpack.c.bf16 %v3653, %v3653
    %v4153 = vpack.c.bf16 %v3733, %v3733
    %v4154 = vpack.c.bf16 %v3735, %v3735
    %v4155 = vpack.c.bf16 %v3815, %v3815
    %v4156 = vpack.c.bf16 %v3817, %v3817
    %v4157 = vpack.c.bf16 %v3897, %v3897
    %v4158 = vpack.c.bf16 %v3899, %v3899
    %v4159 = vpack.c.bf16 %v3979, %v3979
    %v4160 = vpack.c.bf16 %v3981, %v3981
    %v4161 = vpack.c.bf16 %v4061, %v4061
    %v4162 = vpack.c.bf16 %v4063, %v4063
    %v4163 = vpack.c.bf16 %v4143, %v4143
    %v4164 = vpack.c.bf16 %v4145, %v4145
    %v4165 = vld [vmem:[%s5] sm:$0xf]
    %v4166 = vld [vmem:[%s5 + $0x4] sm:$0xf]
    %v4167 = vld [vmem:[%s5 + $0x8] sm:$0xf]
    %v4168 = vld [vmem:[%s5 + $0xc] sm:$0xf]
    %v4169 = vld [vmem:[%s5 + $0x10] sm:$0xf]
    %v4170 = vld [vmem:[%s5 + $0x14] sm:$0xf]
    %v4171 = vld [vmem:[%s5 + $0x18] sm:$0xf]
    %v4172 = vld [vmem:[%s5 + $0x1c] sm:$0xf]
    %v4173 = vld [vmem:[%s5 + $0x20] sm:$0xf]
    %v4174 = vld [vmem:[%s5 + $0x24] sm:$0xf]
    %v4175 = vld [vmem:[%s5 + $0x28] sm:$0xf]
    %v4176 = vld [vmem:[%s5 + $0x2c] sm:$0xf]
    %v4177 = vld [vmem:[%s5 + $0x30] sm:$0xf]
    %v4178 = vld [vmem:[%s5 + $0x34] sm:$0xf]
    %v4179 = vld [vmem:[%s5 + $0x38] sm:$0xf]
    %v4180 = vld [vmem:[%s5 + $0x3c] sm:$0xf]
    %v4181 = vld [vmem:[%s5 + $0x40] sm:$0xf]
    %v4182 = vld [vmem:[%s5 + $0x44] sm:$0xf]
    %v4183 = vld [vmem:[%s5 + $0x48] sm:$0xf]
    %v4184 = vld [vmem:[%s5 + $0x4c] sm:$0xf]
    %v4185 = vld [vmem:[%s5 + $0x50] sm:$0xf]
    %v4186 = vld [vmem:[%s5 + $0x54] sm:$0xf]
    %v4187 = vld [vmem:[%s5 + $0x58] sm:$0xf]
    %v4188 = vld [vmem:[%s5 + $0x5c] sm:$0xf]
    %v4189 = vld [vmem:[%s5 + $0x60] sm:$0xf]
    %v4190 = vld [vmem:[%s5 + $0x64] sm:$0xf]
    %v4191 = vld [vmem:[%s5 + $0x68] sm:$0xf]
    %v4192 = vld [vmem:[%s5 + $0x6c] sm:$0xf]
    %v4193 = vld [vmem:[%s5 + $0x70] sm:$0xf]
    %v4194 = vld [vmem:[%s5 + $0x74] sm:$0xf]
    %v4195 = vld [vmem:[%s5 + $0x78] sm:$0xf]
    %v4196 = vld [vmem:[%s5 + $0x7c] sm:$0xf]
    %v4197 = vld [vmem:[%s5 + $0x80] sm:$0xf]
    %v4198 = vld [vmem:[%s5 + $0x84] sm:$0xf]
    %v4199 = vld [vmem:[%s5 + $0x88] sm:$0xf]
    %v4200 = vld [vmem:[%s5 + $0x8c] sm:$0xf]
    %v4201 = vld [vmem:[%s5 + $0x90] sm:$0xf]
    %v4202 = vld [vmem:[%s5 + $0x94] sm:$0xf]
    %v4203 = vld [vmem:[%s5 + $0x98] sm:$0xf]
    %v4204 = vld [vmem:[%s5 + $0x9c] sm:$0xf]
    %v4205 = vld [vmem:[%s5 + $0xa0] sm:$0xf]
    %v4206 = vld [vmem:[%s5 + $0xa4] sm:$0xf]
    %v4207 = vld [vmem:[%s5 + $0xa8] sm:$0xf]
    %v4208 = vld [vmem:[%s5 + $0xac] sm:$0xf]
    %v4209 = vld [vmem:[%s5 + $0xb0] sm:$0xf]
    %v4210 = vld [vmem:[%s5 + $0xb4] sm:$0xf]
    %v4211 = vld [vmem:[%s5 + $0xb8] sm:$0xf]
    %v4212 = vld [vmem:[%s5 + $0xbc] sm:$0xf]
    %v4213 = vld [vmem:[%s5 + $0xc0] sm:$0xf]
    %v4214 = vld [vmem:[%s5 + $0xc4] sm:$0xf]
    %v4215 = vld [vmem:[%s5 + $0xc8] sm:$0xf]
    %v4216 = vld [vmem:[%s5 + $0xcc] sm:$0xf]
    %v4217 = vld [vmem:[%s5 + $0xd0] sm:$0xf]
    %v4218 = vld [vmem:[%s5 + $0xd4] sm:$0xf]
    %v4219 = vld [vmem:[%s5 + $0xd8] sm:$0xf]
    %v4220 = vld [vmem:[%s5 + $0xdc] sm:$0xf]
    %v4221 = vld [vmem:[%s5 + $0xe0] sm:$0xf]
    %v4222 = vld [vmem:[%s5 + $0xe4] sm:$0xf]
    %v4223 = vld [vmem:[%s5 + $0xe8] sm:$0xf]
    %v4224 = vld [vmem:[%s5 + $0xec] sm:$0xf]
    %v4225 = vld [vmem:[%s5 + $0xf0] sm:$0xf]
    %v4226 = vld [vmem:[%s5 + $0xf4] sm:$0xf]
    %v4227 = vld [vmem:[%s5 + $0xf8] sm:$0xf]
    %v4228 = vld [vmem:[%s5 + $0xfc] sm:$0xf]
    %v4229 = vld [vmem:[%s5 + $0x100] sm:$0xf]
    %v4230 = vld [vmem:[%s5 + $0x104] sm:$0xf]
    %v4231 = vld [vmem:[%s5 + $0x108] sm:$0xf]
    %v4232 = vld [vmem:[%s5 + $0x10c] sm:$0xf]
    %v4233 = vld [vmem:[%s5 + $0x110] sm:$0xf]
    %v4234 = vld [vmem:[%s5 + $0x114] sm:$0xf]
    %v4235 = vld [vmem:[%s5 + $0x118] sm:$0xf]
    %v4236 = vld [vmem:[%s5 + $0x11c] sm:$0xf]
    %v4237 = vld [vmem:[%s5 + $0x120] sm:$0xf]
    %v4238 = vld [vmem:[%s5 + $0x124] sm:$0xf]
    %v4239 = vld [vmem:[%s5 + $0x128] sm:$0xf]
    %v4240 = vld [vmem:[%s5 + $0x12c] sm:$0xf]
    %v4241 = vld [vmem:[%s5 + $0x130] sm:$0xf]
    %v4242 = vld [vmem:[%s5 + $0x134] sm:$0xf]
    %v4243 = vld [vmem:[%s5 + $0x138] sm:$0xf]
    %v4244 = vld [vmem:[%s5 + $0x13c] sm:$0xf]
    %v4245 = vld [vmem:[%s5 + $0x140] sm:$0xf]
    %v4246 = vld [vmem:[%s5 + $0x144] sm:$0xf]
    %v4247 = vld [vmem:[%s5 + $0x148] sm:$0xf]
    %v4248 = vld [vmem:[%s5 + $0x14c] sm:$0xf]
    %v4249 = vld [vmem:[%s5 + $0x150] sm:$0xf]
    %v4250 = vld [vmem:[%s5 + $0x154] sm:$0xf]
    %v4251 = vld [vmem:[%s5 + $0x158] sm:$0xf]
    %v4252 = vld [vmem:[%s5 + $0x15c] sm:$0xf]
    %v4253 = vld [vmem:[%s5 + $0x160] sm:$0xf]
    %v4254 = vld [vmem:[%s5 + $0x164] sm:$0xf]
    %v4255 = vld [vmem:[%s5 + $0x168] sm:$0xf]
    %v4256 = vld [vmem:[%s5 + $0x16c] sm:$0xf]
    %v4257 = vld [vmem:[%s5 + $0x170] sm:$0xf]
    %v4258 = vld [vmem:[%s5 + $0x174] sm:$0xf]
    %v4259 = vld [vmem:[%s5 + $0x178] sm:$0xf]
    %v4260 = vld [vmem:[%s5 + $0x17c] sm:$0xf]
    %v4261 = vld [vmem:[%s5 + $0x180] sm:$0xf]
    %v4262 = vld [vmem:[%s5 + $0x184] sm:$0xf]
    %v4263 = vld [vmem:[%s5 + $0x188] sm:$0xf]
    %v4264 = vld [vmem:[%s5 + $0x18c] sm:$0xf]
    %v4265 = vld [vmem:[%s5 + $0x190] sm:$0xf]
    %v4266 = vld [vmem:[%s5 + $0x194] sm:$0xf]
    %v4267 = vld [vmem:[%s5 + $0x198] sm:$0xf]
    %v4268 = vld [vmem:[%s5 + $0x19c] sm:$0xf]
    %v4269 = vld [vmem:[%s5 + $0x1a0] sm:$0xf]
    %v4270 = vld [vmem:[%s5 + $0x1a4] sm:$0xf]
    %v4271 = vld [vmem:[%s5 + $0x1a8] sm:$0xf]
    %v4272 = vld [vmem:[%s5 + $0x1ac] sm:$0xf]
    %v4273 = vld [vmem:[%s5 + $0x1b0] sm:$0xf]
    %v4274 = vld [vmem:[%s5 + $0x1b4] sm:$0xf]
    %v4275 = vld [vmem:[%s5 + $0x1b8] sm:$0xf]
    %v4276 = vld [vmem:[%s5 + $0x1bc] sm:$0xf]
    %v4277 = vld [vmem:[%s5 + $0x1c0] sm:$0xf]
    %v4278 = vld [vmem:[%s5 + $0x1c4] sm:$0xf]
    %v4279 = vld [vmem:[%s5 + $0x1c8] sm:$0xf]
    %v4280 = vld [vmem:[%s5 + $0x1cc] sm:$0xf]
    %v4281 = vld [vmem:[%s5 + $0x1d0] sm:$0xf]
    %v4282 = vld [vmem:[%s5 + $0x1d4] sm:$0xf]
    %v4283 = vld [vmem:[%s5 + $0x1d8] sm:$0xf]
    %v4284 = vld [vmem:[%s5 + $0x1dc] sm:$0xf]
    %v4285 = vld [vmem:[%s5 + $0x1e0] sm:$0xf]
    %v4286 = vld [vmem:[%s5 + $0x1e4] sm:$0xf]
    %v4287 = vld [vmem:[%s5 + $0x1e8] sm:$0xf]
    %v4288 = vld [vmem:[%s5 + $0x1ec] sm:$0xf]
    %v4289 = vld [vmem:[%s5 + $0x1f0] sm:$0xf]
    %v4290 = vld [vmem:[%s5 + $0x1f4] sm:$0xf]
    %v4291 = vld [vmem:[%s5 + $0x1f8] sm:$0xf]
    %v4292 = vld [vmem:[%s5 + $0x1fc] sm:$0xf]
    %v4293 = vld [vmem:[%s5 + $0x200] sm:$0xf]
    %v4294 = vld [vmem:[%s5 + $0x204] sm:$0xf]
    %v4295 = vld [vmem:[%s5 + $0x208] sm:$0xf]
    %v4296 = vld [vmem:[%s5 + $0x20c] sm:$0xf]
    %v4297 = vld [vmem:[%s5 + $0x210] sm:$0xf]
    %v4298 = vld [vmem:[%s5 + $0x214] sm:$0xf]
    %v4299 = vld [vmem:[%s5 + $0x218] sm:$0xf]
    %v4300 = vld [vmem:[%s5 + $0x21c] sm:$0xf]
    %v4301 = vld [vmem:[%s5 + $0x220] sm:$0xf]
    %v4302 = vld [vmem:[%s5 + $0x224] sm:$0xf]
    %v4303 = vld [vmem:[%s5 + $0x228] sm:$0xf]
    %v4304 = vld [vmem:[%s5 + $0x22c] sm:$0xf]
    %v4305 = vld [vmem:[%s5 + $0x230] sm:$0xf]
    %v4306 = vld [vmem:[%s5 + $0x234] sm:$0xf]
    %v4307 = vld [vmem:[%s5 + $0x238] sm:$0xf]
    %v4308 = vld [vmem:[%s5 + $0x23c] sm:$0xf]
    %v4309 = vld [vmem:[%s5 + $0x240] sm:$0xf]
    %v4310 = vld [vmem:[%s5 + $0x244] sm:$0xf]
    %v4311 = vld [vmem:[%s5 + $0x248] sm:$0xf]
    %v4312 = vld [vmem:[%s5 + $0x24c] sm:$0xf]
    %v4313 = vld [vmem:[%s5 + $0x250] sm:$0xf]
    %v4314 = vld [vmem:[%s5 + $0x254] sm:$0xf]
    %v4315 = vld [vmem:[%s5 + $0x258] sm:$0xf]
    %v4316 = vld [vmem:[%s5 + $0x25c] sm:$0xf]
    %v4317 = vld [vmem:[%s5 + $0x260] sm:$0xf]
    %v4318 = vld [vmem:[%s5 + $0x264] sm:$0xf]
    %v4319 = vld [vmem:[%s5 + $0x268] sm:$0xf]
    %v4320 = vld [vmem:[%s5 + $0x26c] sm:$0xf]
    %v4321 = vld [vmem:[%s5 + $0x270] sm:$0xf]
    %v4322 = vld [vmem:[%s5 + $0x274] sm:$0xf]
    %v4323 = vld [vmem:[%s5 + $0x278] sm:$0xf]
    %v4324 = vld [vmem:[%s5 + $0x27c] sm:$0xf]
    %v4325 = vld [vmem:[%s5 + $0x280] sm:$0xf]
    %v4326 = vld [vmem:[%s5 + $0x284] sm:$0xf]
    %v4327 = vld [vmem:[%s5 + $0x288] sm:$0xf]
    %v4328 = vld [vmem:[%s5 + $0x28c] sm:$0xf]
    %v4329 = vld [vmem:[%s5 + $0x290] sm:$0xf]
    %v4330 = vld [vmem:[%s5 + $0x294] sm:$0xf]
    %v4331 = vld [vmem:[%s5 + $0x298] sm:$0xf]
    %v4332 = vld [vmem:[%s5 + $0x29c] sm:$0xf]
    %v4333 = vld [vmem:[%s5 + $0x2a0] sm:$0xf]
    %v4334 = vld [vmem:[%s5 + $0x2a4] sm:$0xf]
    %v4335 = vld [vmem:[%s5 + $0x2a8] sm:$0xf]
    %v4336 = vld [vmem:[%s5 + $0x2ac] sm:$0xf]
    %v4337 = vld [vmem:[%s5 + $0x2b0] sm:$0xf]
    %v4338 = vld [vmem:[%s5 + $0x2b4] sm:$0xf]
    %v4339 = vld [vmem:[%s5 + $0x2b8] sm:$0xf]
    %v4340 = vld [vmem:[%s5 + $0x2bc] sm:$0xf]
    %v4341 = vld [vmem:[%s5 + $0x2c0] sm:$0xf]
    %v4342 = vld [vmem:[%s5 + $0x2c4] sm:$0xf]
    %v4343 = vld [vmem:[%s5 + $0x2c8] sm:$0xf]
    %v4344 = vld [vmem:[%s5 + $0x2cc] sm:$0xf]
    %v4345 = vld [vmem:[%s5 + $0x2d0] sm:$0xf]
    %v4346 = vld [vmem:[%s5 + $0x2d4] sm:$0xf]
    %v4347 = vld [vmem:[%s5 + $0x2d8] sm:$0xf]
    %v4348 = vld [vmem:[%s5 + $0x2dc] sm:$0xf]
    %v4349 = vld [vmem:[%s5 + $0x2e0] sm:$0xf]
    %v4350 = vld [vmem:[%s5 + $0x2e4] sm:$0xf]
    %v4351 = vld [vmem:[%s5 + $0x2e8] sm:$0xf]
    %v4352 = vld [vmem:[%s5 + $0x2ec] sm:$0xf]
    %v4353 = vld [vmem:[%s5 + $0x2f0] sm:$0xf]
    %v4354 = vld [vmem:[%s5 + $0x2f4] sm:$0xf]
    %v4355 = vld [vmem:[%s5 + $0x2f8] sm:$0xf]
    %v4356 = vld [vmem:[%s5 + $0x2fc] sm:$0xf]
    %v4357 = vld [vmem:[%s5 + $0x300] sm:$0xf]
    %v4358 = vld [vmem:[%s5 + $0x304] sm:$0xf]
    %v4359 = vld [vmem:[%s5 + $0x308] sm:$0xf]
    %v4360 = vld [vmem:[%s5 + $0x30c] sm:$0xf]
    %v4361 = vld [vmem:[%s5 + $0x310] sm:$0xf]
    %v4362 = vld [vmem:[%s5 + $0x314] sm:$0xf]
    %v4363 = vld [vmem:[%s5 + $0x318] sm:$0xf]
    %v4364 = vld [vmem:[%s5 + $0x31c] sm:$0xf]
    %v4365 = vld [vmem:[%s5 + $0x320] sm:$0xf]
    %v4366 = vld [vmem:[%s5 + $0x324] sm:$0xf]
    %v4367 = vld [vmem:[%s5 + $0x328] sm:$0xf]
    %v4368 = vld [vmem:[%s5 + $0x32c] sm:$0xf]
    %v4369 = vld [vmem:[%s5 + $0x330] sm:$0xf]
    %v4370 = vld [vmem:[%s5 + $0x334] sm:$0xf]
    %v4371 = vld [vmem:[%s5 + $0x338] sm:$0xf]
    %v4372 = vld [vmem:[%s5 + $0x33c] sm:$0xf]
    %v4373 = vld [vmem:[%s5 + $0x340] sm:$0xf]
    %v4374 = vld [vmem:[%s5 + $0x344] sm:$0xf]
    %v4375 = vld [vmem:[%s5 + $0x348] sm:$0xf]
    %v4376 = vld [vmem:[%s5 + $0x34c] sm:$0xf]
    %v4377 = vld [vmem:[%s5 + $0x350] sm:$0xf]
    %v4378 = vld [vmem:[%s5 + $0x354] sm:$0xf]
    %v4379 = vld [vmem:[%s5 + $0x358] sm:$0xf]
    %v4380 = vld [vmem:[%s5 + $0x35c] sm:$0xf]
    %v4381 = vld [vmem:[%s5 + $0x360] sm:$0xf]
    %v4382 = vld [vmem:[%s5 + $0x364] sm:$0xf]
    %v4383 = vld [vmem:[%s5 + $0x368] sm:$0xf]
    %v4384 = vld [vmem:[%s5 + $0x36c] sm:$0xf]
    %v4385 = vld [vmem:[%s5 + $0x370] sm:$0xf]
    %v4386 = vld [vmem:[%s5 + $0x374] sm:$0xf]
    %v4387 = vld [vmem:[%s5 + $0x378] sm:$0xf]
    %v4388 = vld [vmem:[%s5 + $0x37c] sm:$0xf]
    %v4389 = vld [vmem:[%s5 + $0x380] sm:$0xf]
    %v4390 = vld [vmem:[%s5 + $0x384] sm:$0xf]
    %v4391 = vld [vmem:[%s5 + $0x388] sm:$0xf]
    %v4392 = vld [vmem:[%s5 + $0x38c] sm:$0xf]
    %v4393 = vld [vmem:[%s5 + $0x390] sm:$0xf]
    %v4394 = vld [vmem:[%s5 + $0x394] sm:$0xf]
    %v4395 = vld [vmem:[%s5 + $0x398] sm:$0xf]
    %v4396 = vld [vmem:[%s5 + $0x39c] sm:$0xf]
    %v4397 = vld [vmem:[%s5 + $0x3a0] sm:$0xf]
    %v4398 = vld [vmem:[%s5 + $0x3a4] sm:$0xf]
    %v4399 = vld [vmem:[%s5 + $0x3a8] sm:$0xf]
    %v4400 = vld [vmem:[%s5 + $0x3ac] sm:$0xf]
    %v4401 = vld [vmem:[%s5 + $0x3b0] sm:$0xf]
    %v4402 = vld [vmem:[%s5 + $0x3b4] sm:$0xf]
    %v4403 = vld [vmem:[%s5 + $0x3b8] sm:$0xf]
    %v4404 = vld [vmem:[%s5 + $0x3bc] sm:$0xf]
    %v4405 = vld [vmem:[%s5 + $0x3c0] sm:$0xf]
    %v4406 = vld [vmem:[%s5 + $0x3c4] sm:$0xf]
    %v4407 = vld [vmem:[%s5 + $0x3c8] sm:$0xf]
    %v4408 = vld [vmem:[%s5 + $0x3cc] sm:$0xf]
    %v4409 = vld [vmem:[%s5 + $0x3d0] sm:$0xf]
    %v4410 = vld [vmem:[%s5 + $0x3d4] sm:$0xf]
    %v4411 = vld [vmem:[%s5 + $0x3d8] sm:$0xf]
    %v4412 = vld [vmem:[%s5 + $0x3dc] sm:$0xf]
    %v4413 = vld [vmem:[%s5 + $0x3e0] sm:$0xf]
    %v4414 = vld [vmem:[%s5 + $0x3e4] sm:$0xf]
    %v4415 = vld [vmem:[%s5 + $0x3e8] sm:$0xf]
    %v4416 = vld [vmem:[%s5 + $0x3ec] sm:$0xf]
    %v4417 = vld [vmem:[%s5 + $0x3f0] sm:$0xf]
    %v4418 = vld [vmem:[%s5 + $0x3f4] sm:$0xf]
    %v4419 = vld [vmem:[%s5 + $0x3f8] sm:$0xf]
    %v4420 = vld [vmem:[%s5 + $0x3fc] sm:$0xf]
    %v4421 = vld [vmem:[#allocation11] sm:$0x1]
    %v4423 = vlaneseq
    %v4424 = vshrl.u32 %v4423, 7
    %v4425 = vsub.s32 0, %v4424
    %v4426 = vrot.slane %v4421, %v4425
    %v4684 = vunpack.c.l.b16 %v4165
    %v4685 = vunpack.c.l.b16 %v4166
    %v4686 = vunpack.c.l.b16 %v4167
    %v4687 = vunpack.c.l.b16 %v4168
    %v4688 = vunpack.c.l.b16 %v4169
    %v4689 = vunpack.c.l.b16 %v4170
    %v4690 = vunpack.c.l.b16 %v4171
    %v4691 = vunpack.c.l.b16 %v4172
    %v4692 = vunpack.c.l.b16 %v4173
    %v4693 = vunpack.c.l.b16 %v4174
    %v4694 = vunpack.c.l.b16 %v4175
    %v4695 = vunpack.c.l.b16 %v4176
    %v4696 = vunpack.c.l.b16 %v4177
    %v4697 = vunpack.c.l.b16 %v4178
    %v4698 = vunpack.c.l.b16 %v4179
    %v4699 = vunpack.c.l.b16 %v4180
    %v4700 = vunpack.c.l.b16 %v4181
    %v4701 = vunpack.c.l.b16 %v4182
    %v4702 = vunpack.c.l.b16 %v4183
    %v4703 = vunpack.c.l.b16 %v4184
    %v4704 = vunpack.c.l.b16 %v4185
    %v4705 = vunpack.c.l.b16 %v4186
    %v4706 = vunpack.c.l.b16 %v4187
    %v4707 = vunpack.c.l.b16 %v4188
    %v4708 = vunpack.c.l.b16 %v4189
    %v4709 = vunpack.c.l.b16 %v4190
    %v4710 = vunpack.c.l.b16 %v4191
    %v4711 = vunpack.c.l.b16 %v4192
    %v4712 = vunpack.c.l.b16 %v4193
    %v4713 = vunpack.c.l.b16 %v4194
    %v4714 = vunpack.c.l.b16 %v4195
    %v4715 = vunpack.c.l.b16 %v4196
    %v4716 = vunpack.c.l.b16 %v4197
    %v4717 = vunpack.c.l.b16 %v4198
    %v4718 = vunpack.c.l.b16 %v4199
    %v4719 = vunpack.c.l.b16 %v4200
    %v4720 = vunpack.c.l.b16 %v4201
    %v4721 = vunpack.c.l.b16 %v4202
    %v4722 = vunpack.c.l.b16 %v4203
    %v4723 = vunpack.c.l.b16 %v4204
    %v4724 = vunpack.c.l.b16 %v4205
    %v4725 = vunpack.c.l.b16 %v4206
    %v4726 = vunpack.c.l.b16 %v4207
    %v4727 = vunpack.c.l.b16 %v4208
    %v4728 = vunpack.c.l.b16 %v4209
    %v4729 = vunpack.c.l.b16 %v4210
    %v4730 = vunpack.c.l.b16 %v4211
    %v4731 = vunpack.c.l.b16 %v4212
    %v4732 = vunpack.c.l.b16 %v4213
    %v4733 = vunpack.c.l.b16 %v4214
    %v4734 = vunpack.c.l.b16 %v4215
    %v4735 = vunpack.c.l.b16 %v4216
    %v4736 = vunpack.c.l.b16 %v4217
    %v4737 = vunpack.c.l.b16 %v4218
    %v4738 = vunpack.c.l.b16 %v4219
    %v4739 = vunpack.c.l.b16 %v4220
    %v4740 = vunpack.c.l.b16 %v4221
    %v4741 = vunpack.c.l.b16 %v4222
    %v4742 = vunpack.c.l.b16 %v4223
    %v4743 = vunpack.c.l.b16 %v4224
    %v4744 = vunpack.c.l.b16 %v4225
    %v4745 = vunpack.c.l.b16 %v4226
    %v4746 = vunpack.c.l.b16 %v4227
    %v4747 = vunpack.c.l.b16 %v4228
    %v4748 = vunpack.c.l.b16 %v4229
    %v4749 = vunpack.c.l.b16 %v4230
    %v4750 = vunpack.c.l.b16 %v4231
    %v4751 = vunpack.c.l.b16 %v4232
    %v4752 = vunpack.c.l.b16 %v4233
    %v4753 = vunpack.c.l.b16 %v4234
    %v4754 = vunpack.c.l.b16 %v4235
    %v4755 = vunpack.c.l.b16 %v4236
    %v4756 = vunpack.c.l.b16 %v4237
    %v4757 = vunpack.c.l.b16 %v4238
    %v4758 = vunpack.c.l.b16 %v4239
    %v4759 = vunpack.c.l.b16 %v4240
    %v4760 = vunpack.c.l.b16 %v4241
    %v4761 = vunpack.c.l.b16 %v4242
    %v4762 = vunpack.c.l.b16 %v4243
    %v4763 = vunpack.c.l.b16 %v4244
    %v4764 = vunpack.c.l.b16 %v4245
    %v4765 = vunpack.c.l.b16 %v4246
    %v4766 = vunpack.c.l.b16 %v4247
    %v4767 = vunpack.c.l.b16 %v4248
    %v4768 = vunpack.c.l.b16 %v4249
    %v4769 = vunpack.c.l.b16 %v4250
    %v4770 = vunpack.c.l.b16 %v4251
    %v4771 = vunpack.c.l.b16 %v4252
    %v4772 = vunpack.c.l.b16 %v4253
    %v4773 = vunpack.c.l.b16 %v4254
    %v4774 = vunpack.c.l.b16 %v4255
    %v4775 = vunpack.c.l.b16 %v4256
    %v4776 = vunpack.c.l.b16 %v4257
    %v4777 = vunpack.c.l.b16 %v4258
    %v4778 = vunpack.c.l.b16 %v4259
    %v4779 = vunpack.c.l.b16 %v4260
    %v4780 = vunpack.c.l.b16 %v4261
    %v4781 = vunpack.c.l.b16 %v4262
    %v4782 = vunpack.c.l.b16 %v4263
    %v4783 = vunpack.c.l.b16 %v4264
    %v4784 = vunpack.c.l.b16 %v4265
    %v4785 = vunpack.c.l.b16 %v4266
    %v4786 = vunpack.c.l.b16 %v4267
    %v4787 = vunpack.c.l.b16 %v4268
    %v4788 = vunpack.c.l.b16 %v4269
    %v4789 = vunpack.c.l.b16 %v4270
    %v4790 = vunpack.c.l.b16 %v4271
    %v4791 = vunpack.c.l.b16 %v4272
    %v4792 = vunpack.c.l.b16 %v4273
    %v4793 = vunpack.c.l.b16 %v4274
    %v4794 = vunpack.c.l.b16 %v4275
    %v4795 = vunpack.c.l.b16 %v4276
    %v4796 = vunpack.c.l.b16 %v4277
    %v4797 = vunpack.c.l.b16 %v4278
    %v4798 = vunpack.c.l.b16 %v4279
    %v4799 = vunpack.c.l.b16 %v4280
    %v4800 = vunpack.c.l.b16 %v4281
    %v4801 = vunpack.c.l.b16 %v4282
    %v4802 = vunpack.c.l.b16 %v4283
    %v4803 = vunpack.c.l.b16 %v4284
    %v4804 = vunpack.c.l.b16 %v4285
    %v4805 = vunpack.c.l.b16 %v4286
    %v4806 = vunpack.c.l.b16 %v4287
    %v4807 = vunpack.c.l.b16 %v4288
    %v4808 = vunpack.c.l.b16 %v4289
    %v4809 = vunpack.c.l.b16 %v4290
    %v4810 = vunpack.c.l.b16 %v4291
    %v4811 = vunpack.c.l.b16 %v4292
    %v4812 = vunpack.c.l.b16 %v4293
    %v4813 = vunpack.c.l.b16 %v4294
    %v4814 = vunpack.c.l.b16 %v4295
    %v4815 = vunpack.c.l.b16 %v4296
    %v4816 = vunpack.c.l.b16 %v4297
    %v4817 = vunpack.c.l.b16 %v4298
    %v4818 = vunpack.c.l.b16 %v4299
    %v4819 = vunpack.c.l.b16 %v4300
    %v4820 = vunpack.c.l.b16 %v4301
    %v4821 = vunpack.c.l.b16 %v4302
    %v4822 = vunpack.c.l.b16 %v4303
    %v4823 = vunpack.c.l.b16 %v4304
    %v4824 = vunpack.c.l.b16 %v4305
    %v4825 = vunpack.c.l.b16 %v4306
    %v4826 = vunpack.c.l.b16 %v4307
    %v4827 = vunpack.c.l.b16 %v4308
    %v4828 = vunpack.c.l.b16 %v4309
    %v4829 = vunpack.c.l.b16 %v4310
    %v4830 = vunpack.c.l.b16 %v4311
    %v4831 = vunpack.c.l.b16 %v4312
    %v4832 = vunpack.c.l.b16 %v4313
    %v4833 = vunpack.c.l.b16 %v4314
    %v4834 = vunpack.c.l.b16 %v4315
    %v4835 = vunpack.c.l.b16 %v4316
    %v4836 = vunpack.c.l.b16 %v4317
    %v4837 = vunpack.c.l.b16 %v4318
    %v4838 = vunpack.c.l.b16 %v4319
    %v4839 = vunpack.c.l.b16 %v4320
    %v4840 = vunpack.c.l.b16 %v4321
    %v4841 = vunpack.c.l.b16 %v4322
    %v4842 = vunpack.c.l.b16 %v4323
    %v4843 = vunpack.c.l.b16 %v4324
    %v4844 = vunpack.c.l.b16 %v4325
    %v4845 = vunpack.c.l.b16 %v4326
    %v4846 = vunpack.c.l.b16 %v4327
    %v4847 = vunpack.c.l.b16 %v4328
    %v4848 = vunpack.c.l.b16 %v4329
    %v4849 = vunpack.c.l.b16 %v4330
    %v4850 = vunpack.c.l.b16 %v4331
    %v4851 = vunpack.c.l.b16 %v4332
    %v4852 = vunpack.c.l.b16 %v4333
    %v4853 = vunpack.c.l.b16 %v4334
    %v4854 = vunpack.c.l.b16 %v4335
    %v4855 = vunpack.c.l.b16 %v4336
    %v4856 = vunpack.c.l.b16 %v4337
    %v4857 = vunpack.c.l.b16 %v4338
    %v4858 = vunpack.c.l.b16 %v4339
    %v4859 = vunpack.c.l.b16 %v4340
    %v4860 = vunpack.c.l.b16 %v4341
    %v4861 = vunpack.c.l.b16 %v4342
    %v4862 = vunpack.c.l.b16 %v4343
    %v4863 = vunpack.c.l.b16 %v4344
    %v4864 = vunpack.c.l.b16 %v4345
    %v4865 = vunpack.c.l.b16 %v4346
    %v4866 = vunpack.c.l.b16 %v4347
    %v4867 = vunpack.c.l.b16 %v4348
    %v4868 = vunpack.c.l.b16 %v4349
    %v4869 = vunpack.c.l.b16 %v4350
    %v4870 = vunpack.c.l.b16 %v4351
    %v4871 = vunpack.c.l.b16 %v4352
    %v4872 = vunpack.c.l.b16 %v4353
    %v4873 = vunpack.c.l.b16 %v4354
    %v4874 = vunpack.c.l.b16 %v4355
    %v4875 = vunpack.c.l.b16 %v4356
    %v4876 = vunpack.c.l.b16 %v4357
    %v4877 = vunpack.c.l.b16 %v4358
    %v4878 = vunpack.c.l.b16 %v4359
    %v4879 = vunpack.c.l.b16 %v4360
    %v4880 = vunpack.c.l.b16 %v4361
    %v4881 = vunpack.c.l.b16 %v4362
    %v4882 = vunpack.c.l.b16 %v4363
    %v4883 = vunpack.c.l.b16 %v4364
    %v4884 = vunpack.c.l.b16 %v4365
    %v4885 = vunpack.c.l.b16 %v4366
    %v4886 = vunpack.c.l.b16 %v4367
    %v4887 = vunpack.c.l.b16 %v4368
    %v4888 = vunpack.c.l.b16 %v4369
    %v4889 = vunpack.c.l.b16 %v4370
    %v4890 = vunpack.c.l.b16 %v4371
    %v4891 = vunpack.c.l.b16 %v4372
    %v4892 = vunpack.c.l.b16 %v4373
    %v4893 = vunpack.c.l.b16 %v4374
    %v4894 = vunpack.c.l.b16 %v4375
    %v4895 = vunpack.c.l.b16 %v4376
    %v4896 = vunpack.c.l.b16 %v4377
    %v4897 = vunpack.c.l.b16 %v4378
    %v4898 = vunpack.c.l.b16 %v4379
    %v4899 = vunpack.c.l.b16 %v4380
    %v4900 = vunpack.c.l.b16 %v4381
    %v4901 = vunpack.c.l.b16 %v4382
    %v4902 = vunpack.c.l.b16 %v4383
    %v4903 = vunpack.c.l.b16 %v4384
    %v4904 = vunpack.c.l.b16 %v4385
    %v4905 = vunpack.c.l.b16 %v4386
    %v4906 = vunpack.c.l.b16 %v4387
    %v4907 = vunpack.c.l.b16 %v4388
    %v4908 = vunpack.c.l.b16 %v4389
    %v4909 = vunpack.c.l.b16 %v4390
    %v4910 = vunpack.c.l.b16 %v4391
    %v4911 = vunpack.c.l.b16 %v4392
    %v4912 = vunpack.c.l.b16 %v4393
    %v4913 = vunpack.c.l.b16 %v4394
    %v4914 = vunpack.c.l.b16 %v4395
    %v4915 = vunpack.c.l.b16 %v4396
    %v4916 = vunpack.c.l.b16 %v4397
    %v4917 = vunpack.c.l.b16 %v4398
    %v4918 = vunpack.c.l.b16 %v4399
    %v4919 = vunpack.c.l.b16 %v4400
    %v4920 = vunpack.c.l.b16 %v4401
    %v4921 = vunpack.c.l.b16 %v4402
    %v4922 = vunpack.c.l.b16 %v4403
    %v4923 = vunpack.c.l.b16 %v4404
    %v4924 = vunpack.c.l.b16 %v4405
    %v4925 = vunpack.c.l.b16 %v4406
    %v4926 = vunpack.c.l.b16 %v4407
    %v4927 = vunpack.c.l.b16 %v4408
    %v4928 = vunpack.c.l.b16 %v4409
    %v4929 = vunpack.c.l.b16 %v4410
    %v4930 = vunpack.c.l.b16 %v4411
    %v4931 = vunpack.c.l.b16 %v4412
    %v4932 = vunpack.c.l.b16 %v4413
    %v4933 = vunpack.c.l.b16 %v4414
    %v4934 = vunpack.c.l.b16 %v4415
    %v4935 = vunpack.c.l.b16 %v4416
    %v4936 = vunpack.c.l.b16 %v4417
    %v4937 = vunpack.c.l.b16 %v4418
    %v4938 = vunpack.c.l.b16 %v4419
    %v4939 = vunpack.c.l.b16 %v4420
    %v4940 = vpack.c.b16 %v4685, %v4684
    %v4941 = vpack.c.b16 %v4687, %v4686
    %v4942 = vpack.c.b16 %v4689, %v4688
    %v4943 = vpack.c.b16 %v4691, %v4690
    %v4944 = vpack.c.b16 %v4693, %v4692
    %v4945 = vpack.c.b16 %v4695, %v4694
    %v4946 = vpack.c.b16 %v4697, %v4696
    %v4947 = vpack.c.b16 %v4699, %v4698
    %v4948 = vpack.c.b16 %v4701, %v4700
    %v4949 = vpack.c.b16 %v4703, %v4702
    %v4950 = vpack.c.b16 %v4705, %v4704
    %v4951 = vpack.c.b16 %v4707, %v4706
    %v4952 = vpack.c.b16 %v4709, %v4708
    %v4953 = vpack.c.b16 %v4711, %v4710
    %v4954 = vpack.c.b16 %v4713, %v4712
    %v4955 = vpack.c.b16 %v4715, %v4714
    %v4956 = vpack.c.b16 %v4717, %v4716
    %v4957 = vpack.c.b16 %v4719, %v4718
    %v4958 = vpack.c.b16 %v4721, %v4720
    %v4959 = vpack.c.b16 %v4723, %v4722
    %v4960 = vpack.c.b16 %v4725, %v4724
    %v4961 = vpack.c.b16 %v4727, %v4726
    %v4962 = vpack.c.b16 %v4729, %v4728
    %v4963 = vpack.c.b16 %v4731, %v4730
    %v4964 = vpack.c.b16 %v4733, %v4732
    %v4965 = vpack.c.b16 %v4735, %v4734
    %v4966 = vpack.c.b16 %v4737, %v4736
    %v4967 = vpack.c.b16 %v4739, %v4738
    %v4968 = vpack.c.b16 %v4741, %v4740
    %v4969 = vpack.c.b16 %v4743, %v4742
    %v4970 = vpack.c.b16 %v4745, %v4744
    %v4971 = vpack.c.b16 %v4747, %v4746
    %v4972 = vpack.c.b16 %v4749, %v4748
    %v4973 = vpack.c.b16 %v4751, %v4750
    %v4974 = vpack.c.b16 %v4753, %v4752
    %v4975 = vpack.c.b16 %v4755, %v4754
    %v4976 = vpack.c.b16 %v4757, %v4756
    %v4977 = vpack.c.b16 %v4759, %v4758
    %v4978 = vpack.c.b16 %v4761, %v4760
    %v4979 = vpack.c.b16 %v4763, %v4762
    %v4980 = vpack.c.b16 %v4765, %v4764
    %v4981 = vpack.c.b16 %v4767, %v4766
    %v4982 = vpack.c.b16 %v4769, %v4768
    %v4983 = vpack.c.b16 %v4771, %v4770
    %v4984 = vpack.c.b16 %v4773, %v4772
    %v4985 = vpack.c.b16 %v4775, %v4774
    %v4986 = vpack.c.b16 %v4777, %v4776
    %v4987 = vpack.c.b16 %v4779, %v4778
    %v4988 = vpack.c.b16 %v4781, %v4780
    %v4989 = vpack.c.b16 %v4783, %v4782
    %v4990 = vpack.c.b16 %v4785, %v4784
    %v4991 = vpack.c.b16 %v4787, %v4786
    %v4992 = vpack.c.b16 %v4789, %v4788
    %v4993 = vpack.c.b16 %v4791, %v4790
    %v4994 = vpack.c.b16 %v4793, %v4792
    %v4995 = vpack.c.b16 %v4795, %v4794
    %v4996 = vpack.c.b16 %v4797, %v4796
    %v4997 = vpack.c.b16 %v4799, %v4798
    %v4998 = vpack.c.b16 %v4801, %v4800
    %v4999 = vpack.c.b16 %v4803, %v4802
    %v5000 = vpack.c.b16 %v4805, %v4804
    %v5001 = vpack.c.b16 %v4807, %v4806
    %v5002 = vpack.c.b16 %v4809, %v4808
    %v5003 = vpack.c.b16 %v4811, %v4810
    %v5004 = vpack.c.b16 %v4813, %v4812
    %v5005 = vpack.c.b16 %v4815, %v4814
    %v5006 = vpack.c.b16 %v4817, %v4816
    %v5007 = vpack.c.b16 %v4819, %v4818
    %v5008 = vpack.c.b16 %v4821, %v4820
    %v5009 = vpack.c.b16 %v4823, %v4822
    %v5010 = vpack.c.b16 %v4825, %v4824
    %v5011 = vpack.c.b16 %v4827, %v4826
    %v5012 = vpack.c.b16 %v4829, %v4828
    %v5013 = vpack.c.b16 %v4831, %v4830
    %v5014 = vpack.c.b16 %v4833, %v4832
    %v5015 = vpack.c.b16 %v4835, %v4834
    %v5016 = vpack.c.b16 %v4837, %v4836
    %v5017 = vpack.c.b16 %v4839, %v4838
    %v5018 = vpack.c.b16 %v4841, %v4840
    %v5019 = vpack.c.b16 %v4843, %v4842
    %v5020 = vpack.c.b16 %v4845, %v4844
    %v5021 = vpack.c.b16 %v4847, %v4846
    %v5022 = vpack.c.b16 %v4849, %v4848
    %v5023 = vpack.c.b16 %v4851, %v4850
    %v5024 = vpack.c.b16 %v4853, %v4852
    %v5025 = vpack.c.b16 %v4855, %v4854
    %v5026 = vpack.c.b16 %v4857, %v4856
    %v5027 = vpack.c.b16 %v4859, %v4858
    %v5028 = vpack.c.b16 %v4861, %v4860
    %v5029 = vpack.c.b16 %v4863, %v4862
    %v5030 = vpack.c.b16 %v4865, %v4864
    %v5031 = vpack.c.b16 %v4867, %v4866
    %v5032 = vpack.c.b16 %v4869, %v4868
    %v5033 = vpack.c.b16 %v4871, %v4870
    %v5034 = vpack.c.b16 %v4873, %v4872
    %v5035 = vpack.c.b16 %v4875, %v4874
    %v5036 = vpack.c.b16 %v4877, %v4876
    %v5037 = vpack.c.b16 %v4879, %v4878
    %v5038 = vpack.c.b16 %v4881, %v4880
    %v5039 = vpack.c.b16 %v4883, %v4882
    %v5040 = vpack.c.b16 %v4885, %v4884
    %v5041 = vpack.c.b16 %v4887, %v4886
    %v5042 = vpack.c.b16 %v4889, %v4888
    %v5043 = vpack.c.b16 %v4891, %v4890
    %v5044 = vpack.c.b16 %v4893, %v4892
    %v5045 = vpack.c.b16 %v4895, %v4894
    %v5046 = vpack.c.b16 %v4897, %v4896
    %v5047 = vpack.c.b16 %v4899, %v4898
    %v5048 = vpack.c.b16 %v4901, %v4900
    %v5049 = vpack.c.b16 %v4903, %v4902
    %v5050 = vpack.c.b16 %v4905, %v4904
    %v5051 = vpack.c.b16 %v4907, %v4906
    %v5052 = vpack.c.b16 %v4909, %v4908
    %v5053 = vpack.c.b16 %v4911, %v4910
    %v5054 = vpack.c.b16 %v4913, %v4912
    %v5055 = vpack.c.b16 %v4915, %v4914
    %v5056 = vpack.c.b16 %v4917, %v4916
    %v5057 = vpack.c.b16 %v4919, %v4918
    %v5058 = vpack.c.b16 %v4921, %v4920
    %v5059 = vpack.c.b16 %v4923, %v4922
    %v5060 = vpack.c.b16 %v4925, %v4924
    %v5061 = vpack.c.b16 %v4927, %v4926
    %v5062 = vpack.c.b16 %v4929, %v4928
    %v5063 = vpack.c.b16 %v4931, %v4930
    %v5064 = vpack.c.b16 %v4933, %v4932
    %v5065 = vpack.c.b16 %v4935, %v4934
    %v5066 = vpack.c.b16 %v4937, %v4936
    %v5067 = vpack.c.b16 %v4939, %v4938
    %5196 = vmatprep.subr.bf16.mxu0 0
    %5197 = vmatpush1.bf16.msra.mxu0 %v4947
    %5198 = vmatprep.subr.bf16.mxu0 0
    %5199 = vmatpush1.bf16.msra.mxu0 %v4946
    %5200 = vmatprep.subr.bf16.mxu0 0
    %5201 = vmatpush1.bf16.msra.mxu0 %v4945
    %5202 = vmatprep.subr.bf16.mxu0 0
    %5203 = vmatpush1.bf16.msra.mxu0 %v4944
    %5204 = vmatprep.subr.bf16.mxu0 0
    %5205 = vmatpush1.bf16.msra.mxu0 %v4943
    %5206 = vmatprep.subr.bf16.mxu0 0
    %5207 = vmatpush1.bf16.msra.mxu0 %v4942
    %5208 = vmatprep.subr.bf16.mxu0 0
    %5209 = vmatpush1.bf16.msra.mxu0 %v4941
    %5210 = vmatprep.subr.bf16.mxu0 0
    %5211 = vmatpush1.bf16.msra.mxu0 %v4940
    %5212 = vmatprep.subr.bf16.mxu0 0
    %5213 = vmatpush2.bf16.msra.mxu0 %v4955
    %5214 = vmatprep.subr.bf16.mxu0 0
    %5215 = vmatpush2.bf16.msra.mxu0 %v4954
    %5216 = vmatprep.subr.bf16.mxu0 0
    %5217 = vmatpush2.bf16.msra.mxu0 %v4953
    %5218 = vmatprep.subr.bf16.mxu0 0
    %5219 = vmatpush2.bf16.msra.mxu0 %v4952
    %5220 = vmatprep.subr.bf16.mxu0 0
    %5221 = vmatpush2.bf16.msra.mxu0 %v4951
    %5222 = vmatprep.subr.bf16.mxu0 0
    %5223 = vmatpush2.bf16.msra.mxu0 %v4950
    %5224 = vmatprep.subr.bf16.mxu0 0
    %5225 = vmatpush2.bf16.msra.mxu0 %v4949
    %5226 = vmatprep.subr.bf16.mxu0 0
    %5227 = vmatpush2.bf16.msra.mxu0 %v4948
    %5228 = vmatprep.mubr.bf16.mxu0 %v4150
    %5229 = vmatmul.mubr.bf16.gmra.mxu0 %v4149
    %v5230 = vpop.f32.mrf.mxu0
    %v5231 = vadd.f32 %v4426, %v5230
    %v5232 = vpop.f32.mrf.mxu0
    %v5233 = vpop.f32.mrf.mxu0
    %v5234 = vpop.f32.mrf.mxu0
    %5235 = vdwg.mxu0
    %5236 = vmatprep.subr.bf16.mxu0 0
    %5237 = vmatpush1.bf16.msra.mxu0 %v4963
    %5238 = vmatprep.subr.bf16.mxu0 0
    %5239 = vmatpush1.bf16.msra.mxu0 %v4962
    %5240 = vmatprep.subr.bf16.mxu0 0
    %5241 = vmatpush1.bf16.msra.mxu0 %v4961
    %5242 = vmatprep.subr.bf16.mxu0 0
    %5243 = vmatpush1.bf16.msra.mxu0 %v4960
    %5244 = vmatprep.subr.bf16.mxu0 0
    %5245 = vmatpush1.bf16.msra.mxu0 %v4959
    %5246 = vmatprep.subr.bf16.mxu0 0
    %5247 = vmatpush1.bf16.msra.mxu0 %v4958
    %5248 = vmatprep.subr.bf16.mxu0 0
    %5249 = vmatpush1.bf16.msra.mxu0 %v4957
    %5250 = vmatprep.subr.bf16.mxu0 0
    %5251 = vmatpush1.bf16.msra.mxu0 %v4956
    %5252 = vmatprep.subr.bf16.mxu0 0
    %5253 = vmatpush2.bf16.msra.mxu0 %v4971
    %5254 = vmatprep.subr.bf16.mxu0 0
    %5255 = vmatpush2.bf16.msra.mxu0 %v4970
    %5256 = vmatprep.subr.bf16.mxu0 0
    %5257 = vmatpush2.bf16.msra.mxu0 %v4969
    %5258 = vmatprep.subr.bf16.mxu0 0
    %5259 = vmatpush2.bf16.msra.mxu0 %v4968
    %5260 = vmatprep.subr.bf16.mxu0 0
    %5261 = vmatpush2.bf16.msra.mxu0 %v4967
    %5262 = vmatprep.subr.bf16.mxu0 0
    %5263 = vmatpush2.bf16.msra.mxu0 %v4966
    %5264 = vmatprep.subr.bf16.mxu0 0
    %5265 = vmatpush2.bf16.msra.mxu0 %v4965
    %5266 = vmatprep.subr.bf16.mxu0 0
    %5267 = vmatpush2.bf16.msra.mxu0 %v4964
    %5268 = vmatprep.mubr.bf16.mxu0 %v4152
    %5269 = vmatmul.mubr.bf16.gmra.mxu0 %v4151
    %v5270 = vpop.f32.mrf.mxu0
    %v5271 = vadd.f32 %v5231, %v5270
    %v5272 = vpop.f32.mrf.mxu0
    %v5273 = vpop.f32.mrf.mxu0
    %v5274 = vpop.f32.mrf.mxu0
    %5275 = vdwg.mxu0
    %5276 = vmatprep.subr.bf16.mxu0 0
    %5277 = vmatpush1.bf16.msra.mxu0 %v4979
    %5278 = vmatprep.subr.bf16.mxu0 0
    %5279 = vmatpush1.bf16.msra.mxu0 %v4978
    %5280 = vmatprep.subr.bf16.mxu0 0
    %5281 = vmatpush1.bf16.msra.mxu0 %v4977
    %5282 = vmatprep.subr.bf16.mxu0 0
    %5283 = vmatpush1.bf16.msra.mxu0 %v4976
    %5284 = vmatprep.subr.bf16.mxu0 0
    %5285 = vmatpush1.bf16.msra.mxu0 %v4975
    %5286 = vmatprep.subr.bf16.mxu0 0
    %5287 = vmatpush1.bf16.msra.mxu0 %v4974
    %5288 = vmatprep.subr.bf16.mxu0 0
    %5289 = vmatpush1.bf16.msra.mxu0 %v4973
    %5290 = vmatprep.subr.bf16.mxu0 0
    %5291 = vmatpush1.bf16.msra.mxu0 %v4972
    %5292 = vmatprep.subr.bf16.mxu0 0
    %5293 = vmatpush2.bf16.msra.mxu0 %v4987
    %5294 = vmatprep.subr.bf16.mxu0 0
    %5295 = vmatpush2.bf16.msra.mxu0 %v4986
    %5296 = vmatprep.subr.bf16.mxu0 0
    %5297 = vmatpush2.bf16.msra.mxu0 %v4985
    %5298 = vmatprep.subr.bf16.mxu0 0
    %5299 = vmatpush2.bf16.msra.mxu0 %v4984
    %5300 = vmatprep.subr.bf16.mxu0 0
    %5301 = vmatpush2.bf16.msra.mxu0 %v4983
    %5302 = vmatprep.subr.bf16.mxu0 0
    %5303 = vmatpush2.bf16.msra.mxu0 %v4982
    %5304 = vmatprep.subr.bf16.mxu0 0
    %5305 = vmatpush2.bf16.msra.mxu0 %v4981
    %5306 = vmatprep.subr.bf16.mxu0 0
    %5307 = vmatpush2.bf16.msra.mxu0 %v4980
    %5308 = vmatprep.mubr.bf16.mxu0 %v4154
    %5309 = vmatmul.mubr.bf16.gmra.mxu0 %v4153
    %v5310 = vpop.f32.mrf.mxu0
    %v5311 = vadd.f32 %v5271, %v5310
    %v5312 = vpop.f32.mrf.mxu0
    %v5313 = vpop.f32.mrf.mxu0
    %v5314 = vpop.f32.mrf.mxu0
    %5315 = vdwg.mxu0
    %5316 = vmatprep.subr.bf16.mxu0 0
    %5317 = vmatpush1.bf16.msra.mxu0 %v4995
    %5318 = vmatprep.subr.bf16.mxu0 0
    %5319 = vmatpush1.bf16.msra.mxu0 %v4994
    %5320 = vmatprep.subr.bf16.mxu0 0
    %5321 = vmatpush1.bf16.msra.mxu0 %v4993
    %5322 = vmatprep.subr.bf16.mxu0 0
    %5323 = vmatpush1.bf16.msra.mxu0 %v4992
    %5324 = vmatprep.subr.bf16.mxu0 0
    %5325 = vmatpush1.bf16.msra.mxu0 %v4991
    %5326 = vmatprep.subr.bf16.mxu0 0
    %5327 = vmatpush1.bf16.msra.mxu0 %v4990
    %5328 = vmatprep.subr.bf16.mxu0 0
    %5329 = vmatpush1.bf16.msra.mxu0 %v4989
    %5330 = vmatprep.subr.bf16.mxu0 0
    %5331 = vmatpush1.bf16.msra.mxu0 %v4988
    %5332 = vmatprep.subr.bf16.mxu0 0
    %5333 = vmatpush2.bf16.msra.mxu0 %v5003
    %5334 = vmatprep.subr.bf16.mxu0 0
    %5335 = vmatpush2.bf16.msra.mxu0 %v5002
    %5336 = vmatprep.subr.bf16.mxu0 0
    %5337 = vmatpush2.bf16.msra.mxu0 %v5001
    %5338 = vmatprep.subr.bf16.mxu0 0
    %5339 = vmatpush2.bf16.msra.mxu0 %v5000
    %5340 = vmatprep.subr.bf16.mxu0 0
    %5341 = vmatpush2.bf16.msra.mxu0 %v4999
    %5342 = vmatprep.subr.bf16.mxu0 0
    %5343 = vmatpush2.bf16.msra.mxu0 %v4998
    %5344 = vmatprep.subr.bf16.mxu0 0
    %5345 = vmatpush2.bf16.msra.mxu0 %v4997
    %5346 = vmatprep.subr.bf16.mxu0 0
    %5347 = vmatpush2.bf16.msra.mxu0 %v4996
    %5348 = vmatprep.mubr.bf16.mxu0 %v4156
    %5349 = vmatmul.mubr.bf16.gmra.mxu0 %v4155
    %v5350 = vpop.f32.mrf.mxu0
    %v5351 = vadd.f32 %v5311, %v5350
    %v5352 = vpop.f32.mrf.mxu0
    %v5353 = vpop.f32.mrf.mxu0
    %v5354 = vpop.f32.mrf.mxu0
    %5355 = vdwg.mxu0
    %5356 = vmatprep.subr.bf16.mxu0 0
    %5357 = vmatpush1.bf16.msra.mxu0 %v5011
    %5358 = vmatprep.subr.bf16.mxu0 0
    %5359 = vmatpush1.bf16.msra.mxu0 %v5010
    %5360 = vmatprep.subr.bf16.mxu0 0
    %5361 = vmatpush1.bf16.msra.mxu0 %v5009
    %5362 = vmatprep.subr.bf16.mxu0 0
    %5363 = vmatpush1.bf16.msra.mxu0 %v5008
    %5364 = vmatprep.subr.bf16.mxu0 0
    %5365 = vmatpush1.bf16.msra.mxu0 %v5007
    %5366 = vmatprep.subr.bf16.mxu0 0
    %5367 = vmatpush1.bf16.msra.mxu0 %v5006
    %5368 = vmatprep.subr.bf16.mxu0 0
    %5369 = vmatpush1.bf16.msra.mxu0 %v5005
    %5370 = vmatprep.subr.bf16.mxu0 0
    %5371 = vmatpush1.bf16.msra.mxu0 %v5004
    %5372 = vmatprep.subr.bf16.mxu0 0
    %5373 = vmatpush2.bf16.msra.mxu0 %v5019
    %5374 = vmatprep.subr.bf16.mxu0 0
    %5375 = vmatpush2.bf16.msra.mxu0 %v5018
    %5376 = vmatprep.subr.bf16.mxu0 0
    %5377 = vmatpush2.bf16.msra.mxu0 %v5017
    %5378 = vmatprep.subr.bf16.mxu0 0
    %5379 = vmatpush2.bf16.msra.mxu0 %v5016
    %5380 = vmatprep.subr.bf16.mxu0 0
    %5381 = vmatpush2.bf16.msra.mxu0 %v5015
    %5382 = vmatprep.subr.bf16.mxu0 0
    %5383 = vmatpush2.bf16.msra.mxu0 %v5014
    %5384 = vmatprep.subr.bf16.mxu0 0
    %5385 = vmatpush2.bf16.msra.mxu0 %v5013
    %5386 = vmatprep.subr.bf16.mxu0 0
    %5387 = vmatpush2.bf16.msra.mxu0 %v5012
    %5388 = vmatprep.mubr.bf16.mxu0 %v4158
    %5389 = vmatmul.mubr.bf16.gmra.mxu0 %v4157
    %v5390 = vpop.f32.mrf.mxu0
    %v5391 = vadd.f32 %v5351, %v5390
    %v5392 = vpop.f32.mrf.mxu0
    %v5393 = vpop.f32.mrf.mxu0
    %v5394 = vpop.f32.mrf.mxu0
    %5395 = vdwg.mxu0
    %5396 = vmatprep.subr.bf16.mxu0 0
    %5397 = vmatpush1.bf16.msra.mxu0 %v5027
    %5398 = vmatprep.subr.bf16.mxu0 0
    %5399 = vmatpush1.bf16.msra.mxu0 %v5026
    %5400 = vmatprep.subr.bf16.mxu0 0
    %5401 = vmatpush1.bf16.msra.mxu0 %v5025
    %5402 = vmatprep.subr.bf16.mxu0 0
    %5403 = vmatpush1.bf16.msra.mxu0 %v5024
    %5404 = vmatprep.subr.bf16.mxu0 0
    %5405 = vmatpush1.bf16.msra.mxu0 %v5023
    %5406 = vmatprep.subr.bf16.mxu0 0
    %5407 = vmatpush1.bf16.msra.mxu0 %v5022
    %5408 = vmatprep.subr.bf16.mxu0 0
    %5409 = vmatpush1.bf16.msra.mxu0 %v5021
    %5410 = vmatprep.subr.bf16.mxu0 0
    %5411 = vmatpush1.bf16.msra.mxu0 %v5020
    %5412 = vmatprep.subr.bf16.mxu0 0
    %5413 = vmatpush2.bf16.msra.mxu0 %v5035
    %5414 = vmatprep.subr.bf16.mxu0 0
    %5415 = vmatpush2.bf16.msra.mxu0 %v5034
    %5416 = vmatprep.subr.bf16.mxu0 0
    %5417 = vmatpush2.bf16.msra.mxu0 %v5033
    %5418 = vmatprep.subr.bf16.mxu0 0
    %5419 = vmatpush2.bf16.msra.mxu0 %v5032
    %5420 = vmatprep.subr.bf16.mxu0 0
    %5421 = vmatpush2.bf16.msra.mxu0 %v5031
    %5422 = vmatprep.subr.bf16.mxu0 0
    %5423 = vmatpush2.bf16.msra.mxu0 %v5030
    %5424 = vmatprep.subr.bf16.mxu0 0
    %5425 = vmatpush2.bf16.msra.mxu0 %v5029
    %5426 = vmatprep.subr.bf16.mxu0 0
    %5427 = vmatpush2.bf16.msra.mxu0 %v5028
    %5428 = vmatprep.mubr.bf16.mxu0 %v4160
    %5429 = vmatmul.mubr.bf16.gmra.mxu0 %v4159
    %v5430 = vpop.f32.mrf.mxu0
    %v5431 = vadd.f32 %v5391, %v5430
    %v5432 = vpop.f32.mrf.mxu0
    %v5433 = vpop.f32.mrf.mxu0
    %v5434 = vpop.f32.mrf.mxu0
    %5435 = vdwg.mxu0
    %5436 = vmatprep.subr.bf16.mxu0 0
    %5437 = vmatpush1.bf16.msra.mxu0 %v5043
    %5438 = vmatprep.subr.bf16.mxu0 0
    %5439 = vmatpush1.bf16.msra.mxu0 %v5042
    %5440 = vmatprep.subr.bf16.mxu0 0
    %5441 = vmatpush1.bf16.msra.mxu0 %v5041
    %5442 = vmatprep.subr.bf16.mxu0 0
    %5443 = vmatpush1.bf16.msra.mxu0 %v5040
    %5444 = vmatprep.subr.bf16.mxu0 0
    %5445 = vmatpush1.bf16.msra.mxu0 %v5039
    %5446 = vmatprep.subr.bf16.mxu0 0
    %5447 = vmatpush1.bf16.msra.mxu0 %v5038
    %5448 = vmatprep.subr.bf16.mxu0 0
    %5449 = vmatpush1.bf16.msra.mxu0 %v5037
    %5450 = vmatprep.subr.bf16.mxu0 0
    %5451 = vmatpush1.bf16.msra.mxu0 %v5036
    %5452 = vmatprep.subr.bf16.mxu0 0
    %5453 = vmatpush2.bf16.msra.mxu0 %v5051
    %5454 = vmatprep.subr.bf16.mxu0 0
    %5455 = vmatpush2.bf16.msra.mxu0 %v5050
    %5456 = vmatprep.subr.bf16.mxu0 0
    %5457 = vmatpush2.bf16.msra.mxu0 %v5049
    %5458 = vmatprep.subr.bf16.mxu0 0
    %5459 = vmatpush2.bf16.msra.mxu0 %v5048
    %5460 = vmatprep.subr.bf16.mxu0 0
    %5461 = vmatpush2.bf16.msra.mxu0 %v5047
    %5462 = vmatprep.subr.bf16.mxu0 0
    %5463 = vmatpush2.bf16.msra.mxu0 %v5046
    %5464 = vmatprep.subr.bf16.mxu0 0
    %5465 = vmatpush2.bf16.msra.mxu0 %v5045
    %5466 = vmatprep.subr.bf16.mxu0 0
    %5467 = vmatpush2.bf16.msra.mxu0 %v5044
    %5468 = vmatprep.mubr.bf16.mxu0 %v4162
    %5469 = vmatmul.mubr.bf16.gmra.mxu0 %v4161
    %v5470 = vpop.f32.mrf.mxu0
    %v5471 = vadd.f32 %v5431, %v5470
    %v5472 = vpop.f32.mrf.mxu0
    %v5473 = vpop.f32.mrf.mxu0
    %v5474 = vpop.f32.mrf.mxu0
    %5475 = vdwg.mxu0
    %5476 = vmatprep.subr.bf16.mxu0 0
    %5477 = vmatpush1.bf16.msra.mxu0 %v5059
    %5478 = vmatprep.subr.bf16.mxu0 0
    %5479 = vmatpush1.bf16.msra.mxu0 %v5058
    %5480 = vmatprep.subr.bf16.mxu0 0
    %5481 = vmatpush1.bf16.msra.mxu0 %v5057
    %5482 = vmatprep.subr.bf16.mxu0 0
    %5483 = vmatpush1.bf16.msra.mxu0 %v5056
    %5484 = vmatprep.subr.bf16.mxu0 0
    %5485 = vmatpush1.bf16.msra.mxu0 %v5055
    %5486 = vmatprep.subr.bf16.mxu0 0
    %5487 = vmatpush1.bf16.msra.mxu0 %v5054
    %5488 = vmatprep.subr.bf16.mxu0 0
    %5489 = vmatpush1.bf16.msra.mxu0 %v5053
    %5490 = vmatprep.subr.bf16.mxu0 0
    %5491 = vmatpush1.bf16.msra.mxu0 %v5052
    %5492 = vmatprep.subr.bf16.mxu0 0
    %5493 = vmatpush2.bf16.msra.mxu0 %v5067
    %5494 = vmatprep.subr.bf16.mxu0 0
    %5495 = vmatpush2.bf16.msra.mxu0 %v5066
    %5496 = vmatprep.subr.bf16.mxu0 0
    %5497 = vmatpush2.bf16.msra.mxu0 %v5065
    %5498 = vmatprep.subr.bf16.mxu0 0
    %5499 = vmatpush2.bf16.msra.mxu0 %v5064
    %5500 = vmatprep.subr.bf16.mxu0 0
    %5501 = vmatpush2.bf16.msra.mxu0 %v5063
    %5502 = vmatprep.subr.bf16.mxu0 0
    %5503 = vmatpush2.bf16.msra.mxu0 %v5062
    %5504 = vmatprep.subr.bf16.mxu0 0
    %5505 = vmatpush2.bf16.msra.mxu0 %v5061
    %5506 = vmatprep.subr.bf16.mxu0 0
    %5507 = vmatpush2.bf16.msra.mxu0 %v5060
    %5508 = vmatprep.mubr.bf16.mxu0 %v4164
    %5509 = vmatmul.mubr.bf16.gmra.mxu0 %v4163
    %v5510 = vpop.f32.mrf.mxu0
    %v5511 = vadd.f32 %v5471, %v5510
    %v5512 = vpop.f32.mrf.mxu0
    %v5513 = vpop.f32.mrf.mxu0
    %v5514 = vpop.f32.mrf.mxu0
    %5515 = vdwg.mxu0
    %v5516 = vtanh.pop %v5511
    %5518 = vrot.lane.b32.xlu0 %v128, 64
    %v5519 = vpop.permute.xlu0 %5518
    %v5521 = vsel %vm103, %v5516, %v5519
    %5522 = vst [vmem:[#allocation13] sm:$0xff] %v5521
    // Predicated region
    $region54: #{tpu_custom_call.1} parent=1 // pred_check
      _
    $region55: #{tpu_custom_call.1} parent=1 // pred_check_branch
      %5524 = sbr.rel (0) target = $region57
    $region56: #{tpu_custom_call.1} parent=1 // pred_region
      %s5526 = ssub.s32 128, 128
      %5527 = vsyncadd [#allocation4], %s5526
      %s5529 = sshll.u32 [#allocation13], 4
      %s5530 = int_to_ptr.vmem [resolvable:$true] %s5529
      %5532 = dma.vmem_to_hbm [thread:$0]  %s5530, 128, %s7, [#allocation4]
    $region57: #{tpu_custom_call.1} parent=1 // pred_fallthru
      _
    // Predicated region
    $region58: #{tpu_custom_call.1} parent=1 // pred_check
      _
    $region59: #{tpu_custom_call.1} parent=1 // pred_check_branch
      %5534 = sbr.rel (0) target = $region61
    $region60: #{tpu_custom_call.1} parent=1 // pred_region
      %5535 = dma.done [#allocation4], 128
    $region61: #{tpu_custom_call.1} parent=1 // pred_fallthru
      _
    %5536 = vsyncpa [#allocation3], 1
    %5537 = vsyncpa [#allocation6], 1
    %5538 = vsyncpa [#allocation9], 1
    %5539 = vsyncpa [#allocation12], 1
    %5540 = vsyncpa [#allocation4], 1

</llo_original>
